<compile_context>
chip_gen: v5e
topology: v5e:2x2
jax: 0.10.0
libtpu: 0.0.40
codegen_flags: <defaults>
</compile_context>

<pallas_src>
import functools
import inspect

import jax
import jax.numpy as jnp
from jax import lax
from jax.experimental import pallas as pl
from jax.experimental.pallas import tpu as pltpu

EPS = 1e-5  # nn.InstanceNorm2d default eps (affine=False by default)


def _gcn_kernel(x_ref, wl1_ref, wl2_ref, wr1_ref, wr2_ref, o_ref, *,
                H, W, Cin, Cout, ks, eps, compute_dtype, fused_patch_max_k):
    # x_ref:   [b, Cin, H*W]   input images (NCHW flattened), compute_dtype
    # wl1/wr2: [Cout, ks*C]    fused (ks,1) conv weights (H direction), compute_dtype
    # wl2/wr1: [Cout, ks*C]    fused (1,ks) conv weights (W direction), compute_dtype
    # o_ref:   [b, Cout, H*W]  float32 output
    HW = H * W
    p = ks // 2

    # In-kernel W-direction boundary masks (bool, [1, HW]): tap i reads column col + (i - p);
    # contributions whose source column falls outside [0, W) must be zeroed.
    col = lax.broadcasted_iota(jnp.int32, (1, HW), 1) % W
    wmask = [(col >= (p - i)) & (col < (W + p - i)) for i in range(ks)]

    wl1 = wl1_ref[...]
    wl2 = wl2_ref[...]
    wr1 = wr1_ref[...]
    wr2 = wr2_ref[...]

    def conv_h(v, w2d):
        # (ks,1) conv: vertical taps are flat shifts by multiples of W (rows never wrap).
        C = v.shape[0]
        vc = v.astype(compute_dtype)
        zpad = jnp.zeros((C, p * W), compute_dtype)
        vpad = jnp.concatenate([zpad, vc, zpad], axis=1)            # [C, HW + 2*p*W]
        if ks * C <= fused_patch_max_k:
            # Small contraction: one MXU call on a ks-stacked patch.
            patch = jnp.concatenate(
                [vpad[:, i * W:i * W + HW] for i in range(ks)], axis=0)   # [ks*C, HW]
            return jnp.dot(w2d, patch, preferred_element_type=jnp.float32)
        # Large contraction: per-tap accumulating matmuls, no ks*-sized VMEM temporary.
        acc = jnp.zeros((Cout, HW), jnp.float32)
        for i in range(ks):
            acc = acc + jnp.dot(w2d[:, i * C:(i + 1) * C], vpad[:, i * W:i * W + HW],
                                preferred_element_type=jnp.float32)
        return acc

    def conv_w(v, w2d):
        # (1,ks) conv: flat shifts by +/- i; row-boundary taps zeroed by wmask.
        C = v.shape[0]
        vc = v.astype(compute_dtype)
        zpad = jnp.zeros((C, p), compute_dtype)
        vpad = jnp.concatenate([zpad, vc, zpad], axis=1)            # [C, HW + 2*p]
        if ks * C <= fused_patch_max_k:
            patch = jnp.concatenate(
                [vpad[:, i:i + HW] if i == p
                 else jnp.where(wmask[i], vpad[:, i:i + HW], jnp.zeros((), compute_dtype))
                 for i in range(ks)], axis=0)                        # [ks*C, HW]
            return jnp.dot(w2d, patch, preferred_element_type=jnp.float32)
        acc = jnp.zeros((Cout, HW), jnp.float32)
        for i in range(ks):
            t = jnp.dot(w2d[:, i * C:(i + 1) * C], vpad[:, i:i + HW],
                        preferred_element_type=jnp.float32)
            if i != p:                               # mask commutes through the contraction
                t = jnp.where(wmask[i], t, 0.0)
            acc = acc + t
        return acc

    def inorm_relu(y):
        # InstanceNorm2d (per-channel over spatial, biased variance) + ReLU.
        # Centered two-pass statistics in f32; (y - m) is reused for the output.
        m = jnp.mean(y, axis=1, keepdims=True)
        d = y - m
        var = jnp.mean(d * d, axis=1, keepdims=True)
        return jnp.maximum(d * lax.rsqrt(var + eps), 0.0)

    for img in range(x_ref.shape[0]):                # static unroll over images in the block
        x = x_ref[img]                               # [Cin, HW]
        xl = inorm_relu(conv_h(x, wl1))              # conv_l1: (ks,1), Cin  -> Cout
        xl = inorm_relu(conv_w(xl, wl2))             # conv_l2: (1,ks), Cout -> Cout
        xr = inorm_relu(conv_w(x, wr1))              # conv_r1: (1,ks), Cin  -> Cout
        xr = inorm_relu(conv_h(xr, wr2))             # conv_r2: (ks,1), Cout -> Cout
        o_ref[img] = (xl + xr).astype(o_ref.dtype)


def _fuse_h(w):  # PyTorch weight [Cout, Cin, ks, 1] -> [Cout, ks*Cin]  (tap-major columns)
    co, ci, ks_, _ = w.shape
    return jnp.transpose(w[:, :, :, 0], (0, 2, 1)).reshape(co, ks_ * ci).astype(jnp.float32)


def _fuse_w(w):  # PyTorch weight [Cout, Cin, 1, ks] -> [Cout, ks*Cin]  (tap-major columns)
    co, ci, _, ks_ = w.shape
    return jnp.transpose(w[:, :, 0, :], (0, 2, 1)).reshape(co, ks_ * ci).astype(jnp.float32)


def _supports_pipeline_mode():
    if not hasattr(pl, "Buffered"):
        return False
    try:
        return "pipeline_mode" in inspect.signature(pl.BlockSpec).parameters
    except (TypeError, ValueError):
        return False


def gcn_forward(x_nchw, params, ks=7, *, compute_dtype=jnp.float32,
                fused_patch_max_k=256, images_per_step=1):
    """GCN forward. x is NCHW; params hold PyTorch-layout (OIHW) conv weights (+ biases,
    which are mathematically cancelled by affine-free InstanceNorm and therefore unused)."""
    N, Cin, H, W = x_nchw.shape
    Cout = params["wl1"].shape[0]
    HW = H * W
    b = images_per_step if (images_per_step and N % images_per_step == 0) else 1

    x_flat = x_nchw.reshape(N, Cin, HW).astype(compute_dtype)   # free reshape of NCHW

    wl1 = _fuse_h(params["wl1"]).astype(compute_dtype)   # [Cout, ks*Cin]
    wl2 = _fuse_w(params["wl2"]).astype(compute_dtype)   # [Cout, ks*Cout]
    wr1 = _fuse_w(params["wr1"]).astype(compute_dtype)   # [Cout, ks*Cin]
    wr2 = _fuse_h(params["wr2"]).astype(compute_dtype)   # [Cout, ks*Cout]

    kernel = functools.partial(
        _gcn_kernel, H=H, W=W, Cin=Cin, Cout=Cout, ks=ks, eps=EPS,
        compute_dtype=compute_dtype, fused_patch_max_k=fused_patch_max_k)

    # Explicit scoped-VMEM budget: double-buffered x/out blocks, single-buffered weights,
    # padded activations + accumulators + (possible) fused patch.  Generous headroom.
    cb = jnp.dtype(compute_dtype).itemsize
    est = (2 * b * Cin * HW * cb                       # x block (double-buffered)
           + 2 * b * Cout * HW * 4                     # out block (double-buffered, f32)
           + 2 * ks * Cout * (Cin + Cout) * cb         # 4 fused weight arrays
           + (Cin + Cout) * (HW + ks * W) * cb         # zero-padded activation buffers
           + (ks + 6) * Cout * HW * 4)                 # patch / acc / branch temporaries
    vmem_limit = int(min(max(4 * est, 32 << 20), 100 << 20))

    weight_kwargs = dict(pipeline_mode=pl.Buffered(1)) if _supports_pipeline_mode() else {}

    def build(wkw):
        return pl.pallas_call(
            kernel,
            out_shape=jax.ShapeDtypeStruct((N, Cout, HW), jnp.float32),
            grid_spec=pltpu.PrefetchScalarGridSpec(
                num_scalar_prefetch=0,
                grid=(N // b,),
                in_specs=[
                    pl.BlockSpec((b, Cin, HW), lambda n: (n, 0, 0)),
                    pl.BlockSpec((Cout, ks * Cin), lambda n: (0, 0), **wkw),
                    pl.BlockSpec((Cout, ks * Cout), lambda n: (0, 0), **wkw),
                    pl.BlockSpec((Cout, ks * Cin), lambda n: (0, 0), **wkw),
                    pl.BlockSpec((Cout, ks * Cout), lambda n: (0, 0), **wkw),
                ],
                out_specs=pl.BlockSpec((b, Cout, HW), lambda n: (n, 0, 0)),
            ),
            compiler_params=pltpu.CompilerParams(
                dimension_semantics=("parallel",),
                vmem_limit_bytes=vmem_limit),
        )

    args = (x_flat, wl1, wl2, wr1, wr2)
    if weight_kwargs:
        try:
            out_flat = build(weight_kwargs)(*args)
        except Exception:  # fallback if Buffered(1) is unsupported by this JAX build
            out_flat = build({})(*args)
    else:
        out_flat = build({})(*args)

    return out_flat.reshape(N, Cout, H, W)   # free reshape back to NCHW


# ----------------------------- pure-JAX reference ----------------------------------------
def _cna_ref(x, w_oihw, b, pad):
    y = lax.conv_general_dilated(
        x, w_oihw.astype(jnp.float32), window_strides=(1, 1), padding=pad,
        dimension_numbers=("NCHW", "OIHW", "NCHW"))
    y = y + b.reshape(1, -1, 1, 1)
    m = y.mean(axis=(2, 3), keepdims=True)
    v = ((y - m) ** 2).mean(axis=(2, 3), keepdims=True)
    return jnp.maximum((y - m) / jnp.sqrt(v + EPS), 0.0)


def gcn_reference(x_nchw, params, ks=7):
    p = ks // 2
    x = x_nchw.astype(jnp.float32)
    xl = _cna_ref(x, params["wl1"], params["bl1"], ((p, p), (0, 0)))
    xl = _cna_ref(xl, params["wl2"], params["bl2"], ((0, 0), (p, p)))
    xr = _cna_ref(x, params["wr1"], params["br1"], ((0, 0), (p, p)))
    xr = _cna_ref(xr, params["wr2"], params["br2"], ((p, p), (0, 0)))
    return xl + xr


if __name__ == "__main__":
    key = jax.random.PRNGKey(0)
    keys = jax.random.split(key, 10)

    KS = 7
    N, C_IN, C_OUT, H, W = 2, 8, 8, 16, 16

    x = jax.random.normal(keys[0], (N, C_IN, H, W), jnp.float32)  # NCHW

    # Deterministic synthetic parameters in PyTorch (OIHW) layout.
    params = dict(
        wl1=0.1 * jax.random.normal(keys[1], (C_OUT, C_IN, KS, 1), jnp.float32),
        bl1=0.05 * jax.random.normal(keys[2], (C_OUT,), jnp.float32),
        wl2=0.1 * jax.random.normal(keys[3], (C_OUT, C_OUT, 1, KS), jnp.float32),
        bl2=0.05 * jax.random.normal(keys[4], (C_OUT,), jnp.float32),
        wr1=0.1 * jax.random.normal(keys[5], (C_OUT, C_IN, 1, KS), jnp.float32),
        br1=0.05 * jax.random.normal(keys[6], (C_OUT,), jnp.float32),
        wr2=0.1 * jax.random.normal(keys[7], (C_OUT, C_OUT, KS, 1), jnp.float32),
        br2=0.05 * jax.random.normal(keys[8], (C_OUT,), jnp.float32),
    )

    ref = jax.block_until_ready(gcn_reference(x, params, ks=KS))

    # 1) f32, fused-patch contraction (ks*C <= 256 here), 2 images per grid step.
    out = jax.block_until_ready(gcn_forward(x, params, ks=KS, images_per_step=2))
    assert out.shape == (N, C_OUT, H, W), out.shape
    err = float(jnp.max(jnp.abs(out - ref)))
    assert jnp.allclose(out, ref, atol=1e-4, rtol=1e-4), err

    # 2) f32, per-tap accumulating matmuls (force the large-contraction path).
    out2 = jax.block_until_ready(gcn_forward(x, params, ks=KS, fused_patch_max_k=0))
    err2 = float(jnp.max(jnp.abs(out2 - ref)))
    assert jnp.allclose(out2, ref, atol=1e-4, rtol=1e-4), err2

    # 3) bf16 MXU operands (f32 accumulation + f32 InstanceNorm statistics).
    out3 = jax.block_until_ready(gcn_forward(x, params, ks=KS, compute_dtype=jnp.bfloat16))
    err3 = float(jnp.max(jnp.abs(out3 - ref)))
    mean3 = float(jnp.mean(jnp.abs(out3 - ref)))
    assert err3 < 0.25 and mean3 < 0.03, (err3, mean3)

    print("KERNEL_OK")
</pallas_src>

<mosaic_0001>
module attributes {stable_mosaic.version = 11 : i64} {
  func.func @_gcn_kernel(%arg0: i32, %arg1: memref<2x8x256xf32, #tpu.memory_space<vmem>>, %arg2: memref<8x56xf32, #tpu.memory_space<vmem>>, %arg3: memref<8x56xf32, #tpu.memory_space<vmem>>, %arg4: memref<8x56xf32, #tpu.memory_space<vmem>>, %arg5: memref<8x56xf32, #tpu.memory_space<vmem>>, %arg6: memref<2x8x256xf32, #tpu.memory_space<vmem>>) attributes {dimension_semantics = [#tpu.dimension_semantics<parallel>], iteration_bounds = array<i64: 1>, scalar_prefetch = 0 : i64, scratch_operands = 0 : i64, tpu.core_type = #tpu.core_type<tc>, window_params = [{transform_indices = @transform_0, window_bounds = array<i64: 2, 8, 256>}, {pipeline_mode = #tpu.pipeline_mode<synchronous>, transform_indices = @transform_1, window_bounds = array<i64: 8, 56>}, {pipeline_mode = #tpu.pipeline_mode<synchronous>, transform_indices = @transform_2, window_bounds = array<i64: 8, 56>}, {pipeline_mode = #tpu.pipeline_mode<synchronous>, transform_indices = @transform_3, window_bounds = array<i64: 8, 56>}, {pipeline_mode = #tpu.pipeline_mode<synchronous>, transform_indices = @transform_4, window_bounds = array<i64: 8, 56>}, {transform_indices = @transform_5, window_bounds = array<i64: 2, 8, 256>}]} {
    %0 = tpu.iota {dimensions = array<i32: 1>} : vector<1x256xi32>
    %c16_i32 = arith.constant 16 : i32
    %c0_i32 = arith.constant 0 : i32
    %1 = arith.cmpi eq, %c16_i32, %c0_i32 : i32
    %c1_i32 = arith.constant 1 : i32
    %2 = arith.select %1, %c1_i32, %c16_i32 : i32
    %3 = vector.broadcast %2 : i32 to vector<1x256xi32>
    %4 = arith.remsi %0, %3 : vector<1x256xi32>
    %c0_i32_0 = arith.constant 0 : i32
    %5 = vector.broadcast %c0_i32_0 : i32 to vector<1x256xi32>
    %6 = arith.cmpi ne, %4, %5 : vector<1x256xi32>
    %c0_i32_1 = arith.constant 0 : i32
    %7 = vector.broadcast %c0_i32_1 : i32 to vector<1x256xi32>
    %8 = arith.cmpi slt, %4, %7 : vector<1x256xi32>
    %c0_i32_2 = arith.constant 0 : i32
    %9 = arith.cmpi slt, %2, %c0_i32_2 : i32
    %10 = vector.broadcast %9 : i1 to vector<1x256xi1>
    %11 = vector.broadcast %10 : vector<1x256xi1> to vector<1x256xi1>
    %12 = arith.xori %8, %11 : vector<1x256xi1>
    %13 = arith.andi %12, %6 : vector<1x256xi1>
    %14 = vector.broadcast %2 : i32 to vector<1x256xi32>
    %15 = arith.addi %4, %14 : vector<1x256xi32>
    %16 = arith.select %13, %15, %4 : vector<1x256xi1>, vector<1x256xi32>
    %c3_i32 = arith.constant 3 : i32
    %17 = vector.broadcast %c3_i32 : i32 to vector<1x256xi32>
    %18 = arith.cmpi sge, %16, %17 : vector<1x256xi32>
    %c19_i32 = arith.constant 19 : i32
    %19 = vector.broadcast %c19_i32 : i32 to vector<1x256xi32>
    %20 = arith.cmpi slt, %16, %19 : vector<1x256xi32>
    %21 = arith.andi %18, %20 : vector<1x256xi1>
    %c2_i32 = arith.constant 2 : i32
    %22 = vector.broadcast %c2_i32 : i32 to vector<1x256xi32>
    %23 = arith.cmpi sge, %16, %22 : vector<1x256xi32>
    %c18_i32 = arith.constant 18 : i32
    %24 = vector.broadcast %c18_i32 : i32 to vector<1x256xi32>
    %25 = arith.cmpi slt, %16, %24 : vector<1x256xi32>
    %26 = arith.andi %23, %25 : vector<1x256xi1>
    %c1_i32_3 = arith.constant 1 : i32
    %27 = vector.broadcast %c1_i32_3 : i32 to vector<1x256xi32>
    %28 = arith.cmpi sge, %16, %27 : vector<1x256xi32>
    %c17_i32 = arith.constant 17 : i32
    %29 = vector.broadcast %c17_i32 : i32 to vector<1x256xi32>
    %30 = arith.cmpi slt, %16, %29 : vector<1x256xi32>
    %31 = arith.andi %28, %30 : vector<1x256xi1>
    %c-1_i32 = arith.constant -1 : i32
    %32 = vector.broadcast %c-1_i32 : i32 to vector<1x256xi32>
    %33 = arith.cmpi sge, %16, %32 : vector<1x256xi32>
    %c15_i32 = arith.constant 15 : i32
    %34 = vector.broadcast %c15_i32 : i32 to vector<1x256xi32>
    %35 = arith.cmpi slt, %16, %34 : vector<1x256xi32>
    %36 = arith.andi %33, %35 : vector<1x256xi1>
    %c-2_i32 = arith.constant -2 : i32
    %37 = vector.broadcast %c-2_i32 : i32 to vector<1x256xi32>
    %38 = arith.cmpi sge, %16, %37 : vector<1x256xi32>
    %c14_i32 = arith.constant 14 : i32
    %39 = vector.broadcast %c14_i32 : i32 to vector<1x256xi32>
    %40 = arith.cmpi slt, %16, %39 : vector<1x256xi32>
    %41 = arith.andi %38, %40 : vector<1x256xi1>
    %c-3_i32 = arith.constant -3 : i32
    %42 = vector.broadcast %c-3_i32 : i32 to vector<1x256xi32>
    %43 = arith.cmpi sge, %16, %42 : vector<1x256xi32>
    %c13_i32 = arith.constant 13 : i32
    %44 = vector.broadcast %c13_i32 : i32 to vector<1x256xi32>
    %45 = arith.cmpi slt, %16, %44 : vector<1x256xi32>
    %46 = arith.andi %43, %45 : vector<1x256xi1>
    %c0 = arith.constant 0 : index
    %c0_4 = arith.constant 0 : index
    %47 = vector.load %arg2[%c0, %c0_4] : memref<8x56xf32, #tpu.memory_space<vmem>>, vector<8x56xf32>
    %c0_5 = arith.constant 0 : index
    %c0_6 = arith.constant 0 : index
    %48 = vector.load %arg3[%c0_5, %c0_6] : memref<8x56xf32, #tpu.memory_space<vmem>>, vector<8x56xf32>
    %c0_7 = arith.constant 0 : index
    %c0_8 = arith.constant 0 : index
    %49 = vector.load %arg4[%c0_7, %c0_8] : memref<8x56xf32, #tpu.memory_space<vmem>>, vector<8x56xf32>
    %c0_9 = arith.constant 0 : index
    %c0_10 = arith.constant 0 : index
    %50 = vector.load %arg5[%c0_9, %c0_10] : memref<8x56xf32, #tpu.memory_space<vmem>>, vector<8x56xf32>
    %c0_11 = arith.constant 0 : index
    %c0_12 = arith.constant 0 : index
    %c0_13 = arith.constant 0 : index
    %51 = vector.load %arg1[%c0_11, %c0_12, %c0_13] : memref<2x8x256xf32, #tpu.memory_space<vmem>>, vector<1x8x256xf32>
    %52 = vector.shape_cast %51 : vector<1x8x256xf32> to vector<8x256xf32>
    %cst = arith.constant 0.000000e+00 : f32
    %53 = vector.broadcast %cst : f32 to vector<8x48xf32>
    %54 = tpu.concatenate %53, %52, %53 in 1 : vector<8x48xf32>, vector<8x256xf32>, vector<8x48xf32> -> vector<8x352xf32>
    %55 = vector.extract_strided_slice %54 {offsets = [0, 0], sizes = [8, 256], strides = [1, 1]} : vector<8x352xf32> to vector<8x256xf32>
    %56 = vector.extract_strided_slice %54 {offsets = [0, 16], sizes = [8, 256], strides = [1, 1]} : vector<8x352xf32> to vector<8x256xf32>
    %57 = vector.extract_strided_slice %54 {offsets = [0, 32], sizes = [8, 256], strides = [1, 1]} : vector<8x352xf32> to vector<8x256xf32>
    %58 = vector.extract_strided_slice %54 {offsets = [0, 48], sizes = [8, 256], strides = [1, 1]} : vector<8x352xf32> to vector<8x256xf32>
    %59 = vector.extract_strided_slice %54 {offsets = [0, 64], sizes = [8, 256], strides = [1, 1]} : vector<8x352xf32> to vector<8x256xf32>
    %60 = vector.extract_strided_slice %54 {offsets = [0, 80], sizes = [8, 256], strides = [1, 1]} : vector<8x352xf32> to vector<8x256xf32>
    %61 = vector.extract_strided_slice %54 {offsets = [0, 96], sizes = [8, 256], strides = [1, 1]} : vector<8x352xf32> to vector<8x256xf32>
    %62 = tpu.concatenate %55, %56, %57, %58, %59, %60, %61 in 0 : vector<8x256xf32>, vector<8x256xf32>, vector<8x256xf32>, vector<8x256xf32>, vector<8x256xf32>, vector<8x256xf32>, vector<8x256xf32> -> vector<56x256xf32>
    %cst_14 = arith.constant dense<0.000000e+00> : vector<8x256xf32>
    %63 = tpu.matmul %47, %62, %cst_14 {dimension_numbers = #tpu.dot_dimension_numbers<[1], [0], [0], [1], [0, 0, 1, 1], [], []>} : vector<8x56xf32>, vector<56x256xf32>, vector<8x256xf32> -> vector<8x256xf32>
    %cst_15 = arith.constant dense<0.000000e+00> : vector<8xf32>
    %64 = vector.multi_reduction <add>, %63, %cst_15 [1] : vector<8x256xf32> to vector<8xf32>
    %65 = vector.shape_cast %64 : vector<8xf32> to vector<8x1xf32>
    %cst_16 = arith.constant 2.560000e+02 : f32
    %66 = vector.broadcast %cst_16 : f32 to vector<8x1xf32>
    %67 = arith.divf %65, %66 : vector<8x1xf32>
    %68 = vector.broadcast %67 : vector<8x1xf32> to vector<8x256xf32>
    %69 = arith.subf %63, %68 : vector<8x256xf32>
    %70 = arith.mulf %69, %69 : vector<8x256xf32>
    %cst_17 = arith.constant dense<0.000000e+00> : vector<8xf32>
    %71 = vector.multi_reduction <add>, %70, %cst_17 [1] : vector<8x256xf32> to vector<8xf32>
    %72 = vector.shape_cast %71 : vector<8xf32> to vector<8x1xf32>
    %cst_18 = arith.constant 2.560000e+02 : f32
    %73 = vector.broadcast %cst_18 : f32 to vector<8x1xf32>
    %74 = arith.divf %72, %73 : vector<8x1xf32>
    %cst_19 = arith.constant 9.99999974E-6 : f32
    %75 = vector.broadcast %cst_19 : f32 to vector<8x1xf32>
    %76 = arith.addf %74, %75 : vector<8x1xf32>
    %77 = math.rsqrt %76 : vector<8x1xf32>
    %78 = vector.broadcast %77 : vector<8x1xf32> to vector<8x256xf32>
    %79 = arith.mulf %69, %78 : vector<8x256xf32>
    %cst_20 = arith.constant 0.000000e+00 : f32
    %80 = vector.broadcast %cst_20 : f32 to vector<8x256xf32>
    %81 = arith.maximumf %79, %80 : vector<8x256xf32>
    %cst_21 = arith.constant 0.000000e+00 : f32
    %82 = vector.broadcast %cst_21 : f32 to vector<8x3xf32>
    %83 = tpu.concatenate %82, %81, %82 in 1 : vector<8x3xf32>, vector<8x256xf32>, vector<8x3xf32> -> vector<8x262xf32>
    %84 = vector.extract_strided_slice %83 {offsets = [0, 0], sizes = [8, 256], strides = [1, 1]} : vector<8x262xf32> to vector<8x256xf32>
    %cst_22 = arith.constant 0.000000e+00 : f32
    %85 = vector.shape_cast %21 : vector<1x256xi1> to vector<1x256xi1>
    %86 = vector.broadcast %85 : vector<1x256xi1> to vector<8x256xi1>
    %87 = vector.broadcast %cst_22 : f32 to vector<8x256xf32>
    %88 = arith.select %86, %84, %87 : vector<8x256xi1>, vector<8x256xf32>
    %89 = vector.extract_strided_slice %83 {offsets = [0, 1], sizes = [8, 256], strides = [1, 1]} : vector<8x262xf32> to vector<8x256xf32>
    %cst_23 = arith.constant 0.000000e+00 : f32
    %90 = vector.shape_cast %26 : vector<1x256xi1> to vector<1x256xi1>
    %91 = vector.broadcast %90 : vector<1x256xi1> to vector<8x256xi1>
    %92 = vector.broadcast %cst_23 : f32 to vector<8x256xf32>
    %93 = arith.select %91, %89, %92 : vector<8x256xi1>, vector<8x256xf32>
    %94 = vector.extract_strided_slice %83 {offsets = [0, 2], sizes = [8, 256], strides = [1, 1]} : vector<8x262xf32> to vector<8x256xf32>
    %cst_24 = arith.constant 0.000000e+00 : f32
    %95 = vector.shape_cast %31 : vector<1x256xi1> to vector<1x256xi1>
    %96 = vector.broadcast %95 : vector<1x256xi1> to vector<8x256xi1>
    %97 = vector.broadcast %cst_24 : f32 to vector<8x256xf32>
    %98 = arith.select %96, %94, %97 : vector<8x256xi1>, vector<8x256xf32>
    %99 = vector.extract_strided_slice %83 {offsets = [0, 3], sizes = [8, 256], strides = [1, 1]} : vector<8x262xf32> to vector<8x256xf32>
    %100 = vector.extract_strided_slice %83 {offsets = [0, 4], sizes = [8, 256], strides = [1, 1]} : vector<8x262xf32> to vector<8x256xf32>
    %cst_25 = arith.constant 0.000000e+00 : f32
    %101 = vector.shape_cast %36 : vector<1x256xi1> to vector<1x256xi1>
    %102 = vector.broadcast %101 : vector<1x256xi1> to vector<8x256xi1>
    %103 = vector.broadcast %cst_25 : f32 to vector<8x256xf32>
    %104 = arith.select %102, %100, %103 : vector<8x256xi1>, vector<8x256xf32>
    %105 = vector.extract_strided_slice %83 {offsets = [0, 5], sizes = [8, 256], strides = [1, 1]} : vector<8x262xf32> to vector<8x256xf32>
    %cst_26 = arith.constant 0.000000e+00 : f32
    %106 = vector.shape_cast %41 : vector<1x256xi1> to vector<1x256xi1>
    %107 = vector.broadcast %106 : vector<1x256xi1> to vector<8x256xi1>
    %108 = vector.broadcast %cst_26 : f32 to vector<8x256xf32>
    %109 = arith.select %107, %105, %108 : vector<8x256xi1>, vector<8x256xf32>
    %110 = vector.extract_strided_slice %83 {offsets = [0, 6], sizes = [8, 256], strides = [1, 1]} : vector<8x262xf32> to vector<8x256xf32>
    %cst_27 = arith.constant 0.000000e+00 : f32
    %111 = vector.shape_cast %46 : vector<1x256xi1> to vector<1x256xi1>
    %112 = vector.broadcast %111 : vector<1x256xi1> to vector<8x256xi1>
    %113 = vector.broadcast %cst_27 : f32 to vector<8x256xf32>
    %114 = arith.select %112, %110, %113 : vector<8x256xi1>, vector<8x256xf32>
    %115 = tpu.concatenate %88, %93, %98, %99, %104, %109, %114 in 0 : vector<8x256xf32>, vector<8x256xf32>, vector<8x256xf32>, vector<8x256xf32>, vector<8x256xf32>, vector<8x256xf32>, vector<8x256xf32> -> vector<56x256xf32>
    %cst_28 = arith.constant dense<0.000000e+00> : vector<8x256xf32>
    %116 = tpu.matmul %48, %115, %cst_28 {dimension_numbers = #tpu.dot_dimension_numbers<[1], [0], [0], [1], [0, 0, 1, 1], [], []>} : vector<8x56xf32>, vector<56x256xf32>, vector<8x256xf32> -> vector<8x256xf32>
    %cst_29 = arith.constant dense<0.000000e+00> : vector<8xf32>
    %117 = vector.multi_reduction <add>, %116, %cst_29 [1] : vector<8x256xf32> to vector<8xf32>
    %118 = vector.shape_cast %117 : vector<8xf32> to vector<8x1xf32>
    %cst_30 = arith.constant 2.560000e+02 : f32
    %119 = vector.broadcast %cst_30 : f32 to vector<8x1xf32>
    %120 = arith.divf %118, %119 : vector<8x1xf32>
    %121 = vector.broadcast %120 : vector<8x1xf32> to vector<8x256xf32>
    %122 = arith.subf %116, %121 : vector<8x256xf32>
    %123 = arith.mulf %122, %122 : vector<8x256xf32>
    %cst_31 = arith.constant dense<0.000000e+00> : vector<8xf32>
    %124 = vector.multi_reduction <add>, %123, %cst_31 [1] : vector<8x256xf32> to vector<8xf32>
    %125 = vector.shape_cast %124 : vector<8xf32> to vector<8x1xf32>
    %cst_32 = arith.constant 2.560000e+02 : f32
    %126 = vector.broadcast %cst_32 : f32 to vector<8x1xf32>
    %127 = arith.divf %125, %126 : vector<8x1xf32>
    %cst_33 = arith.constant 9.99999974E-6 : f32
    %128 = vector.broadcast %cst_33 : f32 to vector<8x1xf32>
    %129 = arith.addf %127, %128 : vector<8x1xf32>
    %130 = math.rsqrt %129 : vector<8x1xf32>
    %131 = vector.broadcast %130 : vector<8x1xf32> to vector<8x256xf32>
    %132 = arith.mulf %122, %131 : vector<8x256xf32>
    %cst_34 = arith.constant 0.000000e+00 : f32
    %133 = vector.broadcast %cst_34 : f32 to vector<8x256xf32>
    %134 = arith.maximumf %132, %133 : vector<8x256xf32>
    %cst_35 = arith.constant 0.000000e+00 : f32
    %135 = vector.broadcast %cst_35 : f32 to vector<8x3xf32>
    %136 = tpu.concatenate %135, %52, %135 in 1 : vector<8x3xf32>, vector<8x256xf32>, vector<8x3xf32> -> vector<8x262xf32>
    %137 = vector.extract_strided_slice %136 {offsets = [0, 0], sizes = [8, 256], strides = [1, 1]} : vector<8x262xf32> to vector<8x256xf32>
    %cst_36 = arith.constant 0.000000e+00 : f32
    %138 = vector.shape_cast %21 : vector<1x256xi1> to vector<1x256xi1>
    %139 = vector.broadcast %138 : vector<1x256xi1> to vector<8x256xi1>
    %140 = vector.broadcast %cst_36 : f32 to vector<8x256xf32>
    %141 = arith.select %139, %137, %140 : vector<8x256xi1>, vector<8x256xf32>
    %142 = vector.extract_strided_slice %136 {offsets = [0, 1], sizes = [8, 256], strides = [1, 1]} : vector<8x262xf32> to vector<8x256xf32>
    %cst_37 = arith.constant 0.000000e+00 : f32
    %143 = vector.shape_cast %26 : vector<1x256xi1> to vector<1x256xi1>
    %144 = vector.broadcast %143 : vector<1x256xi1> to vector<8x256xi1>
    %145 = vector.broadcast %cst_37 : f32 to vector<8x256xf32>
    %146 = arith.select %144, %142, %145 : vector<8x256xi1>, vector<8x256xf32>
    %147 = vector.extract_strided_slice %136 {offsets = [0, 2], sizes = [8, 256], strides = [1, 1]} : vector<8x262xf32> to vector<8x256xf32>
    %cst_38 = arith.constant 0.000000e+00 : f32
    %148 = vector.shape_cast %31 : vector<1x256xi1> to vector<1x256xi1>
    %149 = vector.broadcast %148 : vector<1x256xi1> to vector<8x256xi1>
    %150 = vector.broadcast %cst_38 : f32 to vector<8x256xf32>
    %151 = arith.select %149, %147, %150 : vector<8x256xi1>, vector<8x256xf32>
    %152 = vector.extract_strided_slice %136 {offsets = [0, 3], sizes = [8, 256], strides = [1, 1]} : vector<8x262xf32> to vector<8x256xf32>
    %153 = vector.extract_strided_slice %136 {offsets = [0, 4], sizes = [8, 256], strides = [1, 1]} : vector<8x262xf32> to vector<8x256xf32>
    %cst_39 = arith.constant 0.000000e+00 : f32
    %154 = vector.shape_cast %36 : vector<1x256xi1> to vector<1x256xi1>
    %155 = vector.broadcast %154 : vector<1x256xi1> to vector<8x256xi1>
    %156 = vector.broadcast %cst_39 : f32 to vector<8x256xf32>
    %157 = arith.select %155, %153, %156 : vector<8x256xi1>, vector<8x256xf32>
    %158 = vector.extract_strided_slice %136 {offsets = [0, 5], sizes = [8, 256], strides = [1, 1]} : vector<8x262xf32> to vector<8x256xf32>
    %cst_40 = arith.constant 0.000000e+00 : f32
    %159 = vector.shape_cast %41 : vector<1x256xi1> to vector<1x256xi1>
    %160 = vector.broadcast %159 : vector<1x256xi1> to vector<8x256xi1>
    %161 = vector.broadcast %cst_40 : f32 to vector<8x256xf32>
    %162 = arith.select %160, %158, %161 : vector<8x256xi1>, vector<8x256xf32>
    %163 = vector.extract_strided_slice %136 {offsets = [0, 6], sizes = [8, 256], strides = [1, 1]} : vector<8x262xf32> to vector<8x256xf32>
    %cst_41 = arith.constant 0.000000e+00 : f32
    %164 = vector.shape_cast %46 : vector<1x256xi1> to vector<1x256xi1>
    %165 = vector.broadcast %164 : vector<1x256xi1> to vector<8x256xi1>
    %166 = vector.broadcast %cst_41 : f32 to vector<8x256xf32>
    %167 = arith.select %165, %163, %166 : vector<8x256xi1>, vector<8x256xf32>
    %168 = tpu.concatenate %141, %146, %151, %152, %157, %162, %167 in 0 : vector<8x256xf32>, vector<8x256xf32>, vector<8x256xf32>, vector<8x256xf32>, vector<8x256xf32>, vector<8x256xf32>, vector<8x256xf32> -> vector<56x256xf32>
    %cst_42 = arith.constant dense<0.000000e+00> : vector<8x256xf32>
    %169 = tpu.matmul %49, %168, %cst_42 {dimension_numbers = #tpu.dot_dimension_numbers<[1], [0], [0], [1], [0, 0, 1, 1], [], []>} : vector<8x56xf32>, vector<56x256xf32>, vector<8x256xf32> -> vector<8x256xf32>
    %cst_43 = arith.constant dense<0.000000e+00> : vector<8xf32>
    %170 = vector.multi_reduction <add>, %169, %cst_43 [1] : vector<8x256xf32> to vector<8xf32>
    %171 = vector.shape_cast %170 : vector<8xf32> to vector<8x1xf32>
    %cst_44 = arith.constant 2.560000e+02 : f32
    %172 = vector.broadcast %cst_44 : f32 to vector<8x1xf32>
    %173 = arith.divf %171, %172 : vector<8x1xf32>
    %174 = vector.broadcast %173 : vector<8x1xf32> to vector<8x256xf32>
    %175 = arith.subf %169, %174 : vector<8x256xf32>
    %176 = arith.mulf %175, %175 : vector<8x256xf32>
    %cst_45 = arith.constant dense<0.000000e+00> : vector<8xf32>
    %177 = vector.multi_reduction <add>, %176, %cst_45 [1] : vector<8x256xf32> to vector<8xf32>
    %178 = vector.shape_cast %177 : vector<8xf32> to vector<8x1xf32>
    %cst_46 = arith.constant 2.560000e+02 : f32
    %179 = vector.broadcast %cst_46 : f32 to vector<8x1xf32>
    %180 = arith.divf %178, %179 : vector<8x1xf32>
    %cst_47 = arith.constant 9.99999974E-6 : f32
    %181 = vector.broadcast %cst_47 : f32 to vector<8x1xf32>
    %182 = arith.addf %180, %181 : vector<8x1xf32>
    %183 = math.rsqrt %182 : vector<8x1xf32>
    %184 = vector.broadcast %183 : vector<8x1xf32> to vector<8x256xf32>
    %185 = arith.mulf %175, %184 : vector<8x256xf32>
    %cst_48 = arith.constant 0.000000e+00 : f32
    %186 = vector.broadcast %cst_48 : f32 to vector<8x256xf32>
    %187 = arith.maximumf %185, %186 : vector<8x256xf32>
    %cst_49 = arith.constant 0.000000e+00 : f32
    %188 = vector.broadcast %cst_49 : f32 to vector<8x48xf32>
    %189 = tpu.concatenate %188, %187, %188 in 1 : vector<8x48xf32>, vector<8x256xf32>, vector<8x48xf32> -> vector<8x352xf32>
    %190 = vector.extract_strided_slice %189 {offsets = [0, 0], sizes = [8, 256], strides = [1, 1]} : vector<8x352xf32> to vector<8x256xf32>
    %191 = vector.extract_strided_slice %189 {offsets = [0, 16], sizes = [8, 256], strides = [1, 1]} : vector<8x352xf32> to vector<8x256xf32>
    %192 = vector.extract_strided_slice %189 {offsets = [0, 32], sizes = [8, 256], strides = [1, 1]} : vector<8x352xf32> to vector<8x256xf32>
    %193 = vector.extract_strided_slice %189 {offsets = [0, 48], sizes = [8, 256], strides = [1, 1]} : vector<8x352xf32> to vector<8x256xf32>
    %194 = vector.extract_strided_slice %189 {offsets = [0, 64], sizes = [8, 256], strides = [1, 1]} : vector<8x352xf32> to vector<8x256xf32>
    %195 = vector.extract_strided_slice %189 {offsets = [0, 80], sizes = [8, 256], strides = [1, 1]} : vector<8x352xf32> to vector<8x256xf32>
    %196 = vector.extract_strided_slice %189 {offsets = [0, 96], sizes = [8, 256], strides = [1, 1]} : vector<8x352xf32> to vector<8x256xf32>
    %197 = tpu.concatenate %190, %191, %192, %193, %194, %195, %196 in 0 : vector<8x256xf32>, vector<8x256xf32>, vector<8x256xf32>, vector<8x256xf32>, vector<8x256xf32>, vector<8x256xf32>, vector<8x256xf32> -> vector<56x256xf32>
    %cst_50 = arith.constant dense<0.000000e+00> : vector<8x256xf32>
    %198 = tpu.matmul %50, %197, %cst_50 {dimension_numbers = #tpu.dot_dimension_numbers<[1], [0], [0], [1], [0, 0, 1, 1], [], []>} : vector<8x56xf32>, vector<56x256xf32>, vector<8x256xf32> -> vector<8x256xf32>
    %cst_51 = arith.constant dense<0.000000e+00> : vector<8xf32>
    %199 = vector.multi_reduction <add>, %198, %cst_51 [1] : vector<8x256xf32> to vector<8xf32>
    %200 = vector.shape_cast %199 : vector<8xf32> to vector<8x1xf32>
    %cst_52 = arith.constant 2.560000e+02 : f32
    %201 = vector.broadcast %cst_52 : f32 to vector<8x1xf32>
    %202 = arith.divf %200, %201 : vector<8x1xf32>
    %203 = vector.broadcast %202 : vector<8x1xf32> to vector<8x256xf32>
    %204 = arith.subf %198, %203 : vector<8x256xf32>
    %205 = arith.mulf %204, %204 : vector<8x256xf32>
    %cst_53 = arith.constant dense<0.000000e+00> : vector<8xf32>
    %206 = vector.multi_reduction <add>, %205, %cst_53 [1] : vector<8x256xf32> to vector<8xf32>
    %207 = vector.shape_cast %206 : vector<8xf32> to vector<8x1xf32>
    %cst_54 = arith.constant 2.560000e+02 : f32
    %208 = vector.broadcast %cst_54 : f32 to vector<8x1xf32>
    %209 = arith.divf %207, %208 : vector<8x1xf32>
    %cst_55 = arith.constant 9.99999974E-6 : f32
    %210 = vector.broadcast %cst_55 : f32 to vector<8x1xf32>
    %211 = arith.addf %209, %210 : vector<8x1xf32>
    %212 = math.rsqrt %211 : vector<8x1xf32>
    %213 = vector.broadcast %212 : vector<8x1xf32> to vector<8x256xf32>
    %214 = arith.mulf %204, %213 : vector<8x256xf32>
    %cst_56 = arith.constant 0.000000e+00 : f32
    %215 = vector.broadcast %cst_56 : f32 to vector<8x256xf32>
    %216 = arith.maximumf %214, %215 : vector<8x256xf32>
    %217 = arith.addf %134, %216 : vector<8x256xf32>
    %c0_57 = arith.constant 0 : index
    %c0_58 = arith.constant 0 : index
    %c0_59 = arith.constant 0 : index
    %218 = vector.load %arg6[%c0_57, %c0_58, %c0_59] : memref<2x8x256xf32, #tpu.memory_space<vmem>>, vector<1x8x256xf32>
    %219 = vector.shape_cast %218 : vector<1x8x256xf32> to vector<8x256xf32>
    %220 = vector.shape_cast %217 : vector<8x256xf32> to vector<1x8x256xf32>
    tpu.vector_store %arg6[%c0_57, %c0_58, %c0_59], %220 {strides = array<i32>} : memref<2x8x256xf32, #tpu.memory_space<vmem>>, vector<1x8x256xf32>,
    %c1 = arith.constant 1 : index
    %c0_60 = arith.constant 0 : index
    %c0_61 = arith.constant 0 : index
    %221 = vector.load %arg1[%c1, %c0_60, %c0_61] : memref<2x8x256xf32, #tpu.memory_space<vmem>>, vector<1x8x256xf32>
    %222 = vector.shape_cast %221 : vector<1x8x256xf32> to vector<8x256xf32>
    %cst_62 = arith.constant 0.000000e+00 : f32
    %223 = vector.broadcast %cst_62 : f32 to vector<8x48xf32>
    %224 = tpu.concatenate %223, %222, %223 in 1 : vector<8x48xf32>, vector<8x256xf32>, vector<8x48xf32> -> vector<8x352xf32>
    %225 = vector.extract_strided_slice %224 {offsets = [0, 0], sizes = [8, 256], strides = [1, 1]} : vector<8x352xf32> to vector<8x256xf32>
    %226 = vector.extract_strided_slice %224 {offsets = [0, 16], sizes = [8, 256], strides = [1, 1]} : vector<8x352xf32> to vector<8x256xf32>
    %227 = vector.extract_strided_slice %224 {offsets = [0, 32], sizes = [8, 256], strides = [1, 1]} : vector<8x352xf32> to vector<8x256xf32>
    %228 = vector.extract_strided_slice %224 {offsets = [0, 48], sizes = [8, 256], strides = [1, 1]} : vector<8x352xf32> to vector<8x256xf32>
    %229 = vector.extract_strided_slice %224 {offsets = [0, 64], sizes = [8, 256], strides = [1, 1]} : vector<8x352xf32> to vector<8x256xf32>
    %230 = vector.extract_strided_slice %224 {offsets = [0, 80], sizes = [8, 256], strides = [1, 1]} : vector<8x352xf32> to vector<8x256xf32>
    %231 = vector.extract_strided_slice %224 {offsets = [0, 96], sizes = [8, 256], strides = [1, 1]} : vector<8x352xf32> to vector<8x256xf32>
    %232 = tpu.concatenate %225, %226, %227, %228, %229, %230, %231 in 0 : vector<8x256xf32>, vector<8x256xf32>, vector<8x256xf32>, vector<8x256xf32>, vector<8x256xf32>, vector<8x256xf32>, vector<8x256xf32> -> vector<56x256xf32>
    %cst_63 = arith.constant dense<0.000000e+00> : vector<8x256xf32>
    %233 = tpu.matmul %47, %232, %cst_63 {dimension_numbers = #tpu.dot_dimension_numbers<[1], [0], [0], [1], [0, 0, 1, 1], [], []>} : vector<8x56xf32>, vector<56x256xf32>, vector<8x256xf32> -> vector<8x256xf32>
    %cst_64 = arith.constant dense<0.000000e+00> : vector<8xf32>
    %234 = vector.multi_reduction <add>, %233, %cst_64 [1] : vector<8x256xf32> to vector<8xf32>
    %235 = vector.shape_cast %234 : vector<8xf32> to vector<8x1xf32>
    %cst_65 = arith.constant 2.560000e+02 : f32
    %236 = vector.broadcast %cst_65 : f32 to vector<8x1xf32>
    %237 = arith.divf %235, %236 : vector<8x1xf32>
    %238 = vector.broadcast %237 : vector<8x1xf32> to vector<8x256xf32>
    %239 = arith.subf %233, %238 : vector<8x256xf32>
    %240 = arith.mulf %239, %239 : vector<8x256xf32>
    %cst_66 = arith.constant dense<0.000000e+00> : vector<8xf32>
    %241 = vector.multi_reduction <add>, %240, %cst_66 [1] : vector<8x256xf32> to vector<8xf32>
    %242 = vector.shape_cast %241 : vector<8xf32> to vector<8x1xf32>
    %cst_67 = arith.constant 2.560000e+02 : f32
    %243 = vector.broadcast %cst_67 : f32 to vector<8x1xf32>
    %244 = arith.divf %242, %243 : vector<8x1xf32>
    %cst_68 = arith.constant 9.99999974E-6 : f32
    %245 = vector.broadcast %cst_68 : f32 to vector<8x1xf32>
    %246 = arith.addf %244, %245 : vector<8x1xf32>
    %247 = math.rsqrt %246 : vector<8x1xf32>
    %248 = vector.broadcast %247 : vector<8x1xf32> to vector<8x256xf32>
    %249 = arith.mulf %239, %248 : vector<8x256xf32>
    %cst_69 = arith.constant 0.000000e+00 : f32
    %250 = vector.broadcast %cst_69 : f32 to vector<8x256xf32>
    %251 = arith.maximumf %249, %250 : vector<8x256xf32>
    %cst_70 = arith.constant 0.000000e+00 : f32
    %252 = vector.broadcast %cst_70 : f32 to vector<8x3xf32>
    %253 = tpu.concatenate %252, %251, %252 in 1 : vector<8x3xf32>, vector<8x256xf32>, vector<8x3xf32> -> vector<8x262xf32>
    %254 = vector.extract_strided_slice %253 {offsets = [0, 0], sizes = [8, 256], strides = [1, 1]} : vector<8x262xf32> to vector<8x256xf32>
    %cst_71 = arith.constant 0.000000e+00 : f32
    %255 = vector.shape_cast %21 : vector<1x256xi1> to vector<1x256xi1>
    %256 = vector.broadcast %255 : vector<1x256xi1> to vector<8x256xi1>
    %257 = vector.broadcast %cst_71 : f32 to vector<8x256xf32>
    %258 = arith.select %256, %254, %257 : vector<8x256xi1>, vector<8x256xf32>
    %259 = vector.extract_strided_slice %253 {offsets = [0, 1], sizes = [8, 256], strides = [1, 1]} : vector<8x262xf32> to vector<8x256xf32>
    %cst_72 = arith.constant 0.000000e+00 : f32
    %260 = vector.shape_cast %26 : vector<1x256xi1> to vector<1x256xi1>
    %261 = vector.broadcast %260 : vector<1x256xi1> to vector<8x256xi1>
    %262 = vector.broadcast %cst_72 : f32 to vector<8x256xf32>
    %263 = arith.select %261, %259, %262 : vector<8x256xi1>, vector<8x256xf32>
    %264 = vector.extract_strided_slice %253 {offsets = [0, 2], sizes = [8, 256], strides = [1, 1]} : vector<8x262xf32> to vector<8x256xf32>
    %cst_73 = arith.constant 0.000000e+00 : f32
    %265 = vector.shape_cast %31 : vector<1x256xi1> to vector<1x256xi1>
    %266 = vector.broadcast %265 : vector<1x256xi1> to vector<8x256xi1>
    %267 = vector.broadcast %cst_73 : f32 to vector<8x256xf32>
    %268 = arith.select %266, %264, %267 : vector<8x256xi1>, vector<8x256xf32>
    %269 = vector.extract_strided_slice %253 {offsets = [0, 3], sizes = [8, 256], strides = [1, 1]} : vector<8x262xf32> to vector<8x256xf32>
    %270 = vector.extract_strided_slice %253 {offsets = [0, 4], sizes = [8, 256], strides = [1, 1]} : vector<8x262xf32> to vector<8x256xf32>
    %cst_74 = arith.constant 0.000000e+00 : f32
    %271 = vector.shape_cast %36 : vector<1x256xi1> to vector<1x256xi1>
    %272 = vector.broadcast %271 : vector<1x256xi1> to vector<8x256xi1>
    %273 = vector.broadcast %cst_74 : f32 to vector<8x256xf32>
    %274 = arith.select %272, %270, %273 : vector<8x256xi1>, vector<8x256xf32>
    %275 = vector.extract_strided_slice %253 {offsets = [0, 5], sizes = [8, 256], strides = [1, 1]} : vector<8x262xf32> to vector<8x256xf32>
    %cst_75 = arith.constant 0.000000e+00 : f32
    %276 = vector.shape_cast %41 : vector<1x256xi1> to vector<1x256xi1>
    %277 = vector.broadcast %276 : vector<1x256xi1> to vector<8x256xi1>
    %278 = vector.broadcast %cst_75 : f32 to vector<8x256xf32>
    %279 = arith.select %277, %275, %278 : vector<8x256xi1>, vector<8x256xf32>
    %280 = vector.extract_strided_slice %253 {offsets = [0, 6], sizes = [8, 256], strides = [1, 1]} : vector<8x262xf32> to vector<8x256xf32>
    %cst_76 = arith.constant 0.000000e+00 : f32
    %281 = vector.shape_cast %46 : vector<1x256xi1> to vector<1x256xi1>
    %282 = vector.broadcast %281 : vector<1x256xi1> to vector<8x256xi1>
    %283 = vector.broadcast %cst_76 : f32 to vector<8x256xf32>
    %284 = arith.select %282, %280, %283 : vector<8x256xi1>, vector<8x256xf32>
    %285 = tpu.concatenate %258, %263, %268, %269, %274, %279, %284 in 0 : vector<8x256xf32>, vector<8x256xf32>, vector<8x256xf32>, vector<8x256xf32>, vector<8x256xf32>, vector<8x256xf32>, vector<8x256xf32> -> vector<56x256xf32>
    %cst_77 = arith.constant dense<0.000000e+00> : vector<8x256xf32>
    %286 = tpu.matmul %48, %285, %cst_77 {dimension_numbers = #tpu.dot_dimension_numbers<[1], [0], [0], [1], [0, 0, 1, 1], [], []>} : vector<8x56xf32>, vector<56x256xf32>, vector<8x256xf32> -> vector<8x256xf32>
    %cst_78 = arith.constant dense<0.000000e+00> : vector<8xf32>
    %287 = vector.multi_reduction <add>, %286, %cst_78 [1] : vector<8x256xf32> to vector<8xf32>
    %288 = vector.shape_cast %287 : vector<8xf32> to vector<8x1xf32>
    %cst_79 = arith.constant 2.560000e+02 : f32
    %289 = vector.broadcast %cst_79 : f32 to vector<8x1xf32>
    %290 = arith.divf %288, %289 : vector<8x1xf32>
    %291 = vector.broadcast %290 : vector<8x1xf32> to vector<8x256xf32>
    %292 = arith.subf %286, %291 : vector<8x256xf32>
    %293 = arith.mulf %292, %292 : vector<8x256xf32>
    %cst_80 = arith.constant dense<0.000000e+00> : vector<8xf32>
    %294 = vector.multi_reduction <add>, %293, %cst_80 [1] : vector<8x256xf32> to vector<8xf32>
    %295 = vector.shape_cast %294 : vector<8xf32> to vector<8x1xf32>
    %cst_81 = arith.constant 2.560000e+02 : f32
    %296 = vector.broadcast %cst_81 : f32 to vector<8x1xf32>
    %297 = arith.divf %295, %296 : vector<8x1xf32>
    %cst_82 = arith.constant 9.99999974E-6 : f32
    %298 = vector.broadcast %cst_82 : f32 to vector<8x1xf32>
    %299 = arith.addf %297, %298 : vector<8x1xf32>
    %300 = math.rsqrt %299 : vector<8x1xf32>
    %301 = vector.broadcast %300 : vector<8x1xf32> to vector<8x256xf32>
    %302 = arith.mulf %292, %301 : vector<8x256xf32>
    %cst_83 = arith.constant 0.000000e+00 : f32
    %303 = vector.broadcast %cst_83 : f32 to vector<8x256xf32>
    %304 = arith.maximumf %302, %303 : vector<8x256xf32>
    %cst_84 = arith.constant 0.000000e+00 : f32
    %305 = vector.broadcast %cst_84 : f32 to vector<8x3xf32>
    %306 = tpu.concatenate %305, %222, %305 in 1 : vector<8x3xf32>, vector<8x256xf32>, vector<8x3xf32> -> vector<8x262xf32>
    %307 = vector.extract_strided_slice %306 {offsets = [0, 0], sizes = [8, 256], strides = [1, 1]} : vector<8x262xf32> to vector<8x256xf32>
    %cst_85 = arith.constant 0.000000e+00 : f32
    %308 = vector.shape_cast %21 : vector<1x256xi1> to vector<1x256xi1>
    %309 = vector.broadcast %308 : vector<1x256xi1> to vector<8x256xi1>
    %310 = vector.broadcast %cst_85 : f32 to vector<8x256xf32>
    %311 = arith.select %309, %307, %310 : vector<8x256xi1>, vector<8x256xf32>
    %312 = vector.extract_strided_slice %306 {offsets = [0, 1], sizes = [8, 256], strides = [1, 1]} : vector<8x262xf32> to vector<8x256xf32>
    %cst_86 = arith.constant 0.000000e+00 : f32
    %313 = vector.shape_cast %26 : vector<1x256xi1> to vector<1x256xi1>
    %314 = vector.broadcast %313 : vector<1x256xi1> to vector<8x256xi1>
    %315 = vector.broadcast %cst_86 : f32 to vector<8x256xf32>
    %316 = arith.select %314, %312, %315 : vector<8x256xi1>, vector<8x256xf32>
    %317 = vector.extract_strided_slice %306 {offsets = [0, 2], sizes = [8, 256], strides = [1, 1]} : vector<8x262xf32> to vector<8x256xf32>
    %cst_87 = arith.constant 0.000000e+00 : f32
    %318 = vector.shape_cast %31 : vector<1x256xi1> to vector<1x256xi1>
    %319 = vector.broadcast %318 : vector<1x256xi1> to vector<8x256xi1>
    %320 = vector.broadcast %cst_87 : f32 to vector<8x256xf32>
    %321 = arith.select %319, %317, %320 : vector<8x256xi1>, vector<8x256xf32>
    %322 = vector.extract_strided_slice %306 {offsets = [0, 3], sizes = [8, 256], strides = [1, 1]} : vector<8x262xf32> to vector<8x256xf32>
    %323 = vector.extract_strided_slice %306 {offsets = [0, 4], sizes = [8, 256], strides = [1, 1]} : vector<8x262xf32> to vector<8x256xf32>
    %cst_88 = arith.constant 0.000000e+00 : f32
    %324 = vector.shape_cast %36 : vector<1x256xi1> to vector<1x256xi1>
    %325 = vector.broadcast %324 : vector<1x256xi1> to vector<8x256xi1>
    %326 = vector.broadcast %cst_88 : f32 to vector<8x256xf32>
    %327 = arith.select %325, %323, %326 : vector<8x256xi1>, vector<8x256xf32>
    %328 = vector.extract_strided_slice %306 {offsets = [0, 5], sizes = [8, 256], strides = [1, 1]} : vector<8x262xf32> to vector<8x256xf32>
    %cst_89 = arith.constant 0.000000e+00 : f32
    %329 = vector.shape_cast %41 : vector<1x256xi1> to vector<1x256xi1>
    %330 = vector.broadcast %329 : vector<1x256xi1> to vector<8x256xi1>
    %331 = vector.broadcast %cst_89 : f32 to vector<8x256xf32>
    %332 = arith.select %330, %328, %331 : vector<8x256xi1>, vector<8x256xf32>
    %333 = vector.extract_strided_slice %306 {offsets = [0, 6], sizes = [8, 256], strides = [1, 1]} : vector<8x262xf32> to vector<8x256xf32>
    %cst_90 = arith.constant 0.000000e+00 : f32
    %334 = vector.shape_cast %46 : vector<1x256xi1> to vector<1x256xi1>
    %335 = vector.broadcast %334 : vector<1x256xi1> to vector<8x256xi1>
    %336 = vector.broadcast %cst_90 : f32 to vector<8x256xf32>
    %337 = arith.select %335, %333, %336 : vector<8x256xi1>, vector<8x256xf32>
    %338 = tpu.concatenate %311, %316, %321, %322, %327, %332, %337 in 0 : vector<8x256xf32>, vector<8x256xf32>, vector<8x256xf32>, vector<8x256xf32>, vector<8x256xf32>, vector<8x256xf32>, vector<8x256xf32> -> vector<56x256xf32>
    %cst_91 = arith.constant dense<0.000000e+00> : vector<8x256xf32>
    %339 = tpu.matmul %49, %338, %cst_91 {dimension_numbers = #tpu.dot_dimension_numbers<[1], [0], [0], [1], [0, 0, 1, 1], [], []>} : vector<8x56xf32>, vector<56x256xf32>, vector<8x256xf32> -> vector<8x256xf32>
    %cst_92 = arith.constant dense<0.000000e+00> : vector<8xf32>
    %340 = vector.multi_reduction <add>, %339, %cst_92 [1] : vector<8x256xf32> to vector<8xf32>
    %341 = vector.shape_cast %340 : vector<8xf32> to vector<8x1xf32>
    %cst_93 = arith.constant 2.560000e+02 : f32
    %342 = vector.broadcast %cst_93 : f32 to vector<8x1xf32>
    %343 = arith.divf %341, %342 : vector<8x1xf32>
    %344 = vector.broadcast %343 : vector<8x1xf32> to vector<8x256xf32>
    %345 = arith.subf %339, %344 : vector<8x256xf32>
    %346 = arith.mulf %345, %345 : vector<8x256xf32>
    %cst_94 = arith.constant dense<0.000000e+00> : vector<8xf32>
    %347 = vector.multi_reduction <add>, %346, %cst_94 [1] : vector<8x256xf32> to vector<8xf32>
    %348 = vector.shape_cast %347 : vector<8xf32> to vector<8x1xf32>
    %cst_95 = arith.constant 2.560000e+02 : f32
    %349 = vector.broadcast %cst_95 : f32 to vector<8x1xf32>
    %350 = arith.divf %348, %349 : vector<8x1xf32>
    %cst_96 = arith.constant 9.99999974E-6 : f32
    %351 = vector.broadcast %cst_96 : f32 to vector<8x1xf32>
    %352 = arith.addf %350, %351 : vector<8x1xf32>
    %353 = math.rsqrt %352 : vector<8x1xf32>
    %354 = vector.broadcast %353 : vector<8x1xf32> to vector<8x256xf32>
    %355 = arith.mulf %345, %354 : vector<8x256xf32>
    %cst_97 = arith.constant 0.000000e+00 : f32
    %356 = vector.broadcast %cst_97 : f32 to vector<8x256xf32>
    %357 = arith.maximumf %355, %356 : vector<8x256xf32>
    %cst_98 = arith.constant 0.000000e+00 : f32
    %358 = vector.broadcast %cst_98 : f32 to vector<8x48xf32>
    %359 = tpu.concatenate %358, %357, %358 in 1 : vector<8x48xf32>, vector<8x256xf32>, vector<8x48xf32> -> vector<8x352xf32>
    %360 = vector.extract_strided_slice %359 {offsets = [0, 0], sizes = [8, 256], strides = [1, 1]} : vector<8x352xf32> to vector<8x256xf32>
    %361 = vector.extract_strided_slice %359 {offsets = [0, 16], sizes = [8, 256], strides = [1, 1]} : vector<8x352xf32> to vector<8x256xf32>
    %362 = vector.extract_strided_slice %359 {offsets = [0, 32], sizes = [8, 256], strides = [1, 1]} : vector<8x352xf32> to vector<8x256xf32>
    %363 = vector.extract_strided_slice %359 {offsets = [0, 48], sizes = [8, 256], strides = [1, 1]} : vector<8x352xf32> to vector<8x256xf32>
    %364 = vector.extract_strided_slice %359 {offsets = [0, 64], sizes = [8, 256], strides = [1, 1]} : vector<8x352xf32> to vector<8x256xf32>
    %365 = vector.extract_strided_slice %359 {offsets = [0, 80], sizes = [8, 256], strides = [1, 1]} : vector<8x352xf32> to vector<8x256xf32>
    %366 = vector.extract_strided_slice %359 {offsets = [0, 96], sizes = [8, 256], strides = [1, 1]} : vector<8x352xf32> to vector<8x256xf32>
    %367 = tpu.concatenate %360, %361, %362, %363, %364, %365, %366 in 0 : vector<8x256xf32>, vector<8x256xf32>, vector<8x256xf32>, vector<8x256xf32>, vector<8x256xf32>, vector<8x256xf32>, vector<8x256xf32> -> vector<56x256xf32>
    %cst_99 = arith.constant dense<0.000000e+00> : vector<8x256xf32>
    %368 = tpu.matmul %50, %367, %cst_99 {dimension_numbers = #tpu.dot_dimension_numbers<[1], [0], [0], [1], [0, 0, 1, 1], [], []>} : vector<8x56xf32>, vector<56x256xf32>, vector<8x256xf32> -> vector<8x256xf32>
    %cst_100 = arith.constant dense<0.000000e+00> : vector<8xf32>
    %369 = vector.multi_reduction <add>, %368, %cst_100 [1] : vector<8x256xf32> to vector<8xf32>
    %370 = vector.shape_cast %369 : vector<8xf32> to vector<8x1xf32>
    %cst_101 = arith.constant 2.560000e+02 : f32
    %371 = vector.broadcast %cst_101 : f32 to vector<8x1xf32>
    %372 = arith.divf %370, %371 : vector<8x1xf32>
    %373 = vector.broadcast %372 : vector<8x1xf32> to vector<8x256xf32>
    %374 = arith.subf %368, %373 : vector<8x256xf32>
    %375 = arith.mulf %374, %374 : vector<8x256xf32>
    %cst_102 = arith.constant dense<0.000000e+00> : vector<8xf32>
    %376 = vector.multi_reduction <add>, %375, %cst_102 [1] : vector<8x256xf32> to vector<8xf32>
    %377 = vector.shape_cast %376 : vector<8xf32> to vector<8x1xf32>
    %cst_103 = arith.constant 2.560000e+02 : f32
    %378 = vector.broadcast %cst_103 : f32 to vector<8x1xf32>
    %379 = arith.divf %377, %378 : vector<8x1xf32>
    %cst_104 = arith.constant 9.99999974E-6 : f32
    %380 = vector.broadcast %cst_104 : f32 to vector<8x1xf32>
    %381 = arith.addf %379, %380 : vector<8x1xf32>
    %382 = math.rsqrt %381 : vector<8x1xf32>
    %383 = vector.broadcast %382 : vector<8x1xf32> to vector<8x256xf32>
    %384 = arith.mulf %374, %383 : vector<8x256xf32>
    %cst_105 = arith.constant 0.000000e+00 : f32
    %385 = vector.broadcast %cst_105 : f32 to vector<8x256xf32>
    %386 = arith.maximumf %384, %385 : vector<8x256xf32>
    %387 = arith.addf %304, %386 : vector<8x256xf32>
    %c1_106 = arith.constant 1 : index
    %c0_107 = arith.constant 0 : index
    %c0_108 = arith.constant 0 : index
    %388 = vector.load %arg6[%c1_106, %c0_107, %c0_108] : memref<2x8x256xf32, #tpu.memory_space<vmem>>, vector<1x8x256xf32>
    %389 = vector.shape_cast %388 : vector<1x8x256xf32> to vector<8x256xf32>
    %390 = vector.shape_cast %387 : vector<8x256xf32> to vector<1x8x256xf32>
    tpu.vector_store %arg6[%c1_106, %c0_107, %c0_108], %390 {strides = array<i32>} : memref<2x8x256xf32, #tpu.memory_space<vmem>>, vector<1x8x256xf32>,
    return
  }
  func.func @transform_0(%arg0: i32) -> (i32, i32, i32) {
    %c0_i32 = arith.constant 0 : i32
    %c0_i32_0 = arith.constant 0 : i32
    %c0_i32_1 = arith.constant 0 : i32
    return %arg0, %c0_i32, %c0_i32_0 : i32, i32, i32
  }
  func.func @transform_1(%arg0: i32) -> (i32, i32) {
    %c0_i32 = arith.constant 0 : i32
    %c0_i32_0 = arith.constant 0 : i32
    %c0_i32_1 = arith.constant 0 : i32
    return %c0_i32, %c0_i32_0 : i32, i32
  }
  func.func @transform_2(%arg0: i32) -> (i32, i32) {
    %c0_i32 = arith.constant 0 : i32
    %c0_i32_0 = arith.constant 0 : i32
    %c0_i32_1 = arith.constant 0 : i32
    return %c0_i32, %c0_i32_0 : i32, i32
  }
  func.func @transform_3(%arg0: i32) -> (i32, i32) {
    %c0_i32 = arith.constant 0 : i32
    %c0_i32_0 = arith.constant 0 : i32
    %c0_i32_1 = arith.constant 0 : i32
    return %c0_i32, %c0_i32_0 : i32, i32
  }
  func.func @transform_4(%arg0: i32) -> (i32, i32) {
    %c0_i32 = arith.constant 0 : i32
    %c0_i32_0 = arith.constant 0 : i32
    %c0_i32_1 = arith.constant 0 : i32
    return %c0_i32, %c0_i32_0 : i32, i32
  }
  func.func @transform_5(%arg0: i32) -> (i32, i32, i32) {
    %c0_i32 = arith.constant 0 : i32
    %c0_i32_0 = arith.constant 0 : i32
    %c0_i32_1 = arith.constant 0 : i32
    return %arg0, %c0_i32, %c0_i32_0 : i32, i32, i32
  }
}

module attributes {stable_mosaic.version = 11 : i64} {
  func.func @_gcn_kernel(%arg0: i32, %arg1: memref<2x8x256xf32, #tpu.memory_space<vmem>>, %arg2: memref<8x56xf32, #tpu.memory_space<vmem>>, %arg3: memref<8x56xf32, #tpu.memory_space<vmem>>, %arg4: memref<8x56xf32, #tpu.memory_space<vmem>>, %arg5: memref<8x56xf32, #tpu.memory_space<vmem>>, %arg6: memref<2x8x256xf32, #tpu.memory_space<vmem>>) attributes {dimension_semantics = [#tpu.dimension_semantics<parallel>], iteration_bounds = array<i64: 1>, scalar_prefetch = 0 : i64, scratch_operands = 0 : i64, tpu.core_type = #tpu.core_type<tc>, window_params = [{transform_indices = @transform_0, window_bounds = array<i64: 2, 8, 256>}, {pipeline_mode = #tpu.pipeline_mode<synchronous>, transform_indices = @transform_1, window_bounds = array<i64: 8, 56>}, {pipeline_mode = #tpu.pipeline_mode<synchronous>, transform_indices = @transform_2, window_bounds = array<i64: 8, 56>}, {pipeline_mode = #tpu.pipeline_mode<synchronous>, transform_indices = @transform_3, window_bounds = array<i64: 8, 56>}, {pipeline_mode = #tpu.pipeline_mode<synchronous>, transform_indices = @transform_4, window_bounds = array<i64: 8, 56>}, {transform_indices = @transform_5, window_bounds = array<i64: 2, 8, 256>}]} {
    %0 = tpu.iota {dimensions = array<i32: 1>} : vector<1x256xi32>
    %c16_i32 = arith.constant 16 : i32
    %c0_i32 = arith.constant 0 : i32
    %1 = arith.cmpi eq, %c16_i32, %c0_i32 : i32
    %c1_i32 = arith.constant 1 : i32
    %2 = arith.select %1, %c1_i32, %c16_i32 : i32
    %3 = vector.broadcast %2 : i32 to vector<1x256xi32>
    %4 = arith.remsi %0, %3 : vector<1x256xi32>
    %c0_i32_0 = arith.constant 0 : i32
    %5 = vector.broadcast %c0_i32_0 : i32 to vector<1x256xi32>
    %6 = arith.cmpi ne, %4, %5 : vector<1x256xi32>
    %c0_i32_1 = arith.constant 0 : i32
    %7 = vector.broadcast %c0_i32_1 : i32 to vector<1x256xi32>
    %8 = arith.cmpi slt, %4, %7 : vector<1x256xi32>
    %c0_i32_2 = arith.constant 0 : i32
    %9 = arith.cmpi slt, %2, %c0_i32_2 : i32
    %10 = vector.broadcast %9 : i1 to vector<1x256xi1>
    %11 = vector.broadcast %10 : vector<1x256xi1> to vector<1x256xi1>
    %12 = arith.xori %8, %11 : vector<1x256xi1>
    %13 = arith.andi %12, %6 : vector<1x256xi1>
    %14 = vector.broadcast %2 : i32 to vector<1x256xi32>
    %15 = arith.addi %4, %14 : vector<1x256xi32>
    %16 = arith.select %13, %15, %4 : vector<1x256xi1>, vector<1x256xi32>
    %c3_i32 = arith.constant 3 : i32
    %17 = vector.broadcast %c3_i32 : i32 to vector<1x256xi32>
    %18 = arith.cmpi sge, %16, %17 : vector<1x256xi32>
    %c19_i32 = arith.constant 19 : i32
    %19 = vector.broadcast %c19_i32 : i32 to vector<1x256xi32>
    %20 = arith.cmpi slt, %16, %19 : vector<1x256xi32>
    %21 = arith.andi %18, %20 : vector<1x256xi1>
    %c2_i32 = arith.constant 2 : i32
    %22 = vector.broadcast %c2_i32 : i32 to vector<1x256xi32>
    %23 = arith.cmpi sge, %16, %22 : vector<1x256xi32>
    %c18_i32 = arith.constant 18 : i32
    %24 = vector.broadcast %c18_i32 : i32 to vector<1x256xi32>
    %25 = arith.cmpi slt, %16, %24 : vector<1x256xi32>
    %26 = arith.andi %23, %25 : vector<1x256xi1>
    %c1_i32_3 = arith.constant 1 : i32
    %27 = vector.broadcast %c1_i32_3 : i32 to vector<1x256xi32>
    %28 = arith.cmpi sge, %16, %27 : vector<1x256xi32>
    %c17_i32 = arith.constant 17 : i32
    %29 = vector.broadcast %c17_i32 : i32 to vector<1x256xi32>
    %30 = arith.cmpi slt, %16, %29 : vector<1x256xi32>
    %31 = arith.andi %28, %30 : vector<1x256xi1>
    %c-1_i32 = arith.constant -1 : i32
    %32 = vector.broadcast %c-1_i32 : i32 to vector<1x256xi32>
    %33 = arith.cmpi sge, %16, %32 : vector<1x256xi32>
    %c15_i32 = arith.constant 15 : i32
    %34 = vector.broadcast %c15_i32 : i32 to vector<1x256xi32>
    %35 = arith.cmpi slt, %16, %34 : vector<1x256xi32>
    %36 = arith.andi %33, %35 : vector<1x256xi1>
    %c-2_i32 = arith.constant -2 : i32
    %37 = vector.broadcast %c-2_i32 : i32 to vector<1x256xi32>
    %38 = arith.cmpi sge, %16, %37 : vector<1x256xi32>
    %c14_i32 = arith.constant 14 : i32
    %39 = vector.broadcast %c14_i32 : i32 to vector<1x256xi32>
    %40 = arith.cmpi slt, %16, %39 : vector<1x256xi32>
    %41 = arith.andi %38, %40 : vector<1x256xi1>
    %c-3_i32 = arith.constant -3 : i32
    %42 = vector.broadcast %c-3_i32 : i32 to vector<1x256xi32>
    %43 = arith.cmpi sge, %16, %42 : vector<1x256xi32>
    %c13_i32 = arith.constant 13 : i32
    %44 = vector.broadcast %c13_i32 : i32 to vector<1x256xi32>
    %45 = arith.cmpi slt, %16, %44 : vector<1x256xi32>
    %46 = arith.andi %43, %45 : vector<1x256xi1>
    %c0 = arith.constant 0 : index
    %c0_4 = arith.constant 0 : index
    %47 = vector.load %arg2[%c0, %c0_4] : memref<8x56xf32, #tpu.memory_space<vmem>>, vector<8x56xf32>
    %c0_5 = arith.constant 0 : index
    %c0_6 = arith.constant 0 : index
    %48 = vector.load %arg3[%c0_5, %c0_6] : memref<8x56xf32, #tpu.memory_space<vmem>>, vector<8x56xf32>
    %c0_7 = arith.constant 0 : index
    %c0_8 = arith.constant 0 : index
    %49 = vector.load %arg4[%c0_7, %c0_8] : memref<8x56xf32, #tpu.memory_space<vmem>>, vector<8x56xf32>
    %c0_9 = arith.constant 0 : index
    %c0_10 = arith.constant 0 : index
    %50 = vector.load %arg5[%c0_9, %c0_10] : memref<8x56xf32, #tpu.memory_space<vmem>>, vector<8x56xf32>
    %c0_11 = arith.constant 0 : index
    %c0_12 = arith.constant 0 : index
    %c0_13 = arith.constant 0 : index
    %51 = vector.load %arg1[%c0_11, %c0_12, %c0_13] : memref<2x8x256xf32, #tpu.memory_space<vmem>>, vector<1x8x256xf32>
    %52 = vector.shape_cast %51 : vector<1x8x256xf32> to vector<8x256xf32>
    %cst = arith.constant 0.000000e+00 : f32
    %53 = vector.broadcast %cst : f32 to vector<8x48xf32>
    %54 = tpu.concatenate %53, %52, %53 in 1 : vector<8x48xf32>, vector<8x256xf32>, vector<8x48xf32> -> vector<8x352xf32>
    %55 = vector.extract_strided_slice %54 {offsets = [0, 0], sizes = [8, 256], strides = [1, 1]} : vector<8x352xf32> to vector<8x256xf32>
    %56 = vector.extract_strided_slice %54 {offsets = [0, 16], sizes = [8, 256], strides = [1, 1]} : vector<8x352xf32> to vector<8x256xf32>
    %57 = vector.extract_strided_slice %54 {offsets = [0, 32], sizes = [8, 256], strides = [1, 1]} : vector<8x352xf32> to vector<8x256xf32>
    %58 = vector.extract_strided_slice %54 {offsets = [0, 48], sizes = [8, 256], strides = [1, 1]} : vector<8x352xf32> to vector<8x256xf32>
    %59 = vector.extract_strided_slice %54 {offsets = [0, 64], sizes = [8, 256], strides = [1, 1]} : vector<8x352xf32> to vector<8x256xf32>
    %60 = vector.extract_strided_slice %54 {offsets = [0, 80], sizes = [8, 256], strides = [1, 1]} : vector<8x352xf32> to vector<8x256xf32>
    %61 = vector.extract_strided_slice %54 {offsets = [0, 96], sizes = [8, 256], strides = [1, 1]} : vector<8x352xf32> to vector<8x256xf32>
    %62 = tpu.concatenate %55, %56, %57, %58, %59, %60, %61 in 0 : vector<8x256xf32>, vector<8x256xf32>, vector<8x256xf32>, vector<8x256xf32>, vector<8x256xf32>, vector<8x256xf32>, vector<8x256xf32> -> vector<56x256xf32>
    %cst_14 = arith.constant dense<0.000000e+00> : vector<8x256xf32>
    %63 = tpu.matmul %47, %62, %cst_14 {dimension_numbers = #tpu.dot_dimension_numbers<[1], [0], [0], [1], [0, 0, 1, 1], [], []>} : vector<8x56xf32>, vector<56x256xf32>, vector<8x256xf32> -> vector<8x256xf32>
    %cst_15 = arith.constant dense<0.000000e+00> : vector<8xf32>
    %64 = vector.multi_reduction <add>, %63, %cst_15 [1] : vector<8x256xf32> to vector<8xf32>
    %65 = vector.shape_cast %64 : vector<8xf32> to vector<8x1xf32>
    %cst_16 = arith.constant 2.560000e+02 : f32
    %66 = vector.broadcast %cst_16 : f32 to vector<8x1xf32>
    %67 = arith.divf %65, %66 : vector<8x1xf32>
    %68 = vector.broadcast %67 : vector<8x1xf32> to vector<8x256xf32>
    %69 = arith.subf %63, %68 : vector<8x256xf32>
    %70 = arith.mulf %69, %69 : vector<8x256xf32>
    %cst_17 = arith.constant dense<0.000000e+00> : vector<8xf32>
    %71 = vector.multi_reduction <add>, %70, %cst_17 [1] : vector<8x256xf32> to vector<8xf32>
    %72 = vector.shape_cast %71 : vector<8xf32> to vector<8x1xf32>
    %cst_18 = arith.constant 2.560000e+02 : f32
    %73 = vector.broadcast %cst_18 : f32 to vector<8x1xf32>
    %74 = arith.divf %72, %73 : vector<8x1xf32>
    %cst_19 = arith.constant 9.99999974E-6 : f32
    %75 = vector.broadcast %cst_19 : f32 to vector<8x1xf32>
    %76 = arith.addf %74, %75 : vector<8x1xf32>
    %77 = math.rsqrt %76 : vector<8x1xf32>
    %78 = vector.broadcast %77 : vector<8x1xf32> to vector<8x256xf32>
    %79 = arith.mulf %69, %78 : vector<8x256xf32>
    %cst_20 = arith.constant 0.000000e+00 : f32
    %80 = vector.broadcast %cst_20 : f32 to vector<8x256xf32>
    %81 = arith.maximumf %79, %80 : vector<8x256xf32>
    %cst_21 = arith.constant 0.000000e+00 : f32
    %82 = vector.broadcast %cst_21 : f32 to vector<8x3xf32>
    %83 = tpu.concatenate %82, %81, %82 in 1 : vector<8x3xf32>, vector<8x256xf32>, vector<8x3xf32> -> vector<8x262xf32>
    %84 = vector.extract_strided_slice %83 {offsets = [0, 0], sizes = [8, 256], strides = [1, 1]} : vector<8x262xf32> to vector<8x256xf32>
    %cst_22 = arith.constant 0.000000e+00 : f32
    %85 = vector.shape_cast %21 : vector<1x256xi1> to vector<1x256xi1>
    %86 = vector.broadcast %85 : vector<1x256xi1> to vector<8x256xi1>
    %87 = vector.broadcast %cst_22 : f32 to vector<8x256xf32>
    %88 = arith.select %86, %84, %87 : vector<8x256xi1>, vector<8x256xf32>
    %89 = vector.extract_strided_slice %83 {offsets = [0, 1], sizes = [8, 256], strides = [1, 1]} : vector<8x262xf32> to vector<8x256xf32>
    %cst_23 = arith.constant 0.000000e+00 : f32
    %90 = vector.shape_cast %26 : vector<1x256xi1> to vector<1x256xi1>
    %91 = vector.broadcast %90 : vector<1x256xi1> to vector<8x256xi1>
    %92 = vector.broadcast %cst_23 : f32 to vector<8x256xf32>
    %93 = arith.select %91, %89, %92 : vector<8x256xi1>, vector<8x256xf32>
    %94 = vector.extract_strided_slice %83 {offsets = [0, 2], sizes = [8, 256], strides = [1, 1]} : vector<8x262xf32> to vector<8x256xf32>
    %cst_24 = arith.constant 0.000000e+00 : f32
    %95 = vector.shape_cast %31 : vector<1x256xi1> to vector<1x256xi1>
    %96 = vector.broadcast %95 : vector<1x256xi1> to vector<8x256xi1>
    %97 = vector.broadcast %cst_24 : f32 to vector<8x256xf32>
    %98 = arith.select %96, %94, %97 : vector<8x256xi1>, vector<8x256xf32>
    %99 = vector.extract_strided_slice %83 {offsets = [0, 3], sizes = [8, 256], strides = [1, 1]} : vector<8x262xf32> to vector<8x256xf32>
    %100 = vector.extract_strided_slice %83 {offsets = [0, 4], sizes = [8, 256], strides = [1, 1]} : vector<8x262xf32> to vector<8x256xf32>
    %cst_25 = arith.constant 0.000000e+00 : f32
    %101 = vector.shape_cast %36 : vector<1x256xi1> to vector<1x256xi1>
    %102 = vector.broadcast %101 : vector<1x256xi1> to vector<8x256xi1>
    %103 = vector.broadcast %cst_25 : f32 to vector<8x256xf32>
    %104 = arith.select %102, %100, %103 : vector<8x256xi1>, vector<8x256xf32>
    %105 = vector.extract_strided_slice %83 {offsets = [0, 5], sizes = [8, 256], strides = [1, 1]} : vector<8x262xf32> to vector<8x256xf32>
    %cst_26 = arith.constant 0.000000e+00 : f32
    %106 = vector.shape_cast %41 : vector<1x256xi1> to vector<1x256xi1>
    %107 = vector.broadcast %106 : vector<1x256xi1> to vector<8x256xi1>
    %108 = vector.broadcast %cst_26 : f32 to vector<8x256xf32>
    %109 = arith.select %107, %105, %108 : vector<8x256xi1>, vector<8x256xf32>
    %110 = vector.extract_strided_slice %83 {offsets = [0, 6], sizes = [8, 256], strides = [1, 1]} : vector<8x262xf32> to vector<8x256xf32>
    %cst_27 = arith.constant 0.000000e+00 : f32
    %111 = vector.shape_cast %46 : vector<1x256xi1> to vector<1x256xi1>
    %112 = vector.broadcast %111 : vector<1x256xi1> to vector<8x256xi1>
    %113 = vector.broadcast %cst_27 : f32 to vector<8x256xf32>
    %114 = arith.select %112, %110, %113 : vector<8x256xi1>, vector<8x256xf32>
    %115 = tpu.concatenate %88, %93, %98, %99, %104, %109, %114 in 0 : vector<8x256xf32>, vector<8x256xf32>, vector<8x256xf32>, vector<8x256xf32>, vector<8x256xf32>, vector<8x256xf32>, vector<8x256xf32> -> vector<56x256xf32>
    %cst_28 = arith.constant dense<0.000000e+00> : vector<8x256xf32>
    %116 = tpu.matmul %48, %115, %cst_28 {dimension_numbers = #tpu.dot_dimension_numbers<[1], [0], [0], [1], [0, 0, 1, 1], [], []>} : vector<8x56xf32>, vector<56x256xf32>, vector<8x256xf32> -> vector<8x256xf32>
    %cst_29 = arith.constant dense<0.000000e+00> : vector<8xf32>
    %117 = vector.multi_reduction <add>, %116, %cst_29 [1] : vector<8x256xf32> to vector<8xf32>
    %118 = vector.shape_cast %117 : vector<8xf32> to vector<8x1xf32>
    %cst_30 = arith.constant 2.560000e+02 : f32
    %119 = vector.broadcast %cst_30 : f32 to vector<8x1xf32>
    %120 = arith.divf %118, %119 : vector<8x1xf32>
    %121 = vector.broadcast %120 : vector<8x1xf32> to vector<8x256xf32>
    %122 = arith.subf %116, %121 : vector<8x256xf32>
    %123 = arith.mulf %122, %122 : vector<8x256xf32>
    %cst_31 = arith.constant dense<0.000000e+00> : vector<8xf32>
    %124 = vector.multi_reduction <add>, %123, %cst_31 [1] : vector<8x256xf32> to vector<8xf32>
    %125 = vector.shape_cast %124 : vector<8xf32> to vector<8x1xf32>
    %cst_32 = arith.constant 2.560000e+02 : f32
    %126 = vector.broadcast %cst_32 : f32 to vector<8x1xf32>
    %127 = arith.divf %125, %126 : vector<8x1xf32>
    %cst_33 = arith.constant 9.99999974E-6 : f32
    %128 = vector.broadcast %cst_33 : f32 to vector<8x1xf32>
    %129 = arith.addf %127, %128 : vector<8x1xf32>
    %130 = math.rsqrt %129 : vector<8x1xf32>
    %131 = vector.broadcast %130 : vector<8x1xf32> to vector<8x256xf32>
    %132 = arith.mulf %122, %131 : vector<8x256xf32>
    %cst_34 = arith.constant 0.000000e+00 : f32
    %133 = vector.broadcast %cst_34 : f32 to vector<8x256xf32>
    %134 = arith.maximumf %132, %133 : vector<8x256xf32>
    %cst_35 = arith.constant 0.000000e+00 : f32
    %135 = vector.broadcast %cst_35 : f32 to vector<8x3xf32>
    %136 = tpu.concatenate %135, %52, %135 in 1 : vector<8x3xf32>, vector<8x256xf32>, vector<8x3xf32> -> vector<8x262xf32>
    %137 = vector.extract_strided_slice %136 {offsets = [0, 0], sizes = [8, 256], strides = [1, 1]} : vector<8x262xf32> to vector<8x256xf32>
    %cst_36 = arith.constant 0.000000e+00 : f32
    %138 = vector.shape_cast %21 : vector<1x256xi1> to vector<1x256xi1>
    %139 = vector.broadcast %138 : vector<1x256xi1> to vector<8x256xi1>
    %140 = vector.broadcast %cst_36 : f32 to vector<8x256xf32>
    %141 = arith.select %139, %137, %140 : vector<8x256xi1>, vector<8x256xf32>
    %142 = vector.extract_strided_slice %136 {offsets = [0, 1], sizes = [8, 256], strides = [1, 1]} : vector<8x262xf32> to vector<8x256xf32>
    %cst_37 = arith.constant 0.000000e+00 : f32
    %143 = vector.shape_cast %26 : vector<1x256xi1> to vector<1x256xi1>
    %144 = vector.broadcast %143 : vector<1x256xi1> to vector<8x256xi1>
    %145 = vector.broadcast %cst_37 : f32 to vector<8x256xf32>
    %146 = arith.select %144, %142, %145 : vector<8x256xi1>, vector<8x256xf32>
    %147 = vector.extract_strided_slice %136 {offsets = [0, 2], sizes = [8, 256], strides = [1, 1]} : vector<8x262xf32> to vector<8x256xf32>
    %cst_38 = arith.constant 0.000000e+00 : f32
    %148 = vector.shape_cast %31 : vector<1x256xi1> to vector<1x256xi1>
    %149 = vector.broadcast %148 : vector<1x256xi1> to vector<8x256xi1>
    %150 = vector.broadcast %cst_38 : f32 to vector<8x256xf32>
    %151 = arith.select %149, %147, %150 : vector<8x256xi1>, vector<8x256xf32>
    %152 = vector.extract_strided_slice %136 {offsets = [0, 3], sizes = [8, 256], strides = [1, 1]} : vector<8x262xf32> to vector<8x256xf32>
    %153 = vector.extract_strided_slice %136 {offsets = [0, 4], sizes = [8, 256], strides = [1, 1]} : vector<8x262xf32> to vector<8x256xf32>
    %cst_39 = arith.constant 0.000000e+00 : f32
    %154 = vector.shape_cast %36 : vector<1x256xi1> to vector<1x256xi1>
    %155 = vector.broadcast %154 : vector<1x256xi1> to vector<8x256xi1>
    %156 = vector.broadcast %cst_39 : f32 to vector<8x256xf32>
    %157 = arith.select %155, %153, %156 : vector<8x256xi1>, vector<8x256xf32>
    %158 = vector.extract_strided_slice %136 {offsets = [0, 5], sizes = [8, 256], strides = [1, 1]} : vector<8x262xf32> to vector<8x256xf32>
    %cst_40 = arith.constant 0.000000e+00 : f32
    %159 = vector.shape_cast %41 : vector<1x256xi1> to vector<1x256xi1>
    %160 = vector.broadcast %159 : vector<1x256xi1> to vector<8x256xi1>
    %161 = vector.broadcast %cst_40 : f32 to vector<8x256xf32>
    %162 = arith.select %160, %158, %161 : vector<8x256xi1>, vector<8x256xf32>
    %163 = vector.extract_strided_slice %136 {offsets = [0, 6], sizes = [8, 256], strides = [1, 1]} : vector<8x262xf32> to vector<8x256xf32>
    %cst_41 = arith.constant 0.000000e+00 : f32
    %164 = vector.shape_cast %46 : vector<1x256xi1> to vector<1x256xi1>
    %165 = vector.broadcast %164 : vector<1x256xi1> to vector<8x256xi1>
    %166 = vector.broadcast %cst_41 : f32 to vector<8x256xf32>
    %167 = arith.select %165, %163, %166 : vector<8x256xi1>, vector<8x256xf32>
    %168 = tpu.concatenate %141, %146, %151, %152, %157, %162, %167 in 0 : vector<8x256xf32>, vector<8x256xf32>, vector<8x256xf32>, vector<8x256xf32>, vector<8x256xf32>, vector<8x256xf32>, vector<8x256xf32> -> vector<56x256xf32>
    %cst_42 = arith.constant dense<0.000000e+00> : vector<8x256xf32>
    %169 = tpu.matmul %49, %168, %cst_42 {dimension_numbers = #tpu.dot_dimension_numbers<[1], [0], [0], [1], [0, 0, 1, 1], [], []>} : vector<8x56xf32>, vector<56x256xf32>, vector<8x256xf32> -> vector<8x256xf32>
    %cst_43 = arith.constant dense<0.000000e+00> : vector<8xf32>
    %170 = vector.multi_reduction <add>, %169, %cst_43 [1] : vector<8x256xf32> to vector<8xf32>
    %171 = vector.shape_cast %170 : vector<8xf32> to vector<8x1xf32>
    %cst_44 = arith.constant 2.560000e+02 : f32
    %172 = vector.broadcast %cst_44 : f32 to vector<8x1xf32>
    %173 = arith.divf %171, %172 : vector<8x1xf32>
    %174 = vector.broadcast %173 : vector<8x1xf32> to vector<8x256xf32>
    %175 = arith.subf %169, %174 : vector<8x256xf32>
    %176 = arith.mulf %175, %175 : vector<8x256xf32>
    %cst_45 = arith.constant dense<0.000000e+00> : vector<8xf32>
    %177 = vector.multi_reduction <add>, %176, %cst_45 [1] : vector<8x256xf32> to vector<8xf32>
    %178 = vector.shape_cast %177 : vector<8xf32> to vector<8x1xf32>
    %cst_46 = arith.constant 2.560000e+02 : f32
    %179 = vector.broadcast %cst_46 : f32 to vector<8x1xf32>
    %180 = arith.divf %178, %179 : vector<8x1xf32>
    %cst_47 = arith.constant 9.99999974E-6 : f32
    %181 = vector.broadcast %cst_47 : f32 to vector<8x1xf32>
    %182 = arith.addf %180, %181 : vector<8x1xf32>
    %183 = math.rsqrt %182 : vector<8x1xf32>
    %184 = vector.broadcast %183 : vector<8x1xf32> to vector<8x256xf32>
    %185 = arith.mulf %175, %184 : vector<8x256xf32>
    %cst_48 = arith.constant 0.000000e+00 : f32
    %186 = vector.broadcast %cst_48 : f32 to vector<8x256xf32>
    %187 = arith.maximumf %185, %186 : vector<8x256xf32>
    %cst_49 = arith.constant 0.000000e+00 : f32
    %188 = vector.broadcast %cst_49 : f32 to vector<8x48xf32>
    %189 = tpu.concatenate %188, %187, %188 in 1 : vector<8x48xf32>, vector<8x256xf32>, vector<8x48xf32> -> vector<8x352xf32>
    %190 = vector.extract_strided_slice %189 {offsets = [0, 0], sizes = [8, 256], strides = [1, 1]} : vector<8x352xf32> to vector<8x256xf32>
    %191 = vector.extract_strided_slice %189 {offsets = [0, 16], sizes = [8, 256], strides = [1, 1]} : vector<8x352xf32> to vector<8x256xf32>
    %192 = vector.extract_strided_slice %189 {offsets = [0, 32], sizes = [8, 256], strides = [1, 1]} : vector<8x352xf32> to vector<8x256xf32>
    %193 = vector.extract_strided_slice %189 {offsets = [0, 48], sizes = [8, 256], strides = [1, 1]} : vector<8x352xf32> to vector<8x256xf32>
    %194 = vector.extract_strided_slice %189 {offsets = [0, 64], sizes = [8, 256], strides = [1, 1]} : vector<8x352xf32> to vector<8x256xf32>
    %195 = vector.extract_strided_slice %189 {offsets = [0, 80], sizes = [8, 256], strides = [1, 1]} : vector<8x352xf32> to vector<8x256xf32>
    %196 = vector.extract_strided_slice %189 {offsets = [0, 96], sizes = [8, 256], strides = [1, 1]} : vector<8x352xf32> to vector<8x256xf32>
    %197 = tpu.concatenate %190, %191, %192, %193, %194, %195, %196 in 0 : vector<8x256xf32>, vector<8x256xf32>, vector<8x256xf32>, vector<8x256xf32>, vector<8x256xf32>, vector<8x256xf32>, vector<8x256xf32> -> vector<56x256xf32>
    %cst_50 = arith.constant dense<0.000000e+00> : vector<8x256xf32>
    %198 = tpu.matmul %50, %197, %cst_50 {dimension_numbers = #tpu.dot_dimension_numbers<[1], [0], [0], [1], [0, 0, 1, 1], [], []>} : vector<8x56xf32>, vector<56x256xf32>, vector<8x256xf32> -> vector<8x256xf32>
    %cst_51 = arith.constant dense<0.000000e+00> : vector<8xf32>
    %199 = vector.multi_reduction <add>, %198, %cst_51 [1] : vector<8x256xf32> to vector<8xf32>
    %200 = vector.shape_cast %199 : vector<8xf32> to vector<8x1xf32>
    %cst_52 = arith.constant 2.560000e+02 : f32
    %201 = vector.broadcast %cst_52 : f32 to vector<8x1xf32>
    %202 = arith.divf %200, %201 : vector<8x1xf32>
    %203 = vector.broadcast %202 : vector<8x1xf32> to vector<8x256xf32>
    %204 = arith.subf %198, %203 : vector<8x256xf32>
    %205 = arith.mulf %204, %204 : vector<8x256xf32>
    %cst_53 = arith.constant dense<0.000000e+00> : vector<8xf32>
    %206 = vector.multi_reduction <add>, %205, %cst_53 [1] : vector<8x256xf32> to vector<8xf32>
    %207 = vector.shape_cast %206 : vector<8xf32> to vector<8x1xf32>
    %cst_54 = arith.constant 2.560000e+02 : f32
    %208 = vector.broadcast %cst_54 : f32 to vector<8x1xf32>
    %209 = arith.divf %207, %208 : vector<8x1xf32>
    %cst_55 = arith.constant 9.99999974E-6 : f32
    %210 = vector.broadcast %cst_55 : f32 to vector<8x1xf32>
    %211 = arith.addf %209, %210 : vector<8x1xf32>
    %212 = math.rsqrt %211 : vector<8x1xf32>
    %213 = vector.broadcast %212 : vector<8x1xf32> to vector<8x256xf32>
    %214 = arith.mulf %204, %213 : vector<8x256xf32>
    %cst_56 = arith.constant 0.000000e+00 : f32
    %215 = vector.broadcast %cst_56 : f32 to vector<8x256xf32>
    %216 = arith.maximumf %214, %215 : vector<8x256xf32>
    %217 = arith.addf %134, %216 : vector<8x256xf32>
    %c0_57 = arith.constant 0 : index
    %c0_58 = arith.constant 0 : index
    %c0_59 = arith.constant 0 : index
    %218 = vector.load %arg6[%c0_57, %c0_58, %c0_59] : memref<2x8x256xf32, #tpu.memory_space<vmem>>, vector<1x8x256xf32>
    %219 = vector.shape_cast %218 : vector<1x8x256xf32> to vector<8x256xf32>
    %220 = vector.shape_cast %217 : vector<8x256xf32> to vector<1x8x256xf32>
    tpu.vector_store %arg6[%c0_57, %c0_58, %c0_59], %220 {strides = array<i32>} : memref<2x8x256xf32, #tpu.memory_space<vmem>>, vector<1x8x256xf32>,
    %c1 = arith.constant 1 : index
    %c0_60 = arith.constant 0 : index
    %c0_61 = arith.constant 0 : index
    %221 = vector.load %arg1[%c1, %c0_60, %c0_61] : memref<2x8x256xf32, #tpu.memory_space<vmem>>, vector<1x8x256xf32>
    %222 = vector.shape_cast %221 : vector<1x8x256xf32> to vector<8x256xf32>
    %cst_62 = arith.constant 0.000000e+00 : f32
    %223 = vector.broadcast %cst_62 : f32 to vector<8x48xf32>
    %224 = tpu.concatenate %223, %222, %223 in 1 : vector<8x48xf32>, vector<8x256xf32>, vector<8x48xf32> -> vector<8x352xf32>
    %225 = vector.extract_strided_slice %224 {offsets = [0, 0], sizes = [8, 256], strides = [1, 1]} : vector<8x352xf32> to vector<8x256xf32>
    %226 = vector.extract_strided_slice %224 {offsets = [0, 16], sizes = [8, 256], strides = [1, 1]} : vector<8x352xf32> to vector<8x256xf32>
    %227 = vector.extract_strided_slice %224 {offsets = [0, 32], sizes = [8, 256], strides = [1, 1]} : vector<8x352xf32> to vector<8x256xf32>
    %228 = vector.extract_strided_slice %224 {offsets = [0, 48], sizes = [8, 256], strides = [1, 1]} : vector<8x352xf32> to vector<8x256xf32>
    %229 = vector.extract_strided_slice %224 {offsets = [0, 64], sizes = [8, 256], strides = [1, 1]} : vector<8x352xf32> to vector<8x256xf32>
    %230 = vector.extract_strided_slice %224 {offsets = [0, 80], sizes = [8, 256], strides = [1, 1]} : vector<8x352xf32> to vector<8x256xf32>
    %231 = vector.extract_strided_slice %224 {offsets = [0, 96], sizes = [8, 256], strides = [1, 1]} : vector<8x352xf32> to vector<8x256xf32>
    %232 = tpu.concatenate %225, %226, %227, %228, %229, %230, %231 in 0 : vector<8x256xf32>, vector<8x256xf32>, vector<8x256xf32>, vector<8x256xf32>, vector<8x256xf32>, vector<8x256xf32>, vector<8x256xf32> -> vector<56x256xf32>
    %cst_63 = arith.constant dense<0.000000e+00> : vector<8x256xf32>
    %233 = tpu.matmul %47, %232, %cst_63 {dimension_numbers = #tpu.dot_dimension_numbers<[1], [0], [0], [1], [0, 0, 1, 1], [], []>} : vector<8x56xf32>, vector<56x256xf32>, vector<8x256xf32> -> vector<8x256xf32>
    %cst_64 = arith.constant dense<0.000000e+00> : vector<8xf32>
    %234 = vector.multi_reduction <add>, %233, %cst_64 [1] : vector<8x256xf32> to vector<8xf32>
    %235 = vector.shape_cast %234 : vector<8xf32> to vector<8x1xf32>
    %cst_65 = arith.constant 2.560000e+02 : f32
    %236 = vector.broadcast %cst_65 : f32 to vector<8x1xf32>
    %237 = arith.divf %235, %236 : vector<8x1xf32>
    %238 = vector.broadcast %237 : vector<8x1xf32> to vector<8x256xf32>
    %239 = arith.subf %233, %238 : vector<8x256xf32>
    %240 = arith.mulf %239, %239 : vector<8x256xf32>
    %cst_66 = arith.constant dense<0.000000e+00> : vector<8xf32>
    %241 = vector.multi_reduction <add>, %240, %cst_66 [1] : vector<8x256xf32> to vector<8xf32>
    %242 = vector.shape_cast %241 : vector<8xf32> to vector<8x1xf32>
    %cst_67 = arith.constant 2.560000e+02 : f32
    %243 = vector.broadcast %cst_67 : f32 to vector<8x1xf32>
    %244 = arith.divf %242, %243 : vector<8x1xf32>
    %cst_68 = arith.constant 9.99999974E-6 : f32
    %245 = vector.broadcast %cst_68 : f32 to vector<8x1xf32>
    %246 = arith.addf %244, %245 : vector<8x1xf32>
    %247 = math.rsqrt %246 : vector<8x1xf32>
    %248 = vector.broadcast %247 : vector<8x1xf32> to vector<8x256xf32>
    %249 = arith.mulf %239, %248 : vector<8x256xf32>
    %cst_69 = arith.constant 0.000000e+00 : f32
    %250 = vector.broadcast %cst_69 : f32 to vector<8x256xf32>
    %251 = arith.maximumf %249, %250 : vector<8x256xf32>
    %cst_70 = arith.constant 0.000000e+00 : f32
    %252 = vector.broadcast %cst_70 : f32 to vector<8x3xf32>
    %253 = tpu.concatenate %252, %251, %252 in 1 : vector<8x3xf32>, vector<8x256xf32>, vector<8x3xf32> -> vector<8x262xf32>
    %254 = vector.extract_strided_slice %253 {offsets = [0, 0], sizes = [8, 256], strides = [1, 1]} : vector<8x262xf32> to vector<8x256xf32>
    %cst_71 = arith.constant 0.000000e+00 : f32
    %255 = vector.shape_cast %21 : vector<1x256xi1> to vector<1x256xi1>
    %256 = vector.broadcast %255 : vector<1x256xi1> to vector<8x256xi1>
    %257 = vector.broadcast %cst_71 : f32 to vector<8x256xf32>
    %258 = arith.select %256, %254, %257 : vector<8x256xi1>, vector<8x256xf32>
    %259 = vector.extract_strided_slice %253 {offsets = [0, 1], sizes = [8, 256], strides = [1, 1]} : vector<8x262xf32> to vector<8x256xf32>
    %cst_72 = arith.constant 0.000000e+00 : f32
    %260 = vector.shape_cast %26 : vector<1x256xi1> to vector<1x256xi1>
    %261 = vector.broadcast %260 : vector<1x256xi1> to vector<8x256xi1>
    %262 = vector.broadcast %cst_72 : f32 to vector<8x256xf32>
    %263 = arith.select %261, %259, %262 : vector<8x256xi1>, vector<8x256xf32>
    %264 = vector.extract_strided_slice %253 {offsets = [0, 2], sizes = [8, 256], strides = [1, 1]} : vector<8x262xf32> to vector<8x256xf32>
    %cst_73 = arith.constant 0.000000e+00 : f32
    %265 = vector.shape_cast %31 : vector<1x256xi1> to vector<1x256xi1>
    %266 = vector.broadcast %265 : vector<1x256xi1> to vector<8x256xi1>
    %267 = vector.broadcast %cst_73 : f32 to vector<8x256xf32>
    %268 = arith.select %266, %264, %267 : vector<8x256xi1>, vector<8x256xf32>
    %269 = vector.extract_strided_slice %253 {offsets = [0, 3], sizes = [8, 256], strides = [1, 1]} : vector<8x262xf32> to vector<8x256xf32>
    %270 = vector.extract_strided_slice %253 {offsets = [0, 4], sizes = [8, 256], strides = [1, 1]} : vector<8x262xf32> to vector<8x256xf32>
    %cst_74 = arith.constant 0.000000e+00 : f32
    %271 = vector.shape_cast %36 : vector<1x256xi1> to vector<1x256xi1>
    %272 = vector.broadcast %271 : vector<1x256xi1> to vector<8x256xi1>
    %273 = vector.broadcast %cst_74 : f32 to vector<8x256xf32>
    %274 = arith.select %272, %270, %273 : vector<8x256xi1>, vector<8x256xf32>
    %275 = vector.extract_strided_slice %253 {offsets = [0, 5], sizes = [8, 256], strides = [1, 1]} : vector<8x262xf32> to vector<8x256xf32>
    %cst_75 = arith.constant 0.000000e+00 : f32
    %276 = vector.shape_cast %41 : vector<1x256xi1> to vector<1x256xi1>
    %277 = vector.broadcast %276 : vector<1x256xi1> to vector<8x256xi1>
    %278 = vector.broadcast %cst_75 : f32 to vector<8x256xf32>
    %279 = arith.select %277, %275, %278 : vector<8x256xi1>, vector<8x256xf32>
    %280 = vector.extract_strided_slice %253 {offsets = [0, 6], sizes = [8, 256], strides = [1, 1]} : vector<8x262xf32> to vector<8x256xf32>
    %cst_76 = arith.constant 0.000000e+00 : f32
    %281 = vector.shape_cast %46 : vector<1x256xi1> to vector<1x256xi1>
    %282 = vector.broadcast %281 : vector<1x256xi1> to vector<8x256xi1>
    %283 = vector.broadcast %cst_76 : f32 to vector<8x256xf32>
    %284 = arith.select %282, %280, %283 : vector<8x256xi1>, vector<8x256xf32>
    %285 = tpu.concatenate %258, %263, %268, %269, %274, %279, %284 in 0 : vector<8x256xf32>, vector<8x256xf32>, vector<8x256xf32>, vector<8x256xf32>, vector<8x256xf32>, vector<8x256xf32>, vector<8x256xf32> -> vector<56x256xf32>
    %cst_77 = arith.constant dense<0.000000e+00> : vector<8x256xf32>
    %286 = tpu.matmul %48, %285, %cst_77 {dimension_numbers = #tpu.dot_dimension_numbers<[1], [0], [0], [1], [0, 0, 1, 1], [], []>} : vector<8x56xf32>, vector<56x256xf32>, vector<8x256xf32> -> vector<8x256xf32>
    %cst_78 = arith.constant dense<0.000000e+00> : vector<8xf32>
    %287 = vector.multi_reduction <add>, %286, %cst_78 [1] : vector<8x256xf32> to vector<8xf32>
    %288 = vector.shape_cast %287 : vector<8xf32> to vector<8x1xf32>
    %cst_79 = arith.constant 2.560000e+02 : f32
    %289 = vector.broadcast %cst_79 : f32 to vector<8x1xf32>
    %290 = arith.divf %288, %289 : vector<8x1xf32>
    %291 = vector.broadcast %290 : vector<8x1xf32> to vector<8x256xf32>
    %292 = arith.subf %286, %291 : vector<8x256xf32>
    %293 = arith.mulf %292, %292 : vector<8x256xf32>
    %cst_80 = arith.constant dense<0.000000e+00> : vector<8xf32>
    %294 = vector.multi_reduction <add>, %293, %cst_80 [1] : vector<8x256xf32> to vector<8xf32>
    %295 = vector.shape_cast %294 : vector<8xf32> to vector<8x1xf32>
    %cst_81 = arith.constant 2.560000e+02 : f32
    %296 = vector.broadcast %cst_81 : f32 to vector<8x1xf32>
    %297 = arith.divf %295, %296 : vector<8x1xf32>
    %cst_82 = arith.constant 9.99999974E-6 : f32
    %298 = vector.broadcast %cst_82 : f32 to vector<8x1xf32>
    %299 = arith.addf %297, %298 : vector<8x1xf32>
    %300 = math.rsqrt %299 : vector<8x1xf32>
    %301 = vector.broadcast %300 : vector<8x1xf32> to vector<8x256xf32>
    %302 = arith.mulf %292, %301 : vector<8x256xf32>
    %cst_83 = arith.constant 0.000000e+00 : f32
    %303 = vector.broadcast %cst_83 : f32 to vector<8x256xf32>
    %304 = arith.maximumf %302, %303 : vector<8x256xf32>
    %cst_84 = arith.constant 0.000000e+00 : f32
    %305 = vector.broadcast %cst_84 : f32 to vector<8x3xf32>
    %306 = tpu.concatenate %305, %222, %305 in 1 : vector<8x3xf32>, vector<8x256xf32>, vector<8x3xf32> -> vector<8x262xf32>
    %307 = vector.extract_strided_slice %306 {offsets = [0, 0], sizes = [8, 256], strides = [1, 1]} : vector<8x262xf32> to vector<8x256xf32>
    %cst_85 = arith.constant 0.000000e+00 : f32
    %308 = vector.shape_cast %21 : vector<1x256xi1> to vector<1x256xi1>
    %309 = vector.broadcast %308 : vector<1x256xi1> to vector<8x256xi1>
    %310 = vector.broadcast %cst_85 : f32 to vector<8x256xf32>
    %311 = arith.select %309, %307, %310 : vector<8x256xi1>, vector<8x256xf32>
    %312 = vector.extract_strided_slice %306 {offsets = [0, 1], sizes = [8, 256], strides = [1, 1]} : vector<8x262xf32> to vector<8x256xf32>
    %cst_86 = arith.constant 0.000000e+00 : f32
    %313 = vector.shape_cast %26 : vector<1x256xi1> to vector<1x256xi1>
    %314 = vector.broadcast %313 : vector<1x256xi1> to vector<8x256xi1>
    %315 = vector.broadcast %cst_86 : f32 to vector<8x256xf32>
    %316 = arith.select %314, %312, %315 : vector<8x256xi1>, vector<8x256xf32>
    %317 = vector.extract_strided_slice %306 {offsets = [0, 2], sizes = [8, 256], strides = [1, 1]} : vector<8x262xf32> to vector<8x256xf32>
    %cst_87 = arith.constant 0.000000e+00 : f32
    %318 = vector.shape_cast %31 : vector<1x256xi1> to vector<1x256xi1>
    %319 = vector.broadcast %318 : vector<1x256xi1> to vector<8x256xi1>
    %320 = vector.broadcast %cst_87 : f32 to vector<8x256xf32>
    %321 = arith.select %319, %317, %320 : vector<8x256xi1>, vector<8x256xf32>
    %322 = vector.extract_strided_slice %306 {offsets = [0, 3], sizes = [8, 256], strides = [1, 1]} : vector<8x262xf32> to vector<8x256xf32>
    %323 = vector.extract_strided_slice %306 {offsets = [0, 4], sizes = [8, 256], strides = [1, 1]} : vector<8x262xf32> to vector<8x256xf32>
    %cst_88 = arith.constant 0.000000e+00 : f32
    %324 = vector.shape_cast %36 : vector<1x256xi1> to vector<1x256xi1>
    %325 = vector.broadcast %324 : vector<1x256xi1> to vector<8x256xi1>
    %326 = vector.broadcast %cst_88 : f32 to vector<8x256xf32>
    %327 = arith.select %325, %323, %326 : vector<8x256xi1>, vector<8x256xf32>
    %328 = vector.extract_strided_slice %306 {offsets = [0, 5], sizes = [8, 256], strides = [1, 1]} : vector<8x262xf32> to vector<8x256xf32>
    %cst_89 = arith.constant 0.000000e+00 : f32
    %329 = vector.shape_cast %41 : vector<1x256xi1> to vector<1x256xi1>
    %330 = vector.broadcast %329 : vector<1x256xi1> to vector<8x256xi1>
    %331 = vector.broadcast %cst_89 : f32 to vector<8x256xf32>
    %332 = arith.select %330, %328, %331 : vector<8x256xi1>, vector<8x256xf32>
    %333 = vector.extract_strided_slice %306 {offsets = [0, 6], sizes = [8, 256], strides = [1, 1]} : vector<8x262xf32> to vector<8x256xf32>
    %cst_90 = arith.constant 0.000000e+00 : f32
    %334 = vector.shape_cast %46 : vector<1x256xi1> to vector<1x256xi1>
    %335 = vector.broadcast %334 : vector<1x256xi1> to vector<8x256xi1>
    %336 = vector.broadcast %cst_90 : f32 to vector<8x256xf32>
    %337 = arith.select %335, %333, %336 : vector<8x256xi1>, vector<8x256xf32>
    %338 = tpu.concatenate %311, %316, %321, %322, %327, %332, %337 in 0 : vector<8x256xf32>, vector<8x256xf32>, vector<8x256xf32>, vector<8x256xf32>, vector<8x256xf32>, vector<8x256xf32>, vector<8x256xf32> -> vector<56x256xf32>
    %cst_91 = arith.constant dense<0.000000e+00> : vector<8x256xf32>
    %339 = tpu.matmul %49, %338, %cst_91 {dimension_numbers = #tpu.dot_dimension_numbers<[1], [0], [0], [1], [0, 0, 1, 1], [], []>} : vector<8x56xf32>, vector<56x256xf32>, vector<8x256xf32> -> vector<8x256xf32>
    %cst_92 = arith.constant dense<0.000000e+00> : vector<8xf32>
    %340 = vector.multi_reduction <add>, %339, %cst_92 [1] : vector<8x256xf32> to vector<8xf32>
    %341 = vector.shape_cast %340 : vector<8xf32> to vector<8x1xf32>
    %cst_93 = arith.constant 2.560000e+02 : f32
    %342 = vector.broadcast %cst_93 : f32 to vector<8x1xf32>
    %343 = arith.divf %341, %342 : vector<8x1xf32>
    %344 = vector.broadcast %343 : vector<8x1xf32> to vector<8x256xf32>
    %345 = arith.subf %339, %344 : vector<8x256xf32>
    %346 = arith.mulf %345, %345 : vector<8x256xf32>
    %cst_94 = arith.constant dense<0.000000e+00> : vector<8xf32>
    %347 = vector.multi_reduction <add>, %346, %cst_94 [1] : vector<8x256xf32> to vector<8xf32>
    %348 = vector.shape_cast %347 : vector<8xf32> to vector<8x1xf32>
    %cst_95 = arith.constant 2.560000e+02 : f32
    %349 = vector.broadcast %cst_95 : f32 to vector<8x1xf32>
    %350 = arith.divf %348, %349 : vector<8x1xf32>
    %cst_96 = arith.constant 9.99999974E-6 : f32
    %351 = vector.broadcast %cst_96 : f32 to vector<8x1xf32>
    %352 = arith.addf %350, %351 : vector<8x1xf32>
    %353 = math.rsqrt %352 : vector<8x1xf32>
    %354 = vector.broadcast %353 : vector<8x1xf32> to vector<8x256xf32>
    %355 = arith.mulf %345, %354 : vector<8x256xf32>
    %cst_97 = arith.constant 0.000000e+00 : f32
    %356 = vector.broadcast %cst_97 : f32 to vector<8x256xf32>
    %357 = arith.maximumf %355, %356 : vector<8x256xf32>
    %cst_98 = arith.constant 0.000000e+00 : f32
    %358 = vector.broadcast %cst_98 : f32 to vector<8x48xf32>
    %359 = tpu.concatenate %358, %357, %358 in 1 : vector<8x48xf32>, vector<8x256xf32>, vector<8x48xf32> -> vector<8x352xf32>
    %360 = vector.extract_strided_slice %359 {offsets = [0, 0], sizes = [8, 256], strides = [1, 1]} : vector<8x352xf32> to vector<8x256xf32>
    %361 = vector.extract_strided_slice %359 {offsets = [0, 16], sizes = [8, 256], strides = [1, 1]} : vector<8x352xf32> to vector<8x256xf32>
    %362 = vector.extract_strided_slice %359 {offsets = [0, 32], sizes = [8, 256], strides = [1, 1]} : vector<8x352xf32> to vector<8x256xf32>
    %363 = vector.extract_strided_slice %359 {offsets = [0, 48], sizes = [8, 256], strides = [1, 1]} : vector<8x352xf32> to vector<8x256xf32>
    %364 = vector.extract_strided_slice %359 {offsets = [0, 64], sizes = [8, 256], strides = [1, 1]} : vector<8x352xf32> to vector<8x256xf32>
    %365 = vector.extract_strided_slice %359 {offsets = [0, 80], sizes = [8, 256], strides = [1, 1]} : vector<8x352xf32> to vector<8x256xf32>
    %366 = vector.extract_strided_slice %359 {offsets = [0, 96], sizes = [8, 256], strides = [1, 1]} : vector<8x352xf32> to vector<8x256xf32>
    %367 = tpu.concatenate %360, %361, %362, %363, %364, %365, %366 in 0 : vector<8x256xf32>, vector<8x256xf32>, vector<8x256xf32>, vector<8x256xf32>, vector<8x256xf32>, vector<8x256xf32>, vector<8x256xf32> -> vector<56x256xf32>
    %cst_99 = arith.constant dense<0.000000e+00> : vector<8x256xf32>
    %368 = tpu.matmul %50, %367, %cst_99 {dimension_numbers = #tpu.dot_dimension_numbers<[1], [0], [0], [1], [0, 0, 1, 1], [], []>} : vector<8x56xf32>, vector<56x256xf32>, vector<8x256xf32> -> vector<8x256xf32>
    %cst_100 = arith.constant dense<0.000000e+00> : vector<8xf32>
    %369 = vector.multi_reduction <add>, %368, %cst_100 [1] : vector<8x256xf32> to vector<8xf32>
    %370 = vector.shape_cast %369 : vector<8xf32> to vector<8x1xf32>
    %cst_101 = arith.constant 2.560000e+02 : f32
    %371 = vector.broadcast %cst_101 : f32 to vector<8x1xf32>
    %372 = arith.divf %370, %371 : vector<8x1xf32>
    %373 = vector.broadcast %372 : vector<8x1xf32> to vector<8x256xf32>
    %374 = arith.subf %368, %373 : vector<8x256xf32>
    %375 = arith.mulf %374, %374 : vector<8x256xf32>
    %cst_102 = arith.constant dense<0.000000e+00> : vector<8xf32>
    %376 = vector.multi_reduction <add>, %375, %cst_102 [1] : vector<8x256xf32> to vector<8xf32>
    %377 = vector.shape_cast %376 : vector<8xf32> to vector<8x1xf32>
    %cst_103 = arith.constant 2.560000e+02 : f32
    %378 = vector.broadcast %cst_103 : f32 to vector<8x1xf32>
    %379 = arith.divf %377, %378 : vector<8x1xf32>
    %cst_104 = arith.constant 9.99999974E-6 : f32
    %380 = vector.broadcast %cst_104 : f32 to vector<8x1xf32>
    %381 = arith.addf %379, %380 : vector<8x1xf32>
    %382 = math.rsqrt %381 : vector<8x1xf32>
    %383 = vector.broadcast %382 : vector<8x1xf32> to vector<8x256xf32>
    %384 = arith.mulf %374, %383 : vector<8x256xf32>
    %cst_105 = arith.constant 0.000000e+00 : f32
    %385 = vector.broadcast %cst_105 : f32 to vector<8x256xf32>
    %386 = arith.maximumf %384, %385 : vector<8x256xf32>
    %387 = arith.addf %304, %386 : vector<8x256xf32>
    %c1_106 = arith.constant 1 : index
    %c0_107 = arith.constant 0 : index
    %c0_108 = arith.constant 0 : index
    %388 = vector.load %arg6[%c1_106, %c0_107, %c0_108] : memref<2x8x256xf32, #tpu.memory_space<vmem>>, vector<1x8x256xf32>
    %389 = vector.shape_cast %388 : vector<1x8x256xf32> to vector<8x256xf32>
    %390 = vector.shape_cast %387 : vector<8x256xf32> to vector<1x8x256xf32>
    tpu.vector_store %arg6[%c1_106, %c0_107, %c0_108], %390 {strides = array<i32>} : memref<2x8x256xf32, #tpu.memory_space<vmem>>, vector<1x8x256xf32>,
    return
  }
  func.func @transform_0(%arg0: i32) -> (i32, i32, i32) {
    %c0_i32 = arith.constant 0 : i32
    %c0_i32_0 = arith.constant 0 : i32
    %c0_i32_1 = arith.constant 0 : i32
    return %arg0, %c0_i32, %c0_i32_0 : i32, i32, i32
  }
  func.func @transform_1(%arg0: i32) -> (i32, i32) {
    %c0_i32 = arith.constant 0 : i32
    %c0_i32_0 = arith.constant 0 : i32
    %c0_i32_1 = arith.constant 0 : i32
    return %c0_i32, %c0_i32_0 : i32, i32
  }
  func.func @transform_2(%arg0: i32) -> (i32, i32) {
    %c0_i32 = arith.constant 0 : i32
    %c0_i32_0 = arith.constant 0 : i32
    %c0_i32_1 = arith.constant 0 : i32
    return %c0_i32, %c0_i32_0 : i32, i32
  }
  func.func @transform_3(%arg0: i32) -> (i32, i32) {
    %c0_i32 = arith.constant 0 : i32
    %c0_i32_0 = arith.constant 0 : i32
    %c0_i32_1 = arith.constant 0 : i32
    return %c0_i32, %c0_i32_0 : i32, i32
  }
  func.func @transform_4(%arg0: i32) -> (i32, i32) {
    %c0_i32 = arith.constant 0 : i32
    %c0_i32_0 = arith.constant 0 : i32
    %c0_i32_1 = arith.constant 0 : i32
    return %c0_i32, %c0_i32_0 : i32, i32
  }
  func.func @transform_5(%arg0: i32) -> (i32, i32, i32) {
    %c0_i32 = arith.constant 0 : i32
    %c0_i32_0 = arith.constant 0 : i32
    %c0_i32_1 = arith.constant 0 : i32
    return %arg0, %c0_i32, %c0_i32_0 : i32, i32, i32
  }
}

</mosaic_0001>

<llo_original>
// kernel: tpu_custom_call.1
$region0: #{tpu_custom_call.1}
  #allocation0 [shape = 'u32[]', space=smem, size = 0x4, offset = 0x4, fixed_abs, tag = 'smem constant byte address 0x4 - core index']
  #allocation1 [shape = 'u32[72,128]{1,0:T(1,128)}', space=vmem, size = 0x9000, scoped, tag = 'internal scratch']
  %s0 = inlined_call_operand.hbm [shape: f32[2,8,256], index: 0, kind: input, shape index: {}]
  %s1 = inlined_call_operand.hbm [shape: f32[8,56], index: 1, kind: input, shape index: {}]
  %s2 = inlined_call_operand.hbm [shape: f32[8,56], index: 2, kind: input, shape index: {}]
  %s3 = inlined_call_operand.hbm [shape: f32[8,56], index: 3, kind: input, shape index: {}]
  %s4 = inlined_call_operand.hbm [shape: f32[8,56], index: 4, kind: input, shape index: {}]
  %s5 = inlined_call_operand.hbm [shape: f32[2,8,256], index: 5, kind: output, shape index: {}]
  %s6 = sld [smem:[#allocation0]]
  $region50: #{tpu_custom_call.1} parent=0
    _
  %s8 = ssub.s32 1, %s6
  %s9 = scalar_select 0, %s8, %s6
  $region1: #{tpu_custom_call.1} parent=0
    #allocation2 [shape = 'u8[16384]{0}', space=vmem, size = 0x4000, scoped, tag = 'input window, operand 0, single buffered']
    #allocation3 [shape = 's32[1]{0}', space=sflag, size = 0x4, scoped, tag = 'scoped memory for tpu_custom_call.1']
    #allocation4 [shape = 's32[1]{0}', space=sflag, size = 0x4, scoped, tag = 'scoped memory for tpu_custom_call.1']
    #allocation5 [shape = 'u8[4096]{0}', space=vmem, size = 0x1000, scoped, tag = 'input window, operand 1, single buffered']
    #allocation6 [shape = 's32[1]{0}', space=sflag, size = 0x4, scoped, tag = 'scoped memory for tpu_custom_call.1']
    #allocation7 [shape = 'u8[4096]{0}', space=vmem, size = 0x1000, scoped, tag = 'input window, operand 2, single buffered']
    #allocation8 [shape = 'u8[4096]{0}', space=vmem, size = 0x1000, scoped, tag = 'input window, operand 3, single buffered']
    #allocation9 [shape = 's32[1]{0}', space=sflag, size = 0x4, scoped, tag = 'scoped memory for tpu_custom_call.1']
    #allocation10 [shape = 'u8[4096]{0}', space=vmem, size = 0x1000, scoped, tag = 'input window, operand 4, single buffered']
    #allocation11 [shape = 'u8[16384]{0}', space=vmem, size = 0x4000, scoped, tag = 'output window, operand 0, single buffered']
    %10 = vsyncpa [#allocation3], 0
    %11 = vsyncpa [#allocation6], 0
    %12 = vsyncpa [#allocation9], 0
    %13 = vsyncpa [#allocation4], 0
    // Predicated region
    $region2: #{tpu_custom_call.1} parent=1 // pred_check
      _
    $region3: #{tpu_custom_call.1} parent=1 // pred_check_branch
      %15 = sbr.rel (0) target = $region5
    $region4: #{tpu_custom_call.1} parent=1 // pred_region
      %17 = vsyncadd [#allocation3], 0
      %s18 = sshll.u32 %s0, 4
      %s19 = int_to_ptr.hbm [resolvable:$true] %s18
      %s20 = sshll.u32 [#allocation2], 4
      %s21 = int_to_ptr.vmem [resolvable:$true] %s20
      %26 = dma.hbm_to_vmem [thread:$0]  %s19, 512, %s21, [#allocation3], 256, 256, 16
    $region5: #{tpu_custom_call.1} parent=1 // pred_fallthru
      _
    // Predicated region
    $region6: #{tpu_custom_call.1} parent=1 // pred_check
      _
    $region7: #{tpu_custom_call.1} parent=1 // pred_check_branch
      %28 = sbr.rel (0) target = $region9
    $region8: #{tpu_custom_call.1} parent=1 // pred_region
      %30 = vsyncadd [#allocation6], 0
      %s32 = sshll.u32 %s1, 4
      %s33 = int_to_ptr.hbm [resolvable:$true] %s32
      %s34 = sshll.u32 [#allocation5], 4
      %s35 = int_to_ptr.vmem [resolvable:$true] %s34
      %37 = dma.hbm_to_vmem [thread:$0]  %s33, 128, %s35, [#allocation6]
    $region9: #{tpu_custom_call.1} parent=1 // pred_fallthru
      _
    // Predicated region
    $region10: #{tpu_custom_call.1} parent=1 // pred_check
      _
    $region11: #{tpu_custom_call.1} parent=1 // pred_check_branch
      %39 = sbr.rel (0) target = $region13
    $region12: #{tpu_custom_call.1} parent=1 // pred_region
      %41 = vsyncadd [#allocation6], 0
      %s43 = sshll.u32 %s2, 4
      %s44 = int_to_ptr.hbm [resolvable:$true] %s43
      %s45 = sshll.u32 [#allocation7], 4
      %s46 = int_to_ptr.vmem [resolvable:$true] %s45
      %48 = dma.hbm_to_vmem [thread:$0]  %s44, 128, %s46, [#allocation6]
    $region13: #{tpu_custom_call.1} parent=1 // pred_fallthru
      _
    // Predicated region
    $region14: #{tpu_custom_call.1} parent=1 // pred_check
      _
    $region15: #{tpu_custom_call.1} parent=1 // pred_check_branch
      %50 = sbr.rel (0) target = $region17
    $region16: #{tpu_custom_call.1} parent=1 // pred_region
      %52 = vsyncadd [#allocation9], 0
      %s54 = sshll.u32 %s3, 4
      %s55 = int_to_ptr.hbm [resolvable:$true] %s54
      %s56 = sshll.u32 [#allocation8], 4
      %s57 = int_to_ptr.vmem [resolvable:$true] %s56
      %59 = dma.hbm_to_vmem [thread:$0]  %s55, 128, %s57, [#allocation9]
    $region17: #{tpu_custom_call.1} parent=1 // pred_fallthru
      _
    // Predicated region
    $region18: #{tpu_custom_call.1} parent=1 // pred_check
      _
    $region19: #{tpu_custom_call.1} parent=1 // pred_check_branch
      %61 = sbr.rel (0) target = $region21
    $region20: #{tpu_custom_call.1} parent=1 // pred_region
      %63 = vsyncadd [#allocation9], 0
      %s65 = sshll.u32 %s4, 4
      %s66 = int_to_ptr.hbm [resolvable:$true] %s65
      %s67 = sshll.u32 [#allocation10], 4
      %s68 = int_to_ptr.vmem [resolvable:$true] %s67
      %70 = dma.hbm_to_vmem [thread:$0]  %s66, 128, %s68, [#allocation9]
    $region21: #{tpu_custom_call.1} parent=1 // pred_fallthru
      _
    // Predicated region
    $region22: #{tpu_custom_call.1} parent=1 // pred_check
      _
    $region23: #{tpu_custom_call.1} parent=1 // pred_check_branch
      %72 = sbr.rel (0) target = $region25
    $region24: #{tpu_custom_call.1} parent=1 // pred_region
      %74 = dma.done [#allocation3], 512
    $region25: #{tpu_custom_call.1} parent=1 // pred_fallthru
      _
    // Predicated region
    $region26: #{tpu_custom_call.1} parent=1 // pred_check
      _
    $region27: #{tpu_custom_call.1} parent=1 // pred_check_branch
      %76 = sbr.rel (0) target = $region29
    $region28: #{tpu_custom_call.1} parent=1 // pred_region
      %78 = dma.done [#allocation6], 128
    $region29: #{tpu_custom_call.1} parent=1 // pred_fallthru
      _
    // Predicated region
    $region30: #{tpu_custom_call.1} parent=1 // pred_check
      _
    $region31: #{tpu_custom_call.1} parent=1 // pred_check_branch
      %80 = sbr.rel (0) target = $region33
    $region32: #{tpu_custom_call.1} parent=1 // pred_region
      %82 = dma.done [#allocation6], 128
    $region33: #{tpu_custom_call.1} parent=1 // pred_fallthru
      _
    // Predicated region
    $region34: #{tpu_custom_call.1} parent=1 // pred_check
      _
    $region35: #{tpu_custom_call.1} parent=1 // pred_check_branch
      %84 = sbr.rel (0) target = $region37
    $region36: #{tpu_custom_call.1} parent=1 // pred_region
      %86 = dma.done [#allocation9], 128
    $region37: #{tpu_custom_call.1} parent=1 // pred_fallthru
      _
    // Predicated region
    $region38: #{tpu_custom_call.1} parent=1 // pred_check
      _
    $region39: #{tpu_custom_call.1} parent=1 // pred_check_branch
      %88 = sbr.rel (0) target = $region41
    $region40: #{tpu_custom_call.1} parent=1 // pred_region
      %90 = dma.done [#allocation9], 128
    $region41: #{tpu_custom_call.1} parent=1 // pred_fallthru
      _
    %v91 = vlaneseq
    %v92 = vand.u32 %v91, 127
    %v93 = vadd.s32 %v92, 128
    %vm94 = vcmp.lt.s32.totalorder %v92, 0
    %v95 = vsub.s32 0, %v92
    %v96 = vsel %vm94, %v95, %v92
    %v97 = vshrl.u32 %v96, 4
    %v98 = vand.u32 %v96, 15
    %v99 = vsub.s32 0, %v98
    %v100 = vsel %vm94, %v99, %v98
    %vm101 = vcmp.lt.s32.totalorder %v93, 0
    %v102 = vsub.s32 0, %v93
    %v103 = vsel %vm101, %v102, %v93
    %v104 = vshrl.u32 %v103, 4
    %v105 = vand.u32 %v103, 15
    %v106 = vsub.s32 0, %v105
    %v107 = vsel %vm101, %v106, %v105
    %vm108 = vcmp.ne.s32.totalorder %v100, 0
    %vm109 = vcmp.ne.s32.totalorder %v107, 0
    %vm110 = vcmp.lt.s32.totalorder %v100, 0
    %vm111 = vcmp.lt.s32.totalorder %v107, 0
    %vm112 = vmand %vm110, %vm108
    %vm113 = vmand %vm111, %vm109
    %v114 = vadd.s32 %v100, 16
    %v115 = vadd.s32 %v107, 16
    %v116 = vsel %vm112, %v114, %v100
    %v117 = vsel %vm113, %v115, %v107
    %vm118 = vcmp.ge.s32.totalorder %v116, 3
    %vm119 = vcmp.ge.s32.totalorder %v117, 3
    %vm120 = vcmp.lt.s32.totalorder %v116, 19
    %vm121 = vcmp.lt.s32.totalorder %v117, 19
    %vm122 = vmand %vm118, %vm120
    %vm123 = vmand %vm119, %vm121
    %vm124 = vcmp.ge.s32.totalorder %v116, 2
    %vm125 = vcmp.ge.s32.totalorder %v117, 2
    %vm126 = vcmp.lt.s32.totalorder %v116, 18
    %vm127 = vcmp.lt.s32.totalorder %v117, 18
    %vm128 = vmand %vm124, %vm126
    %vm129 = vmand %vm125, %vm127
    %vm130 = vcmp.ge.s32.totalorder %v116, 1
    %vm131 = vcmp.ge.s32.totalorder %v117, 1
    %vm132 = vcmp.lt.s32.totalorder %v116, 17
    %vm133 = vcmp.lt.s32.totalorder %v117, 17
    %vm134 = vmand %vm130, %vm132
    %vm135 = vmand %vm131, %vm133
    %vm136 = vcmp.ge.s32.totalorder %v116, 4294967295
    %vm137 = vcmp.ge.s32.totalorder %v117, 4294967295
    %vm138 = vcmp.lt.s32.totalorder %v116, 15
    %vm139 = vcmp.lt.s32.totalorder %v117, 15
    %vm140 = vmand %vm136, %vm138
    %vm141 = vmand %vm137, %vm139
    %vm142 = vcmp.ge.s32.totalorder %v116, 4294967294
    %vm143 = vcmp.ge.s32.totalorder %v117, 4294967294
    %vm144 = vcmp.lt.s32.totalorder %v116, 14
    %vm145 = vcmp.lt.s32.totalorder %v117, 14
    %vm146 = vmand %vm142, %vm144
    %vm147 = vmand %vm143, %vm145
    %vm148 = vcmp.ge.s32.totalorder %v116, 4294967293
    %vm149 = vcmp.ge.s32.totalorder %v117, 4294967293
    %vm150 = vcmp.lt.s32.totalorder %v116, 13
    %vm151 = vcmp.lt.s32.totalorder %v117, 13
    %vm152 = vmand %vm148, %vm150
    %vm153 = vmand %vm149, %vm151
    %v154 = vld [vmem:[#allocation5] sm:$0xff]
    %v155 = vld [vmem:[#allocation7] sm:$0xff]
    %v156 = vld [vmem:[#allocation8] sm:$0xff]
    %v157 = vld [vmem:[#allocation10] sm:$0xff]
    %v158 = vld [vmem:[#allocation2] sm:$0xff]
    %v159 = vld [vmem:[#allocation2 + $0x8] sm:$0xff]
    %162 = vrot.lane.b32.xlu0 %v158, 48
    %v163 = vpop.permute.xlu0 %162
    %164 = vrot.lane.b32.xlu0 %v159, 48
    %v165 = vpop.permute.xlu0 %164
    %vm166 = vcmask 392192
    %v167 = vsel %vm166, %v163, %v165
    %v171 = vsel %vm166, 0.0, %v163
    %v172 = vsel %vm166, %v165, 0.0
    %175 = vrot.lane.b32.xlu0 %v171, 112
    %v176 = vpop.permute.xlu0 %175
    %177 = vrot.lane.b32.xlu0 %v167, 112
    %v178 = vpop.permute.xlu0 %177
    %179 = vrot.lane.b32.xlu0 %v172, 112
    %v180 = vpop.permute.xlu0 %179
    %vm181 = vcmask 916480
    %v182 = vsel %vm181, %v176, %v178
    %v183 = vsel %vm181, %v178, %v180
    %186 = vrot.lane.b32.xlu0 %v171, 96
    %v187 = vpop.permute.xlu0 %186
    %188 = vrot.lane.b32.xlu0 %v167, 96
    %v189 = vpop.permute.xlu0 %188
    %190 = vrot.lane.b32.xlu0 %v172, 96
    %v191 = vpop.permute.xlu0 %190
    %vm192 = vcmask 785408
    %v193 = vsel %vm192, %v187, %v189
    %v194 = vsel %vm192, %v189, %v191
    %197 = vrot.lane.b32.xlu0 %v171, 80
    %v198 = vpop.permute.xlu0 %197
    %199 = vrot.lane.b32.xlu0 %v167, 80
    %v200 = vpop.permute.xlu0 %199
    %201 = vrot.lane.b32.xlu0 %v172, 80
    %v202 = vpop.permute.xlu0 %201
    %vm203 = vcmask 654336
    %v204 = vsel %vm203, %v198, %v200
    %v205 = vsel %vm203, %v200, %v202
    %208 = vrot.lane.b32.xlu0 %v171, 64
    %v209 = vpop.permute.xlu0 %208
    %210 = vrot.lane.b32.xlu0 %v167, 64
    %v211 = vpop.permute.xlu0 %210
    %212 = vrot.lane.b32.xlu0 %v172, 64
    %v213 = vpop.permute.xlu0 %212
    %vm214 = vcmask 523264
    %v215 = vsel %vm214, %v209, %v211
    %v216 = vsel %vm214, %v211, %v213
    %219 = vrot.lane.b32.xlu0 %v171, 48
    %v220 = vpop.permute.xlu0 %219
    %221 = vrot.lane.b32.xlu0 %v167, 48
    %v222 = vpop.permute.xlu0 %221
    %223 = vrot.lane.b32.xlu0 %v172, 48
    %v224 = vpop.permute.xlu0 %223
    %v225 = vsel %vm166, %v220, %v222
    %v226 = vsel %vm166, %v222, %v224
    %229 = vrot.lane.b32.xlu0 %v171, 32
    %v230 = vpop.permute.xlu0 %229
    %231 = vrot.lane.b32.xlu0 %v167, 32
    %v232 = vpop.permute.xlu0 %231
    %233 = vrot.lane.b32.xlu0 %v172, 32
    %v234 = vpop.permute.xlu0 %233
    %vm235 = vcmask 261120
    %v236 = vsel %vm235, %v230, %v232
    %v237 = vsel %vm235, %v232, %v234
    %vm240 = vcmask 457728
    %v242 = vsel %vm240, %v154, 0
    %244 = vmatpush.msra.mxu0 0.0
    %245 = vmatpush.msra.mxu0 0.0
    %246 = vmatpush.msra.mxu0 0.0
    %247 = vmatpush.msra.mxu0 0.0
    %248 = vmatpush.msra.mxu0 0.0
    %249 = vmatpush.msra.mxu0 0.0
    %250 = vmatpush.msra.mxu0 0.0
    %251 = vmatpush.msra.mxu0 0.0
    %252 = vmatpush.msra.mxu0 0.0
    %253 = vmatpush.msra.mxu0 %v236
    %254 = vmatpush.msra.mxu0 %v225
    %255 = vmatpush.msra.mxu0 %v215
    %256 = vmatpush.msra.mxu0 %v204
    %257 = vmatpush.msra.mxu0 %v193
    %258 = vmatpush.msra.mxu0 %v182
    %259 = vmatpush.msra.mxu0 %v171
    %260 = vmatmul.f32.gmra.mxu0 %v242
    %v261 = vpop.f32.mrf.mxu0
    %v262 = vadd.f32 0.0, %v261
    %263 = vdwg.mxu0
    %264 = vmatpush.msra.mxu0 0.0
    %265 = vmatpush.msra.mxu0 0.0
    %266 = vmatpush.msra.mxu0 0.0
    %267 = vmatpush.msra.mxu0 0.0
    %268 = vmatpush.msra.mxu0 0.0
    %269 = vmatpush.msra.mxu0 0.0
    %270 = vmatpush.msra.mxu0 0.0
    %271 = vmatpush.msra.mxu0 0.0
    %272 = vmatpush.msra.mxu0 0.0
    %273 = vmatpush.msra.mxu0 %v237
    %274 = vmatpush.msra.mxu0 %v226
    %275 = vmatpush.msra.mxu0 %v216
    %276 = vmatpush.msra.mxu0 %v205
    %277 = vmatpush.msra.mxu0 %v194
    %278 = vmatpush.msra.mxu0 %v183
    %279 = vmatpush.msra.mxu0 %v167
    %280 = vmatmul.f32.gmra.mxu0 %v242
    %v281 = vpop.f32.mrf.mxu0
    %v282 = vadd.f32 0.0, %v281
    %283 = vdwg.mxu0
    %v284 = vadd.f32 %v262, %v282
    %285 = vadd.xlane.f32.xlu0 %v284
    %v286 = vpop.xlane.xlu0 %285
    %v287 = vrcp.pop 256.0
    %v288 = vmul.f32 256.0, %v287
    %v289 = vsub.f32 1.0, %v288
    %v290 = vmul.f32 %v287, %v289
    %v291 = vadd.f32 %v287, %v290
    %vm292 = vweird.f32 %v287
    %v293 = vsel %vm292, %v287, %v291
    %v294 = vmul.f32 %v286, %v293
    %v295 = vsub.f32 %v262, %v294
    %v296 = vsub.f32 %v282, %v294
    %v297 = vmul.f32 %v295, %v295
    %v298 = vmul.f32 %v296, %v296
    %v299 = vadd.f32 %v297, %v298
    %300 = vadd.xlane.f32.xlu0 %v299
    %v301 = vpop.xlane.xlu0 %300
    %v302 = vmul.f32 %v301, %v293
    %v303 = vadd.f32 %v302, 1e-05
    %v304 = vrsqrt.pop %v303
    %v305 = vmul.f32 %v304, %v303
    %v306 = vmul.f32 %v305, %v304
    %v307 = vmul.f32 0.5, %v306
    %v308 = vsub.f32 1.5, %v307
    %v309 = vmul.f32 %v304, %v308
    %vm310 = vweird.f32 %v303
    %vm311 = vweird.f32 %v304
    %vm312 = vmor %vm310, %vm311
    %v313 = vsel %vm312, %v304, %v309
    %v314 = vmul.f32 %v295, %v313
    %v315 = vmul.f32 %v296, %v313
    %v316 = vmax.f32 %v314, 0.0
    %v317 = vmax.f32 %v315, 0.0
    %320 = vrot.lane.b32.xlu0 %v316, 3
    %v321 = vpop.permute.xlu0 %320
    %322 = vrot.lane.b32.xlu0 %v317, 3
    %v323 = vpop.permute.xlu0 %322
    %vm324 = vcmask 23552
    %v325 = vsel %vm324, %v321, %v323
    %v329 = vsel %vm324, 0.0, %v321
    %v330 = vsel %vm324, %v323, 0.0
    %v331 = vsel %vm122, 1, 0
    %v332 = vsel %vm123, 1, 0
    %vm333 = vcmp.eq.s32.totalorder %v331, 1
    %vm334 = vcmp.eq.s32.totalorder %v332, 1
    %v335 = vsel %vm333, %v329, 0.0
    %v336 = vsel %vm334, %v325, 0.0
    %v337 = vsel %vm128, 1, 0
    %v338 = vsel %vm129, 1, 0
    %vm339 = vcmp.eq.s32.totalorder %v337, 1
    %vm340 = vcmp.eq.s32.totalorder %v338, 1
    %343 = vrot.lane.b32.xlu0 %v329, 127
    %v344 = vpop.permute.xlu0 %343
    %345 = vrot.lane.b32.xlu0 %v325, 127
    %v346 = vpop.permute.xlu0 %345
    %347 = vrot.lane.b32.xlu0 %v330, 127
    %v348 = vpop.permute.xlu0 %347
    %vm349 = vcmask 1039360
    %v350 = vsel %vm349, %v344, %v346
    %v351 = vsel %vm349, %v346, %v348
    %v354 = vsel %vm339, %v350, 0.0
    %v355 = vsel %vm340, %v351, 0.0
    %v356 = vsel %vm134, 1, 0
    %v357 = vsel %vm135, 1, 0
    %vm358 = vcmp.eq.s32.totalorder %v356, 1
    %vm359 = vcmp.eq.s32.totalorder %v357, 1
    %360 = vrot.lane.b32.xlu0 %v329, 126
    %v361 = vpop.permute.xlu0 %360
    %362 = vrot.lane.b32.xlu0 %v325, 126
    %v363 = vpop.permute.xlu0 %362
    %364 = vrot.lane.b32.xlu0 %v330, 126
    %v365 = vpop.permute.xlu0 %364
    %vm366 = vcmask 1031168
    %v367 = vsel %vm366, %v361, %v363
    %v368 = vsel %vm366, %v363, %v365
    %v371 = vsel %vm358, %v367, 0.0
    %v372 = vsel %vm359, %v368, 0.0
    %v373 = vsel %vm140, 1, 0
    %v374 = vsel %vm141, 1, 0
    %vm375 = vcmp.eq.s32.totalorder %v373, 1
    %vm376 = vcmp.eq.s32.totalorder %v374, 1
    %377 = vrot.lane.b32.xlu0 %v329, 124
    %v378 = vpop.permute.xlu0 %377
    %379 = vrot.lane.b32.xlu0 %v325, 124
    %v380 = vpop.permute.xlu0 %379
    %381 = vrot.lane.b32.xlu0 %v330, 124
    %v382 = vpop.permute.xlu0 %381
    %vm383 = vcmask 1014784
    %v384 = vsel %vm383, %v378, %v380
    %v385 = vsel %vm383, %v380, %v382
    %v388 = vsel %vm375, %v384, 0.0
    %v389 = vsel %vm376, %v385, 0.0
    %v390 = vsel %vm146, 1, 0
    %v391 = vsel %vm147, 1, 0
    %vm392 = vcmp.eq.s32.totalorder %v390, 1
    %vm393 = vcmp.eq.s32.totalorder %v391, 1
    %394 = vrot.lane.b32.xlu0 %v329, 123
    %v395 = vpop.permute.xlu0 %394
    %396 = vrot.lane.b32.xlu0 %v325, 123
    %v397 = vpop.permute.xlu0 %396
    %398 = vrot.lane.b32.xlu0 %v330, 123
    %v399 = vpop.permute.xlu0 %398
    %vm400 = vcmask 1006592
    %v401 = vsel %vm400, %v395, %v397
    %v402 = vsel %vm400, %v397, %v399
    %v405 = vsel %vm392, %v401, 0.0
    %v406 = vsel %vm393, %v402, 0.0
    %v407 = vsel %vm152, 1, 0
    %v408 = vsel %vm153, 1, 0
    %vm409 = vcmp.eq.s32.totalorder %v407, 1
    %vm410 = vcmp.eq.s32.totalorder %v408, 1
    %411 = vrot.lane.b32.xlu0 %v329, 122
    %v412 = vpop.permute.xlu0 %411
    %413 = vrot.lane.b32.xlu0 %v325, 122
    %v414 = vpop.permute.xlu0 %413
    %415 = vrot.lane.b32.xlu0 %v330, 122
    %v416 = vpop.permute.xlu0 %415
    %vm417 = vcmask 998400
    %v418 = vsel %vm417, %v412, %v414
    %v419 = vsel %vm417, %v414, %v416
    %v422 = vsel %vm409, %v418, 0.0
    %v423 = vsel %vm410, %v419, 0.0
    %424 = vrot.lane.b32.xlu0 %v329, 125
    %v425 = vpop.permute.xlu0 %424
    %426 = vrot.lane.b32.xlu0 %v325, 125
    %v427 = vpop.permute.xlu0 %426
    %428 = vrot.lane.b32.xlu0 %v330, 125
    %v429 = vpop.permute.xlu0 %428
    %vm430 = vcmask 1022976
    %v431 = vsel %vm430, %v425, %v427
    %v432 = vsel %vm430, %v427, %v429
    %v436 = vsel %vm240, %v155, 0
    %438 = vmatpush.msra.mxu0 0.0
    %439 = vmatpush.msra.mxu0 0.0
    %440 = vmatpush.msra.mxu0 0.0
    %441 = vmatpush.msra.mxu0 0.0
    %442 = vmatpush.msra.mxu0 0.0
    %443 = vmatpush.msra.mxu0 0.0
    %444 = vmatpush.msra.mxu0 0.0
    %445 = vmatpush.msra.mxu0 0.0
    %446 = vmatpush.msra.mxu0 0.0
    %447 = vmatpush.msra.mxu0 %v422
    %448 = vmatpush.msra.mxu0 %v405
    %449 = vmatpush.msra.mxu0 %v388
    %450 = vmatpush.msra.mxu0 %v431
    %451 = vmatpush.msra.mxu0 %v371
    %452 = vmatpush.msra.mxu0 %v354
    %453 = vmatpush.msra.mxu0 %v335
    %454 = vmatmul.f32.gmra.mxu0 %v436
    %v455 = vpop.f32.mrf.mxu0
    %v456 = vadd.f32 0.0, %v455
    %457 = vdwg.mxu0
    %458 = vmatpush.msra.mxu0 0.0
    %459 = vmatpush.msra.mxu0 0.0
    %460 = vmatpush.msra.mxu0 0.0
    %461 = vmatpush.msra.mxu0 0.0
    %462 = vmatpush.msra.mxu0 0.0
    %463 = vmatpush.msra.mxu0 0.0
    %464 = vmatpush.msra.mxu0 0.0
    %465 = vmatpush.msra.mxu0 0.0
    %466 = vmatpush.msra.mxu0 0.0
    %467 = vmatpush.msra.mxu0 %v423
    %468 = vmatpush.msra.mxu0 %v406
    %469 = vmatpush.msra.mxu0 %v389
    %470 = vmatpush.msra.mxu0 %v432
    %471 = vmatpush.msra.mxu0 %v372
    %472 = vmatpush.msra.mxu0 %v355
    %473 = vmatpush.msra.mxu0 %v336
    %474 = vmatmul.f32.gmra.mxu0 %v436
    %v475 = vpop.f32.mrf.mxu0
    %v476 = vadd.f32 0.0, %v475
    %477 = vdwg.mxu0
    %v478 = vadd.f32 %v456, %v476
    %479 = vadd.xlane.f32.xlu0 %v478
    %v480 = vpop.xlane.xlu0 %479
    %v481 = vmul.f32 %v480, %v293
    %v482 = vsub.f32 %v456, %v481
    %v483 = vsub.f32 %v476, %v481
    %v484 = vmul.f32 %v482, %v482
    %v485 = vmul.f32 %v483, %v483
    %v486 = vadd.f32 %v484, %v485
    %487 = vadd.xlane.f32.xlu0 %v486
    %v488 = vpop.xlane.xlu0 %487
    %v489 = vmul.f32 %v488, %v293
    %v490 = vadd.f32 %v489, 1e-05
    %v491 = vrsqrt.pop %v490
    %v492 = vmul.f32 %v491, %v490
    %v493 = vmul.f32 %v492, %v491
    %v494 = vmul.f32 0.5, %v493
    %v495 = vsub.f32 1.5, %v494
    %v496 = vmul.f32 %v491, %v495
    %vm497 = vweird.f32 %v490
    %vm498 = vweird.f32 %v491
    %vm499 = vmor %vm497, %vm498
    %v500 = vsel %vm499, %v491, %v496
    %v501 = vmul.f32 %v482, %v500
    %v502 = vmul.f32 %v483, %v500
    %v503 = vmax.f32 %v501, 0.0
    %v504 = vmax.f32 %v502, 0.0
    %505 = vrot.lane.b32.xlu0 %v158, 3
    %v506 = vpop.permute.xlu0 %505
    %507 = vrot.lane.b32.xlu0 %v159, 3
    %v508 = vpop.permute.xlu0 %507
    %v509 = vsel %vm324, %v506, %v508
    %v513 = vsel %vm324, 0.0, %v506
    %v514 = vsel %vm324, %v508, 0.0
    %v515 = vsel %vm333, %v513, 0.0
    %v516 = vsel %vm334, %v509, 0.0
    %519 = vrot.lane.b32.xlu0 %v513, 127
    %v520 = vpop.permute.xlu0 %519
    %521 = vrot.lane.b32.xlu0 %v509, 127
    %v522 = vpop.permute.xlu0 %521
    %523 = vrot.lane.b32.xlu0 %v514, 127
    %v524 = vpop.permute.xlu0 %523
    %v525 = vsel %vm349, %v520, %v522
    %v526 = vsel %vm349, %v522, %v524
    %v529 = vsel %vm339, %v525, 0.0
    %v530 = vsel %vm340, %v526, 0.0
    %531 = vrot.lane.b32.xlu0 %v513, 126
    %v532 = vpop.permute.xlu0 %531
    %533 = vrot.lane.b32.xlu0 %v509, 126
    %v534 = vpop.permute.xlu0 %533
    %535 = vrot.lane.b32.xlu0 %v514, 126
    %v536 = vpop.permute.xlu0 %535
    %v537 = vsel %vm366, %v532, %v534
    %v538 = vsel %vm366, %v534, %v536
    %v541 = vsel %vm358, %v537, 0.0
    %v542 = vsel %vm359, %v538, 0.0
    %543 = vrot.lane.b32.xlu0 %v513, 124
    %v544 = vpop.permute.xlu0 %543
    %545 = vrot.lane.b32.xlu0 %v509, 124
    %v546 = vpop.permute.xlu0 %545
    %547 = vrot.lane.b32.xlu0 %v514, 124
    %v548 = vpop.permute.xlu0 %547
    %v549 = vsel %vm383, %v544, %v546
    %v550 = vsel %vm383, %v546, %v548
    %v553 = vsel %vm375, %v549, 0.0
    %v554 = vsel %vm376, %v550, 0.0
    %555 = vrot.lane.b32.xlu0 %v513, 123
    %v556 = vpop.permute.xlu0 %555
    %557 = vrot.lane.b32.xlu0 %v509, 123
    %v558 = vpop.permute.xlu0 %557
    %559 = vrot.lane.b32.xlu0 %v514, 123
    %v560 = vpop.permute.xlu0 %559
    %v561 = vsel %vm400, %v556, %v558
    %v562 = vsel %vm400, %v558, %v560
    %v565 = vsel %vm392, %v561, 0.0
    %v566 = vsel %vm393, %v562, 0.0
    %567 = vrot.lane.b32.xlu0 %v513, 122
    %v568 = vpop.permute.xlu0 %567
    %569 = vrot.lane.b32.xlu0 %v509, 122
    %v570 = vpop.permute.xlu0 %569
    %571 = vrot.lane.b32.xlu0 %v514, 122
    %v572 = vpop.permute.xlu0 %571
    %v573 = vsel %vm417, %v568, %v570
    %v574 = vsel %vm417, %v570, %v572
    %v577 = vsel %vm409, %v573, 0.0
    %v578 = vsel %vm410, %v574, 0.0
    %579 = vrot.lane.b32.xlu0 %v513, 125
    %v580 = vpop.permute.xlu0 %579
    %581 = vrot.lane.b32.xlu0 %v509, 125
    %v582 = vpop.permute.xlu0 %581
    %583 = vrot.lane.b32.xlu0 %v514, 125
    %v584 = vpop.permute.xlu0 %583
    %v585 = vsel %vm430, %v580, %v582
    %v586 = vsel %vm430, %v582, %v584
    %v590 = vsel %vm240, %v156, 0
    %592 = vmatpush.msra.mxu0 0.0
    %593 = vmatpush.msra.mxu0 0.0
    %594 = vmatpush.msra.mxu0 0.0
    %595 = vmatpush.msra.mxu0 0.0
    %596 = vmatpush.msra.mxu0 0.0
    %597 = vmatpush.msra.mxu0 0.0
    %598 = vmatpush.msra.mxu0 0.0
    %599 = vmatpush.msra.mxu0 0.0
    %600 = vmatpush.msra.mxu0 0.0
    %601 = vmatpush.msra.mxu0 %v577
    %602 = vmatpush.msra.mxu0 %v565
    %603 = vmatpush.msra.mxu0 %v553
    %604 = vmatpush.msra.mxu0 %v585
    %605 = vmatpush.msra.mxu0 %v541
    %606 = vmatpush.msra.mxu0 %v529
    %607 = vmatpush.msra.mxu0 %v515
    %608 = vmatmul.f32.gmra.mxu0 %v590
    %v609 = vpop.f32.mrf.mxu0
    %v610 = vadd.f32 0.0, %v609
    %611 = vdwg.mxu0
    %612 = vmatpush.msra.mxu0 0.0
    %613 = vmatpush.msra.mxu0 0.0
    %614 = vmatpush.msra.mxu0 0.0
    %615 = vmatpush.msra.mxu0 0.0
    %616 = vmatpush.msra.mxu0 0.0
    %617 = vmatpush.msra.mxu0 0.0
    %618 = vmatpush.msra.mxu0 0.0
    %619 = vmatpush.msra.mxu0 0.0
    %620 = vmatpush.msra.mxu0 0.0
    %621 = vmatpush.msra.mxu0 %v578
    %622 = vmatpush.msra.mxu0 %v566
    %623 = vmatpush.msra.mxu0 %v554
    %624 = vmatpush.msra.mxu0 %v586
    %625 = vmatpush.msra.mxu0 %v542
    %626 = vmatpush.msra.mxu0 %v530
    %627 = vmatpush.msra.mxu0 %v516
    %628 = vmatmul.f32.gmra.mxu0 %v590
    %v629 = vpop.f32.mrf.mxu0
    %v630 = vadd.f32 0.0, %v629
    %631 = vdwg.mxu0
    %v632 = vadd.f32 %v610, %v630
    %633 = vadd.xlane.f32.xlu0 %v632
    %v634 = vpop.xlane.xlu0 %633
    %v635 = vmul.f32 %v634, %v293
    %v636 = vsub.f32 %v610, %v635
    %v637 = vsub.f32 %v630, %v635
    %v638 = vmul.f32 %v636, %v636
    %v639 = vmul.f32 %v637, %v637
    %v640 = vadd.f32 %v638, %v639
    %641 = vadd.xlane.f32.xlu0 %v640
    %v642 = vpop.xlane.xlu0 %641
    %v643 = vmul.f32 %v642, %v293
    %v644 = vadd.f32 %v643, 1e-05
    %v645 = vrsqrt.pop %v644
    %v646 = vmul.f32 %v645, %v644
    %v647 = vmul.f32 %v646, %v645
    %v648 = vmul.f32 0.5, %v647
    %v649 = vsub.f32 1.5, %v648
    %v650 = vmul.f32 %v645, %v649
    %vm651 = vweird.f32 %v644
    %vm652 = vweird.f32 %v645
    %vm653 = vmor %vm651, %vm652
    %v654 = vsel %vm653, %v645, %v650
    %v655 = vmul.f32 %v636, %v654
    %v656 = vmul.f32 %v637, %v654
    %v657 = vmax.f32 %v655, 0.0
    %v658 = vmax.f32 %v656, 0.0
    %661 = vrot.lane.b32.xlu0 %v657, 48
    %v662 = vpop.permute.xlu0 %661
    %663 = vrot.lane.b32.xlu0 %v658, 48
    %v664 = vpop.permute.xlu0 %663
    %v665 = vsel %vm166, %v662, %v664
    %v669 = vsel %vm166, 0.0, %v662
    %v670 = vsel %vm166, %v664, 0.0
    %673 = vrot.lane.b32.xlu0 %v669, 112
    %v674 = vpop.permute.xlu0 %673
    %675 = vrot.lane.b32.xlu0 %v665, 112
    %v676 = vpop.permute.xlu0 %675
    %677 = vrot.lane.b32.xlu0 %v670, 112
    %v678 = vpop.permute.xlu0 %677
    %v679 = vsel %vm181, %v674, %v676
    %v680 = vsel %vm181, %v676, %v678
    %683 = vrot.lane.b32.xlu0 %v669, 96
    %v684 = vpop.permute.xlu0 %683
    %685 = vrot.lane.b32.xlu0 %v665, 96
    %v686 = vpop.permute.xlu0 %685
    %687 = vrot.lane.b32.xlu0 %v670, 96
    %v688 = vpop.permute.xlu0 %687
    %v689 = vsel %vm192, %v684, %v686
    %v690 = vsel %vm192, %v686, %v688
    %693 = vrot.lane.b32.xlu0 %v669, 80
    %v694 = vpop.permute.xlu0 %693
    %695 = vrot.lane.b32.xlu0 %v665, 80
    %v696 = vpop.permute.xlu0 %695
    %697 = vrot.lane.b32.xlu0 %v670, 80
    %v698 = vpop.permute.xlu0 %697
    %v699 = vsel %vm203, %v694, %v696
    %v700 = vsel %vm203, %v696, %v698
    %703 = vrot.lane.b32.xlu0 %v669, 64
    %v704 = vpop.permute.xlu0 %703
    %705 = vrot.lane.b32.xlu0 %v665, 64
    %v706 = vpop.permute.xlu0 %705
    %707 = vrot.lane.b32.xlu0 %v670, 64
    %v708 = vpop.permute.xlu0 %707
    %v709 = vsel %vm214, %v704, %v706
    %v710 = vsel %vm214, %v706, %v708
    %713 = vrot.lane.b32.xlu0 %v669, 48
    %v714 = vpop.permute.xlu0 %713
    %715 = vrot.lane.b32.xlu0 %v665, 48
    %v716 = vpop.permute.xlu0 %715
    %717 = vrot.lane.b32.xlu0 %v670, 48
    %v718 = vpop.permute.xlu0 %717
    %v719 = vsel %vm166, %v714, %v716
    %v720 = vsel %vm166, %v716, %v718
    %723 = vrot.lane.b32.xlu0 %v669, 32
    %v724 = vpop.permute.xlu0 %723
    %725 = vrot.lane.b32.xlu0 %v665, 32
    %v726 = vpop.permute.xlu0 %725
    %727 = vrot.lane.b32.xlu0 %v670, 32
    %v728 = vpop.permute.xlu0 %727
    %v729 = vsel %vm235, %v724, %v726
    %v730 = vsel %vm235, %v726, %v728
    %v734 = vsel %vm240, %v157, 0
    %736 = vmatpush.msra.mxu0 0.0
    %737 = vmatpush.msra.mxu0 0.0
    %738 = vmatpush.msra.mxu0 0.0
    %739 = vmatpush.msra.mxu0 0.0
    %740 = vmatpush.msra.mxu0 0.0
    %741 = vmatpush.msra.mxu0 0.0
    %742 = vmatpush.msra.mxu0 0.0
    %743 = vmatpush.msra.mxu0 0.0
    %744 = vmatpush.msra.mxu0 0.0
    %745 = vmatpush.msra.mxu0 %v729
    %746 = vmatpush.msra.mxu0 %v719
    %747 = vmatpush.msra.mxu0 %v709
    %748 = vmatpush.msra.mxu0 %v699
    %749 = vmatpush.msra.mxu0 %v689
    %750 = vmatpush.msra.mxu0 %v679
    %751 = vmatpush.msra.mxu0 %v669
    %752 = vmatmul.f32.gmra.mxu0 %v734
    %v753 = vpop.f32.mrf.mxu0
    %v754 = vadd.f32 0.0, %v753
    %755 = vdwg.mxu0
    %756 = vmatpush.msra.mxu0 0.0
    %757 = vmatpush.msra.mxu0 0.0
    %758 = vmatpush.msra.mxu0 0.0
    %759 = vmatpush.msra.mxu0 0.0
    %760 = vmatpush.msra.mxu0 0.0
    %761 = vmatpush.msra.mxu0 0.0
    %762 = vmatpush.msra.mxu0 0.0
    %763 = vmatpush.msra.mxu0 0.0
    %764 = vmatpush.msra.mxu0 0.0
    %765 = vmatpush.msra.mxu0 %v730
    %766 = vmatpush.msra.mxu0 %v720
    %767 = vmatpush.msra.mxu0 %v710
    %768 = vmatpush.msra.mxu0 %v700
    %769 = vmatpush.msra.mxu0 %v690
    %770 = vmatpush.msra.mxu0 %v680
    %771 = vmatpush.msra.mxu0 %v665
    %772 = vmatmul.f32.gmra.mxu0 %v734
    %v773 = vpop.f32.mrf.mxu0
    %v774 = vadd.f32 0.0, %v773
    %775 = vdwg.mxu0
    %v776 = vadd.f32 %v754, %v774
    %777 = vadd.xlane.f32.xlu0 %v776
    %v778 = vpop.xlane.xlu0 %777
    %v779 = vmul.f32 %v778, %v293
    %v780 = vsub.f32 %v754, %v779
    %v781 = vsub.f32 %v774, %v779
    %v782 = vmul.f32 %v780, %v780
    %v783 = vmul.f32 %v781, %v781
    %v784 = vadd.f32 %v782, %v783
    %785 = vadd.xlane.f32.xlu0 %v784
    %v786 = vpop.xlane.xlu0 %785
    %v787 = vmul.f32 %v786, %v293
    %v788 = vadd.f32 %v787, 1e-05
    %v789 = vrsqrt.pop %v788
    %v790 = vmul.f32 %v789, %v788
    %v791 = vmul.f32 %v790, %v789
    %v792 = vmul.f32 0.5, %v791
    %v793 = vsub.f32 1.5, %v792
    %v794 = vmul.f32 %v789, %v793
    %vm795 = vweird.f32 %v788
    %vm796 = vweird.f32 %v789
    %vm797 = vmor %vm795, %vm796
    %v798 = vsel %vm797, %v789, %v794
    %v799 = vmul.f32 %v780, %v798
    %v800 = vmul.f32 %v781, %v798
    %v801 = vmax.f32 %v799, 0.0
    %v802 = vmax.f32 %v800, 0.0
    %v803 = vadd.f32 %v503, %v801
    %v804 = vadd.f32 %v504, %v802
    %805 = vst [vmem:[#allocation11] sm:$0xff] %v803
    %806 = vst [vmem:[#allocation11 + $0x8] sm:$0xff] %v804
    %s807 = scalar_lea.vmem [#allocation2], 16
    %v808 = vld [vmem:[%s807] sm:$0xff]
    %v809 = vld [vmem:[%s807 + $0x8] sm:$0xff]
    %812 = vrot.lane.b32.xlu0 %v808, 48
    %v813 = vpop.permute.xlu0 %812
    %814 = vrot.lane.b32.xlu0 %v809, 48
    %v815 = vpop.permute.xlu0 %814
    %v816 = vsel %vm166, %v813, %v815
    %v820 = vsel %vm166, 0.0, %v813
    %v821 = vsel %vm166, %v815, 0.0
    %824 = vrot.lane.b32.xlu0 %v820, 112
    %v825 = vpop.permute.xlu0 %824
    %826 = vrot.lane.b32.xlu0 %v816, 112
    %v827 = vpop.permute.xlu0 %826
    %828 = vrot.lane.b32.xlu0 %v821, 112
    %v829 = vpop.permute.xlu0 %828
    %v830 = vsel %vm181, %v825, %v827
    %v831 = vsel %vm181, %v827, %v829
    %834 = vrot.lane.b32.xlu0 %v820, 96
    %v835 = vpop.permute.xlu0 %834
    %836 = vrot.lane.b32.xlu0 %v816, 96
    %v837 = vpop.permute.xlu0 %836
    %838 = vrot.lane.b32.xlu0 %v821, 96
    %v839 = vpop.permute.xlu0 %838
    %v840 = vsel %vm192, %v835, %v837
    %v841 = vsel %vm192, %v837, %v839
    %844 = vrot.lane.b32.xlu0 %v820, 80
    %v845 = vpop.permute.xlu0 %844
    %846 = vrot.lane.b32.xlu0 %v816, 80
    %v847 = vpop.permute.xlu0 %846
    %848 = vrot.lane.b32.xlu0 %v821, 80
    %v849 = vpop.permute.xlu0 %848
    %v850 = vsel %vm203, %v845, %v847
    %v851 = vsel %vm203, %v847, %v849
    %854 = vrot.lane.b32.xlu0 %v820, 64
    %v855 = vpop.permute.xlu0 %854
    %856 = vrot.lane.b32.xlu0 %v816, 64
    %v857 = vpop.permute.xlu0 %856
    %858 = vrot.lane.b32.xlu0 %v821, 64
    %v859 = vpop.permute.xlu0 %858
    %v860 = vsel %vm214, %v855, %v857
    %v861 = vsel %vm214, %v857, %v859
    %864 = vrot.lane.b32.xlu0 %v820, 48
    %v865 = vpop.permute.xlu0 %864
    %866 = vrot.lane.b32.xlu0 %v816, 48
    %v867 = vpop.permute.xlu0 %866
    %868 = vrot.lane.b32.xlu0 %v821, 48
    %v869 = vpop.permute.xlu0 %868
    %v870 = vsel %vm166, %v865, %v867
    %v871 = vsel %vm166, %v867, %v869
    %874 = vrot.lane.b32.xlu0 %v820, 32
    %v875 = vpop.permute.xlu0 %874
    %876 = vrot.lane.b32.xlu0 %v816, 32
    %v877 = vpop.permute.xlu0 %876
    %878 = vrot.lane.b32.xlu0 %v821, 32
    %v879 = vpop.permute.xlu0 %878
    %v880 = vsel %vm235, %v875, %v877
    %v881 = vsel %vm235, %v877, %v879
    %884 = vmatpush.msra.mxu0 0.0
    %885 = vmatpush.msra.mxu0 0.0
    %886 = vmatpush.msra.mxu0 0.0
    %887 = vmatpush.msra.mxu0 0.0
    %888 = vmatpush.msra.mxu0 0.0
    %889 = vmatpush.msra.mxu0 0.0
    %890 = vmatpush.msra.mxu0 0.0
    %891 = vmatpush.msra.mxu0 0.0
    %892 = vmatpush.msra.mxu0 0.0
    %893 = vmatpush.msra.mxu0 %v880
    %894 = vmatpush.msra.mxu0 %v870
    %895 = vmatpush.msra.mxu0 %v860
    %896 = vmatpush.msra.mxu0 %v850
    %897 = vmatpush.msra.mxu0 %v840
    %898 = vmatpush.msra.mxu0 %v830
    %899 = vmatpush.msra.mxu0 %v820
    %900 = vmatmul.f32.gmra.mxu0 %v242
    %v901 = vpop.f32.mrf.mxu0
    %v902 = vadd.f32 0.0, %v901
    %903 = vdwg.mxu0
    %904 = vmatpush.msra.mxu0 0.0
    %905 = vmatpush.msra.mxu0 0.0
    %906 = vmatpush.msra.mxu0 0.0
    %907 = vmatpush.msra.mxu0 0.0
    %908 = vmatpush.msra.mxu0 0.0
    %909 = vmatpush.msra.mxu0 0.0
    %910 = vmatpush.msra.mxu0 0.0
    %911 = vmatpush.msra.mxu0 0.0
    %912 = vmatpush.msra.mxu0 0.0
    %913 = vmatpush.msra.mxu0 %v881
    %914 = vmatpush.msra.mxu0 %v871
    %915 = vmatpush.msra.mxu0 %v861
    %916 = vmatpush.msra.mxu0 %v851
    %917 = vmatpush.msra.mxu0 %v841
    %918 = vmatpush.msra.mxu0 %v831
    %919 = vmatpush.msra.mxu0 %v816
    %920 = vmatmul.f32.gmra.mxu0 %v242
    %v921 = vpop.f32.mrf.mxu0
    %v922 = vadd.f32 0.0, %v921
    %923 = vdwg.mxu0
    %v924 = vadd.f32 %v902, %v922
    %925 = vadd.xlane.f32.xlu0 %v924
    %v926 = vpop.xlane.xlu0 %925
    %v927 = vmul.f32 %v926, %v293
    %v928 = vsub.f32 %v902, %v927
    %v929 = vsub.f32 %v922, %v927
    %v930 = vmul.f32 %v928, %v928
    %v931 = vmul.f32 %v929, %v929
    %v932 = vadd.f32 %v930, %v931
    %933 = vadd.xlane.f32.xlu0 %v932
    %v934 = vpop.xlane.xlu0 %933
    %v935 = vmul.f32 %v934, %v293
    %v936 = vadd.f32 %v935, 1e-05
    %v937 = vrsqrt.pop %v936
    %v938 = vmul.f32 %v937, %v936
    %v939 = vmul.f32 %v938, %v937
    %v940 = vmul.f32 0.5, %v939
    %v941 = vsub.f32 1.5, %v940
    %v942 = vmul.f32 %v937, %v941
    %vm943 = vweird.f32 %v936
    %vm944 = vweird.f32 %v937
    %vm945 = vmor %vm943, %vm944
    %v946 = vsel %vm945, %v937, %v942
    %v947 = vmul.f32 %v928, %v946
    %v948 = vmul.f32 %v929, %v946
    %v949 = vmax.f32 %v947, 0.0
    %v950 = vmax.f32 %v948, 0.0
    %953 = vrot.lane.b32.xlu0 %v949, 3
    %v954 = vpop.permute.xlu0 %953
    %955 = vrot.lane.b32.xlu0 %v950, 3
    %v956 = vpop.permute.xlu0 %955
    %v957 = vsel %vm324, %v954, %v956
    %v961 = vsel %vm324, 0.0, %v954
    %v962 = vsel %vm324, %v956, 0.0
    %v963 = vsel %vm333, %v961, 0.0
    %v964 = vsel %vm334, %v957, 0.0
    %967 = vrot.lane.b32.xlu0 %v961, 127
    %v968 = vpop.permute.xlu0 %967
    %969 = vrot.lane.b32.xlu0 %v957, 127
    %v970 = vpop.permute.xlu0 %969
    %971 = vrot.lane.b32.xlu0 %v962, 127
    %v972 = vpop.permute.xlu0 %971
    %v973 = vsel %vm349, %v968, %v970
    %v974 = vsel %vm349, %v970, %v972
    %v977 = vsel %vm339, %v973, 0.0
    %v978 = vsel %vm340, %v974, 0.0
    %979 = vrot.lane.b32.xlu0 %v961, 126
    %v980 = vpop.permute.xlu0 %979
    %981 = vrot.lane.b32.xlu0 %v957, 126
    %v982 = vpop.permute.xlu0 %981
    %983 = vrot.lane.b32.xlu0 %v962, 126
    %v984 = vpop.permute.xlu0 %983
    %v985 = vsel %vm366, %v980, %v982
    %v986 = vsel %vm366, %v982, %v984
    %v989 = vsel %vm358, %v985, 0.0
    %v990 = vsel %vm359, %v986, 0.0
    %991 = vrot.lane.b32.xlu0 %v961, 124
    %v992 = vpop.permute.xlu0 %991
    %993 = vrot.lane.b32.xlu0 %v957, 124
    %v994 = vpop.permute.xlu0 %993
    %995 = vrot.lane.b32.xlu0 %v962, 124
    %v996 = vpop.permute.xlu0 %995
    %v997 = vsel %vm383, %v992, %v994
    %v998 = vsel %vm383, %v994, %v996
    %v1001 = vsel %vm375, %v997, 0.0
    %v1002 = vsel %vm376, %v998, 0.0
    %1003 = vrot.lane.b32.xlu0 %v961, 123
    %v1004 = vpop.permute.xlu0 %1003
    %1005 = vrot.lane.b32.xlu0 %v957, 123
    %v1006 = vpop.permute.xlu0 %1005
    %1007 = vrot.lane.b32.xlu0 %v962, 123
    %v1008 = vpop.permute.xlu0 %1007
    %v1009 = vsel %vm400, %v1004, %v1006
    %v1010 = vsel %vm400, %v1006, %v1008
    %v1013 = vsel %vm392, %v1009, 0.0
    %v1014 = vsel %vm393, %v1010, 0.0
    %1015 = vrot.lane.b32.xlu0 %v961, 122
    %v1016 = vpop.permute.xlu0 %1015
    %1017 = vrot.lane.b32.xlu0 %v957, 122
    %v1018 = vpop.permute.xlu0 %1017
    %1019 = vrot.lane.b32.xlu0 %v962, 122
    %v1020 = vpop.permute.xlu0 %1019
    %v1021 = vsel %vm417, %v1016, %v1018
    %v1022 = vsel %vm417, %v1018, %v1020
    %v1025 = vsel %vm409, %v1021, 0.0
    %v1026 = vsel %vm410, %v1022, 0.0
    %1027 = vrot.lane.b32.xlu0 %v961, 125
    %v1028 = vpop.permute.xlu0 %1027
    %1029 = vrot.lane.b32.xlu0 %v957, 125
    %v1030 = vpop.permute.xlu0 %1029
    %1031 = vrot.lane.b32.xlu0 %v962, 125
    %v1032 = vpop.permute.xlu0 %1031
    %v1033 = vsel %vm430, %v1028, %v1030
    %v1034 = vsel %vm430, %v1030, %v1032
    %1037 = vmatpush.msra.mxu0 0.0
    %1038 = vmatpush.msra.mxu0 0.0
    %1039 = vmatpush.msra.mxu0 0.0
    %1040 = vmatpush.msra.mxu0 0.0
    %1041 = vmatpush.msra.mxu0 0.0
    %1042 = vmatpush.msra.mxu0 0.0
    %1043 = vmatpush.msra.mxu0 0.0
    %1044 = vmatpush.msra.mxu0 0.0
    %1045 = vmatpush.msra.mxu0 0.0
    %1046 = vmatpush.msra.mxu0 %v1025
    %1047 = vmatpush.msra.mxu0 %v1013
    %1048 = vmatpush.msra.mxu0 %v1001
    %1049 = vmatpush.msra.mxu0 %v1033
    %1050 = vmatpush.msra.mxu0 %v989
    %1051 = vmatpush.msra.mxu0 %v977
    %1052 = vmatpush.msra.mxu0 %v963
    %1053 = vmatmul.f32.gmra.mxu0 %v436
    %v1054 = vpop.f32.mrf.mxu0
    %v1055 = vadd.f32 0.0, %v1054
    %1056 = vdwg.mxu0
    %1057 = vmatpush.msra.mxu0 0.0
    %1058 = vmatpush.msra.mxu0 0.0
    %1059 = vmatpush.msra.mxu0 0.0
    %1060 = vmatpush.msra.mxu0 0.0
    %1061 = vmatpush.msra.mxu0 0.0
    %1062 = vmatpush.msra.mxu0 0.0
    %1063 = vmatpush.msra.mxu0 0.0
    %1064 = vmatpush.msra.mxu0 0.0
    %1065 = vmatpush.msra.mxu0 0.0
    %1066 = vmatpush.msra.mxu0 %v1026
    %1067 = vmatpush.msra.mxu0 %v1014
    %1068 = vmatpush.msra.mxu0 %v1002
    %1069 = vmatpush.msra.mxu0 %v1034
    %1070 = vmatpush.msra.mxu0 %v990
    %1071 = vmatpush.msra.mxu0 %v978
    %1072 = vmatpush.msra.mxu0 %v964
    %1073 = vmatmul.f32.gmra.mxu0 %v436
    %v1074 = vpop.f32.mrf.mxu0
    %v1075 = vadd.f32 0.0, %v1074
    %1076 = vdwg.mxu0
    %v1077 = vadd.f32 %v1055, %v1075
    %1078 = vadd.xlane.f32.xlu0 %v1077
    %v1079 = vpop.xlane.xlu0 %1078
    %v1080 = vmul.f32 %v1079, %v293
    %v1081 = vsub.f32 %v1055, %v1080
    %v1082 = vsub.f32 %v1075, %v1080
    %v1083 = vmul.f32 %v1081, %v1081
    %v1084 = vmul.f32 %v1082, %v1082
    %v1085 = vadd.f32 %v1083, %v1084
    %1086 = vadd.xlane.f32.xlu0 %v1085
    %v1087 = vpop.xlane.xlu0 %1086
    %v1088 = vmul.f32 %v1087, %v293
    %v1089 = vadd.f32 %v1088, 1e-05
    %v1090 = vrsqrt.pop %v1089
    %v1091 = vmul.f32 %v1090, %v1089
    %v1092 = vmul.f32 %v1091, %v1090
    %v1093 = vmul.f32 0.5, %v1092
    %v1094 = vsub.f32 1.5, %v1093
    %v1095 = vmul.f32 %v1090, %v1094
    %vm1096 = vweird.f32 %v1089
    %vm1097 = vweird.f32 %v1090
    %vm1098 = vmor %vm1096, %vm1097
    %v1099 = vsel %vm1098, %v1090, %v1095
    %v1100 = vmul.f32 %v1081, %v1099
    %v1101 = vmul.f32 %v1082, %v1099
    %v1102 = vmax.f32 %v1100, 0.0
    %v1103 = vmax.f32 %v1101, 0.0
    %1104 = vrot.lane.b32.xlu0 %v808, 3
    %v1105 = vpop.permute.xlu0 %1104
    %1106 = vrot.lane.b32.xlu0 %v809, 3
    %v1107 = vpop.permute.xlu0 %1106
    %v1108 = vsel %vm324, %v1105, %v1107
    %v1112 = vsel %vm324, 0.0, %v1105
    %v1113 = vsel %vm324, %v1107, 0.0
    %v1114 = vsel %vm333, %v1112, 0.0
    %v1115 = vsel %vm334, %v1108, 0.0
    %1118 = vrot.lane.b32.xlu0 %v1112, 127
    %v1119 = vpop.permute.xlu0 %1118
    %1120 = vrot.lane.b32.xlu0 %v1108, 127
    %v1121 = vpop.permute.xlu0 %1120
    %1122 = vrot.lane.b32.xlu0 %v1113, 127
    %v1123 = vpop.permute.xlu0 %1122
    %v1124 = vsel %vm349, %v1119, %v1121
    %v1125 = vsel %vm349, %v1121, %v1123
    %v1128 = vsel %vm339, %v1124, 0.0
    %v1129 = vsel %vm340, %v1125, 0.0
    %1130 = vrot.lane.b32.xlu0 %v1112, 126
    %v1131 = vpop.permute.xlu0 %1130
    %1132 = vrot.lane.b32.xlu0 %v1108, 126
    %v1133 = vpop.permute.xlu0 %1132
    %1134 = vrot.lane.b32.xlu0 %v1113, 126
    %v1135 = vpop.permute.xlu0 %1134
    %v1136 = vsel %vm366, %v1131, %v1133
    %v1137 = vsel %vm366, %v1133, %v1135
    %v1140 = vsel %vm358, %v1136, 0.0
    %v1141 = vsel %vm359, %v1137, 0.0
    %1142 = vrot.lane.b32.xlu0 %v1112, 124
    %v1143 = vpop.permute.xlu0 %1142
    %1144 = vrot.lane.b32.xlu0 %v1108, 124
    %v1145 = vpop.permute.xlu0 %1144
    %1146 = vrot.lane.b32.xlu0 %v1113, 124
    %v1147 = vpop.permute.xlu0 %1146
    %v1148 = vsel %vm383, %v1143, %v1145
    %v1149 = vsel %vm383, %v1145, %v1147
    %v1152 = vsel %vm375, %v1148, 0.0
    %v1153 = vsel %vm376, %v1149, 0.0
    %1154 = vrot.lane.b32.xlu0 %v1112, 123
    %v1155 = vpop.permute.xlu0 %1154
    %1156 = vrot.lane.b32.xlu0 %v1108, 123
    %v1157 = vpop.permute.xlu0 %1156
    %1158 = vrot.lane.b32.xlu0 %v1113, 123
    %v1159 = vpop.permute.xlu0 %1158
    %v1160 = vsel %vm400, %v1155, %v1157
    %v1161 = vsel %vm400, %v1157, %v1159
    %v1164 = vsel %vm392, %v1160, 0.0
    %v1165 = vsel %vm393, %v1161, 0.0
    %1166 = vrot.lane.b32.xlu0 %v1112, 122
    %v1167 = vpop.permute.xlu0 %1166
    %1168 = vrot.lane.b32.xlu0 %v1108, 122
    %v1169 = vpop.permute.xlu0 %1168
    %1170 = vrot.lane.b32.xlu0 %v1113, 122
    %v1171 = vpop.permute.xlu0 %1170
    %v1172 = vsel %vm417, %v1167, %v1169
    %v1173 = vsel %vm417, %v1169, %v1171
    %v1176 = vsel %vm409, %v1172, 0.0
    %v1177 = vsel %vm410, %v1173, 0.0
    %1178 = vrot.lane.b32.xlu0 %v1112, 125
    %v1179 = vpop.permute.xlu0 %1178
    %1180 = vrot.lane.b32.xlu0 %v1108, 125
    %v1181 = vpop.permute.xlu0 %1180
    %1182 = vrot.lane.b32.xlu0 %v1113, 125
    %v1183 = vpop.permute.xlu0 %1182
    %v1184 = vsel %vm430, %v1179, %v1181
    %v1185 = vsel %vm430, %v1181, %v1183
    %1188 = vmatpush.msra.mxu0 0.0
    %1189 = vmatpush.msra.mxu0 0.0
    %1190 = vmatpush.msra.mxu0 0.0
    %1191 = vmatpush.msra.mxu0 0.0
    %1192 = vmatpush.msra.mxu0 0.0
    %1193 = vmatpush.msra.mxu0 0.0
    %1194 = vmatpush.msra.mxu0 0.0
    %1195 = vmatpush.msra.mxu0 0.0
    %1196 = vmatpush.msra.mxu0 0.0
    %1197 = vmatpush.msra.mxu0 %v1176
    %1198 = vmatpush.msra.mxu0 %v1164
    %1199 = vmatpush.msra.mxu0 %v1152
    %1200 = vmatpush.msra.mxu0 %v1184
    %1201 = vmatpush.msra.mxu0 %v1140
    %1202 = vmatpush.msra.mxu0 %v1128
    %1203 = vmatpush.msra.mxu0 %v1114
    %1204 = vmatmul.f32.gmra.mxu0 %v590
    %v1205 = vpop.f32.mrf.mxu0
    %v1206 = vadd.f32 0.0, %v1205
    %1207 = vdwg.mxu0
    %1208 = vmatpush.msra.mxu0 0.0
    %1209 = vmatpush.msra.mxu0 0.0
    %1210 = vmatpush.msra.mxu0 0.0
    %1211 = vmatpush.msra.mxu0 0.0
    %1212 = vmatpush.msra.mxu0 0.0
    %1213 = vmatpush.msra.mxu0 0.0
    %1214 = vmatpush.msra.mxu0 0.0
    %1215 = vmatpush.msra.mxu0 0.0
    %1216 = vmatpush.msra.mxu0 0.0
    %1217 = vmatpush.msra.mxu0 %v1177
    %1218 = vmatpush.msra.mxu0 %v1165
    %1219 = vmatpush.msra.mxu0 %v1153
    %1220 = vmatpush.msra.mxu0 %v1185
    %1221 = vmatpush.msra.mxu0 %v1141
    %1222 = vmatpush.msra.mxu0 %v1129
    %1223 = vmatpush.msra.mxu0 %v1115
    %1224 = vmatmul.f32.gmra.mxu0 %v590
    %v1225 = vpop.f32.mrf.mxu0
    %v1226 = vadd.f32 0.0, %v1225
    %1227 = vdwg.mxu0
    %v1228 = vadd.f32 %v1206, %v1226
    %1229 = vadd.xlane.f32.xlu0 %v1228
    %v1230 = vpop.xlane.xlu0 %1229
    %v1231 = vmul.f32 %v1230, %v293
    %v1232 = vsub.f32 %v1206, %v1231
    %v1233 = vsub.f32 %v1226, %v1231
    %v1234 = vmul.f32 %v1232, %v1232
    %v1235 = vmul.f32 %v1233, %v1233
    %v1236 = vadd.f32 %v1234, %v1235
    %1237 = vadd.xlane.f32.xlu0 %v1236
    %v1238 = vpop.xlane.xlu0 %1237
    %v1239 = vmul.f32 %v1238, %v293
    %v1240 = vadd.f32 %v1239, 1e-05
    %v1241 = vrsqrt.pop %v1240
    %v1242 = vmul.f32 %v1241, %v1240
    %v1243 = vmul.f32 %v1242, %v1241
    %v1244 = vmul.f32 0.5, %v1243
    %v1245 = vsub.f32 1.5, %v1244
    %v1246 = vmul.f32 %v1241, %v1245
    %vm1247 = vweird.f32 %v1240
    %vm1248 = vweird.f32 %v1241
    %vm1249 = vmor %vm1247, %vm1248
    %v1250 = vsel %vm1249, %v1241, %v1246
    %v1251 = vmul.f32 %v1232, %v1250
    %v1252 = vmul.f32 %v1233, %v1250
    %v1253 = vmax.f32 %v1251, 0.0
    %v1254 = vmax.f32 %v1252, 0.0
    %1257 = vrot.lane.b32.xlu0 %v1253, 48
    %v1258 = vpop.permute.xlu0 %1257
    %1259 = vrot.lane.b32.xlu0 %v1254, 48
    %v1260 = vpop.permute.xlu0 %1259
    %v1261 = vsel %vm166, %v1258, %v1260
    %v1265 = vsel %vm166, 0.0, %v1258
    %v1266 = vsel %vm166, %v1260, 0.0
    %1269 = vrot.lane.b32.xlu0 %v1265, 112
    %v1270 = vpop.permute.xlu0 %1269
    %1271 = vrot.lane.b32.xlu0 %v1261, 112
    %v1272 = vpop.permute.xlu0 %1271
    %1273 = vrot.lane.b32.xlu0 %v1266, 112
    %v1274 = vpop.permute.xlu0 %1273
    %v1275 = vsel %vm181, %v1270, %v1272
    %v1276 = vsel %vm181, %v1272, %v1274
    %1279 = vrot.lane.b32.xlu0 %v1265, 96
    %v1280 = vpop.permute.xlu0 %1279
    %1281 = vrot.lane.b32.xlu0 %v1261, 96
    %v1282 = vpop.permute.xlu0 %1281
    %1283 = vrot.lane.b32.xlu0 %v1266, 96
    %v1284 = vpop.permute.xlu0 %1283
    %v1285 = vsel %vm192, %v1280, %v1282
    %v1286 = vsel %vm192, %v1282, %v1284
    %1289 = vrot.lane.b32.xlu0 %v1265, 80
    %v1290 = vpop.permute.xlu0 %1289
    %1291 = vrot.lane.b32.xlu0 %v1261, 80
    %v1292 = vpop.permute.xlu0 %1291
    %1293 = vrot.lane.b32.xlu0 %v1266, 80
    %v1294 = vpop.permute.xlu0 %1293
    %v1295 = vsel %vm203, %v1290, %v1292
    %v1296 = vsel %vm203, %v1292, %v1294
    %1299 = vrot.lane.b32.xlu0 %v1265, 64
    %v1300 = vpop.permute.xlu0 %1299
    %1301 = vrot.lane.b32.xlu0 %v1261, 64
    %v1302 = vpop.permute.xlu0 %1301
    %1303 = vrot.lane.b32.xlu0 %v1266, 64
    %v1304 = vpop.permute.xlu0 %1303
    %v1305 = vsel %vm214, %v1300, %v1302
    %v1306 = vsel %vm214, %v1302, %v1304
    %1309 = vrot.lane.b32.xlu0 %v1265, 48
    %v1310 = vpop.permute.xlu0 %1309
    %1311 = vrot.lane.b32.xlu0 %v1261, 48
    %v1312 = vpop.permute.xlu0 %1311
    %1313 = vrot.lane.b32.xlu0 %v1266, 48
    %v1314 = vpop.permute.xlu0 %1313
    %v1315 = vsel %vm166, %v1310, %v1312
    %v1316 = vsel %vm166, %v1312, %v1314
    %1319 = vrot.lane.b32.xlu0 %v1265, 32
    %v1320 = vpop.permute.xlu0 %1319
    %1321 = vrot.lane.b32.xlu0 %v1261, 32
    %v1322 = vpop.permute.xlu0 %1321
    %1323 = vrot.lane.b32.xlu0 %v1266, 32
    %v1324 = vpop.permute.xlu0 %1323
    %v1325 = vsel %vm235, %v1320, %v1322
    %v1326 = vsel %vm235, %v1322, %v1324
    %1329 = vmatpush.msra.mxu0 0.0
    %1330 = vmatpush.msra.mxu0 0.0
    %1331 = vmatpush.msra.mxu0 0.0
    %1332 = vmatpush.msra.mxu0 0.0
    %1333 = vmatpush.msra.mxu0 0.0
    %1334 = vmatpush.msra.mxu0 0.0
    %1335 = vmatpush.msra.mxu0 0.0
    %1336 = vmatpush.msra.mxu0 0.0
    %1337 = vmatpush.msra.mxu0 0.0
    %1338 = vmatpush.msra.mxu0 %v1325
    %1339 = vmatpush.msra.mxu0 %v1315
    %1340 = vmatpush.msra.mxu0 %v1305
    %1341 = vmatpush.msra.mxu0 %v1295
    %1342 = vmatpush.msra.mxu0 %v1285
    %1343 = vmatpush.msra.mxu0 %v1275
    %1344 = vmatpush.msra.mxu0 %v1265
    %1345 = vmatmul.f32.gmra.mxu0 %v734
    %v1346 = vpop.f32.mrf.mxu0
    %v1347 = vadd.f32 0.0, %v1346
    %1348 = vdwg.mxu0
    %1349 = vmatpush.msra.mxu0 0.0
    %1350 = vmatpush.msra.mxu0 0.0
    %1351 = vmatpush.msra.mxu0 0.0
    %1352 = vmatpush.msra.mxu0 0.0
    %1353 = vmatpush.msra.mxu0 0.0
    %1354 = vmatpush.msra.mxu0 0.0
    %1355 = vmatpush.msra.mxu0 0.0
    %1356 = vmatpush.msra.mxu0 0.0
    %1357 = vmatpush.msra.mxu0 0.0
    %1358 = vmatpush.msra.mxu0 %v1326
    %1359 = vmatpush.msra.mxu0 %v1316
    %1360 = vmatpush.msra.mxu0 %v1306
    %1361 = vmatpush.msra.mxu0 %v1296
    %1362 = vmatpush.msra.mxu0 %v1286
    %1363 = vmatpush.msra.mxu0 %v1276
    %1364 = vmatpush.msra.mxu0 %v1261
    %1365 = vmatmul.f32.gmra.mxu0 %v734
    %v1366 = vpop.f32.mrf.mxu0
    %v1367 = vadd.f32 0.0, %v1366
    %1368 = vdwg.mxu0
    %v1369 = vadd.f32 %v1347, %v1367
    %1370 = vadd.xlane.f32.xlu0 %v1369
    %v1371 = vpop.xlane.xlu0 %1370
    %v1372 = vmul.f32 %v1371, %v293
    %v1373 = vsub.f32 %v1347, %v1372
    %v1374 = vsub.f32 %v1367, %v1372
    %v1375 = vmul.f32 %v1373, %v1373
    %v1376 = vmul.f32 %v1374, %v1374
    %v1377 = vadd.f32 %v1375, %v1376
    %1378 = vadd.xlane.f32.xlu0 %v1377
    %v1379 = vpop.xlane.xlu0 %1378
    %v1380 = vmul.f32 %v1379, %v293
    %v1381 = vadd.f32 %v1380, 1e-05
    %v1382 = vrsqrt.pop %v1381
    %v1383 = vmul.f32 %v1382, %v1381
    %v1384 = vmul.f32 %v1383, %v1382
    %v1385 = vmul.f32 0.5, %v1384
    %v1386 = vsub.f32 1.5, %v1385
    %v1387 = vmul.f32 %v1382, %v1386
    %vm1388 = vweird.f32 %v1381
    %vm1389 = vweird.f32 %v1382
    %vm1390 = vmor %vm1388, %vm1389
    %v1391 = vsel %vm1390, %v1382, %v1387
    %v1392 = vmul.f32 %v1373, %v1391
    %v1393 = vmul.f32 %v1374, %v1391
    %v1394 = vmax.f32 %v1392, 0.0
    %v1395 = vmax.f32 %v1393, 0.0
    %v1396 = vadd.f32 %v1102, %v1394
    %v1397 = vadd.f32 %v1103, %v1395
    %s1398 = scalar_lea.vmem [#allocation11], 16
    %1399 = vst [vmem:[%s1398] sm:$0xff] %v1396
    %1400 = vst [vmem:[%s1398 + $0x8] sm:$0xff] %v1397
    // Predicated region
    $region42: #{tpu_custom_call.1} parent=1 // pred_check
      _
    $region43: #{tpu_custom_call.1} parent=1 // pred_check_branch
      %1402 = sbr.rel (0) target = $region45
    $region44: #{tpu_custom_call.1} parent=1 // pred_region
      %1404 = vsyncadd [#allocation4], 0
      %s1405 = sshll.u32 [#allocation11], 4
      %s1406 = int_to_ptr.vmem [resolvable:$true] %s1405
      %s1407 = sshll.u32 %s5, 4
      %s1408 = int_to_ptr.hbm [resolvable:$true] %s1407
      %1413 = dma.vmem_to_hbm [thread:$0]  %s1406, 512, %s1408, [#allocation4], 256, 256, 16
    $region45: #{tpu_custom_call.1} parent=1 // pred_fallthru
      _
    // Predicated region
    $region46: #{tpu_custom_call.1} parent=1 // pred_check
      _
    $region47: #{tpu_custom_call.1} parent=1 // pred_check_branch
      %1415 = sbr.rel (0) target = $region49
    $region48: #{tpu_custom_call.1} parent=1 // pred_region
      %1417 = dma.done [#allocation4], 512
    $region49: #{tpu_custom_call.1} parent=1 // pred_fallthru
      _
    %1418 = vsyncpa [#allocation3], 1
    %1419 = vsyncpa [#allocation6], 1
    %1420 = vsyncpa [#allocation9], 1
    %1421 = vsyncpa [#allocation4], 1

// kernel: tpu_custom_call.1
$region0: #{tpu_custom_call.1}
  #allocation0 [shape = 'u32[]', space=smem, size = 0x4, offset = 0x4, fixed_abs, tag = 'smem constant byte address 0x4 - core index']
  #allocation1 [shape = 'u32[72,128]{1,0:T(1,128)}', space=vmem, size = 0x9000, scoped, tag = 'internal scratch']
  %s0 = inlined_call_operand.hbm [shape: f32[2,8,256], index: 0, kind: input, shape index: {}]
  %s1 = inlined_call_operand.hbm [shape: f32[8,56], index: 1, kind: input, shape index: {}]
  %s2 = inlined_call_operand.hbm [shape: f32[8,56], index: 2, kind: input, shape index: {}]
  %s3 = inlined_call_operand.hbm [shape: f32[8,56], index: 3, kind: input, shape index: {}]
  %s4 = inlined_call_operand.hbm [shape: f32[8,56], index: 4, kind: input, shape index: {}]
  %s5 = inlined_call_operand.hbm [shape: f32[2,8,256], index: 5, kind: output, shape index: {}]
  %s6 = sld [smem:[#allocation0]]
  $region50: #{tpu_custom_call.1} parent=0
    _
  %s8 = ssub.s32 1, %s6
  %s9 = scalar_select 0, %s8, %s6
  $region1: #{tpu_custom_call.1} parent=0
    #allocation2 [shape = 'u8[16384]{0}', space=vmem, size = 0x4000, scoped, tag = 'input window, operand 0, single buffered']
    #allocation3 [shape = 's32[1]{0}', space=sflag, size = 0x4, scoped, tag = 'scoped memory for tpu_custom_call.1']
    #allocation4 [shape = 's32[1]{0}', space=sflag, size = 0x4, scoped, tag = 'scoped memory for tpu_custom_call.1']
    #allocation5 [shape = 'u8[4096]{0}', space=vmem, size = 0x1000, scoped, tag = 'input window, operand 1, single buffered']
    #allocation6 [shape = 's32[1]{0}', space=sflag, size = 0x4, scoped, tag = 'scoped memory for tpu_custom_call.1']
    #allocation7 [shape = 'u8[4096]{0}', space=vmem, size = 0x1000, scoped, tag = 'input window, operand 2, single buffered']
    #allocation8 [shape = 'u8[4096]{0}', space=vmem, size = 0x1000, scoped, tag = 'input window, operand 3, single buffered']
    #allocation9 [shape = 's32[1]{0}', space=sflag, size = 0x4, scoped, tag = 'scoped memory for tpu_custom_call.1']
    #allocation10 [shape = 'u8[4096]{0}', space=vmem, size = 0x1000, scoped, tag = 'input window, operand 4, single buffered']
    #allocation11 [shape = 'u8[16384]{0}', space=vmem, size = 0x4000, scoped, tag = 'output window, operand 0, single buffered']
    %10 = vsyncpa [#allocation3], 0
    %11 = vsyncpa [#allocation6], 0
    %12 = vsyncpa [#allocation9], 0
    %13 = vsyncpa [#allocation4], 0
    // Predicated region
    $region2: #{tpu_custom_call.1} parent=1 // pred_check
      _
    $region3: #{tpu_custom_call.1} parent=1 // pred_check_branch
      %15 = sbr.rel (0) target = $region5
    $region4: #{tpu_custom_call.1} parent=1 // pred_region
      %17 = vsyncadd [#allocation3], 0
      %s18 = sshll.u32 %s0, 4
      %s19 = int_to_ptr.hbm [resolvable:$true] %s18
      %s20 = sshll.u32 [#allocation2], 4
      %s21 = int_to_ptr.vmem [resolvable:$true] %s20
      %26 = dma.hbm_to_vmem [thread:$0]  %s19, 512, %s21, [#allocation3], 256, 256, 16
    $region5: #{tpu_custom_call.1} parent=1 // pred_fallthru
      _
    // Predicated region
    $region6: #{tpu_custom_call.1} parent=1 // pred_check
      _
    $region7: #{tpu_custom_call.1} parent=1 // pred_check_branch
      %28 = sbr.rel (0) target = $region9
    $region8: #{tpu_custom_call.1} parent=1 // pred_region
      %30 = vsyncadd [#allocation6], 0
      %s32 = sshll.u32 %s1, 4
      %s33 = int_to_ptr.hbm [resolvable:$true] %s32
      %s34 = sshll.u32 [#allocation5], 4
      %s35 = int_to_ptr.vmem [resolvable:$true] %s34
      %37 = dma.hbm_to_vmem [thread:$0]  %s33, 128, %s35, [#allocation6]
    $region9: #{tpu_custom_call.1} parent=1 // pred_fallthru
      _
    // Predicated region
    $region10: #{tpu_custom_call.1} parent=1 // pred_check
      _
    $region11: #{tpu_custom_call.1} parent=1 // pred_check_branch
      %39 = sbr.rel (0) target = $region13
    $region12: #{tpu_custom_call.1} parent=1 // pred_region
      %41 = vsyncadd [#allocation6], 0
      %s43 = sshll.u32 %s2, 4
      %s44 = int_to_ptr.hbm [resolvable:$true] %s43
      %s45 = sshll.u32 [#allocation7], 4
      %s46 = int_to_ptr.vmem [resolvable:$true] %s45
      %48 = dma.hbm_to_vmem [thread:$0]  %s44, 128, %s46, [#allocation6]
    $region13: #{tpu_custom_call.1} parent=1 // pred_fallthru
      _
    // Predicated region
    $region14: #{tpu_custom_call.1} parent=1 // pred_check
      _
    $region15: #{tpu_custom_call.1} parent=1 // pred_check_branch
      %50 = sbr.rel (0) target = $region17
    $region16: #{tpu_custom_call.1} parent=1 // pred_region
      %52 = vsyncadd [#allocation9], 0
      %s54 = sshll.u32 %s3, 4
      %s55 = int_to_ptr.hbm [resolvable:$true] %s54
      %s56 = sshll.u32 [#allocation8], 4
      %s57 = int_to_ptr.vmem [resolvable:$true] %s56
      %59 = dma.hbm_to_vmem [thread:$0]  %s55, 128, %s57, [#allocation9]
    $region17: #{tpu_custom_call.1} parent=1 // pred_fallthru
      _
    // Predicated region
    $region18: #{tpu_custom_call.1} parent=1 // pred_check
      _
    $region19: #{tpu_custom_call.1} parent=1 // pred_check_branch
      %61 = sbr.rel (0) target = $region21
    $region20: #{tpu_custom_call.1} parent=1 // pred_region
      %63 = vsyncadd [#allocation9], 0
      %s65 = sshll.u32 %s4, 4
      %s66 = int_to_ptr.hbm [resolvable:$true] %s65
      %s67 = sshll.u32 [#allocation10], 4
      %s68 = int_to_ptr.vmem [resolvable:$true] %s67
      %70 = dma.hbm_to_vmem [thread:$0]  %s66, 128, %s68, [#allocation9]
    $region21: #{tpu_custom_call.1} parent=1 // pred_fallthru
      _
    // Predicated region
    $region22: #{tpu_custom_call.1} parent=1 // pred_check
      _
    $region23: #{tpu_custom_call.1} parent=1 // pred_check_branch
      %72 = sbr.rel (0) target = $region25
    $region24: #{tpu_custom_call.1} parent=1 // pred_region
      %74 = dma.done [#allocation3], 512
    $region25: #{tpu_custom_call.1} parent=1 // pred_fallthru
      _
    // Predicated region
    $region26: #{tpu_custom_call.1} parent=1 // pred_check
      _
    $region27: #{tpu_custom_call.1} parent=1 // pred_check_branch
      %76 = sbr.rel (0) target = $region29
    $region28: #{tpu_custom_call.1} parent=1 // pred_region
      %78 = dma.done [#allocation6], 128
    $region29: #{tpu_custom_call.1} parent=1 // pred_fallthru
      _
    // Predicated region
    $region30: #{tpu_custom_call.1} parent=1 // pred_check
      _
    $region31: #{tpu_custom_call.1} parent=1 // pred_check_branch
      %80 = sbr.rel (0) target = $region33
    $region32: #{tpu_custom_call.1} parent=1 // pred_region
      %82 = dma.done [#allocation6], 128
    $region33: #{tpu_custom_call.1} parent=1 // pred_fallthru
      _
    // Predicated region
    $region34: #{tpu_custom_call.1} parent=1 // pred_check
      _
    $region35: #{tpu_custom_call.1} parent=1 // pred_check_branch
      %84 = sbr.rel (0) target = $region37
    $region36: #{tpu_custom_call.1} parent=1 // pred_region
      %86 = dma.done [#allocation9], 128
    $region37: #{tpu_custom_call.1} parent=1 // pred_fallthru
      _
    // Predicated region
    $region38: #{tpu_custom_call.1} parent=1 // pred_check
      _
    $region39: #{tpu_custom_call.1} parent=1 // pred_check_branch
      %88 = sbr.rel (0) target = $region41
    $region40: #{tpu_custom_call.1} parent=1 // pred_region
      %90 = dma.done [#allocation9], 128
    $region41: #{tpu_custom_call.1} parent=1 // pred_fallthru
      _
    %v91 = vlaneseq
    %v92 = vand.u32 %v91, 127
    %v93 = vadd.s32 %v92, 128
    %vm94 = vcmp.lt.s32.totalorder %v92, 0
    %v95 = vsub.s32 0, %v92
    %v96 = vsel %vm94, %v95, %v92
    %v97 = vshrl.u32 %v96, 4
    %v98 = vand.u32 %v96, 15
    %v99 = vsub.s32 0, %v98
    %v100 = vsel %vm94, %v99, %v98
    %vm101 = vcmp.lt.s32.totalorder %v93, 0
    %v102 = vsub.s32 0, %v93
    %v103 = vsel %vm101, %v102, %v93
    %v104 = vshrl.u32 %v103, 4
    %v105 = vand.u32 %v103, 15
    %v106 = vsub.s32 0, %v105
    %v107 = vsel %vm101, %v106, %v105
    %vm108 = vcmp.ne.s32.totalorder %v100, 0
    %vm109 = vcmp.ne.s32.totalorder %v107, 0
    %vm110 = vcmp.lt.s32.totalorder %v100, 0
    %vm111 = vcmp.lt.s32.totalorder %v107, 0
    %vm112 = vmand %vm110, %vm108
    %vm113 = vmand %vm111, %vm109
    %v114 = vadd.s32 %v100, 16
    %v115 = vadd.s32 %v107, 16
    %v116 = vsel %vm112, %v114, %v100
    %v117 = vsel %vm113, %v115, %v107
    %vm118 = vcmp.ge.s32.totalorder %v116, 3
    %vm119 = vcmp.ge.s32.totalorder %v117, 3
    %vm120 = vcmp.lt.s32.totalorder %v116, 19
    %vm121 = vcmp.lt.s32.totalorder %v117, 19
    %vm122 = vmand %vm118, %vm120
    %vm123 = vmand %vm119, %vm121
    %vm124 = vcmp.ge.s32.totalorder %v116, 2
    %vm125 = vcmp.ge.s32.totalorder %v117, 2
    %vm126 = vcmp.lt.s32.totalorder %v116, 18
    %vm127 = vcmp.lt.s32.totalorder %v117, 18
    %vm128 = vmand %vm124, %vm126
    %vm129 = vmand %vm125, %vm127
    %vm130 = vcmp.ge.s32.totalorder %v116, 1
    %vm131 = vcmp.ge.s32.totalorder %v117, 1
    %vm132 = vcmp.lt.s32.totalorder %v116, 17
    %vm133 = vcmp.lt.s32.totalorder %v117, 17
    %vm134 = vmand %vm130, %vm132
    %vm135 = vmand %vm131, %vm133
    %vm136 = vcmp.ge.s32.totalorder %v116, 4294967295
    %vm137 = vcmp.ge.s32.totalorder %v117, 4294967295
    %vm138 = vcmp.lt.s32.totalorder %v116, 15
    %vm139 = vcmp.lt.s32.totalorder %v117, 15
    %vm140 = vmand %vm136, %vm138
    %vm141 = vmand %vm137, %vm139
    %vm142 = vcmp.ge.s32.totalorder %v116, 4294967294
    %vm143 = vcmp.ge.s32.totalorder %v117, 4294967294
    %vm144 = vcmp.lt.s32.totalorder %v116, 14
    %vm145 = vcmp.lt.s32.totalorder %v117, 14
    %vm146 = vmand %vm142, %vm144
    %vm147 = vmand %vm143, %vm145
    %vm148 = vcmp.ge.s32.totalorder %v116, 4294967293
    %vm149 = vcmp.ge.s32.totalorder %v117, 4294967293
    %vm150 = vcmp.lt.s32.totalorder %v116, 13
    %vm151 = vcmp.lt.s32.totalorder %v117, 13
    %vm152 = vmand %vm148, %vm150
    %vm153 = vmand %vm149, %vm151
    %v154 = vld [vmem:[#allocation5] sm:$0xff]
    %v155 = vld [vmem:[#allocation7] sm:$0xff]
    %v156 = vld [vmem:[#allocation8] sm:$0xff]
    %v157 = vld [vmem:[#allocation10] sm:$0xff]
    %v158 = vld [vmem:[#allocation2] sm:$0xff]
    %v159 = vld [vmem:[#allocation2 + $0x8] sm:$0xff]
    %162 = vrot.lane.b32.xlu0 %v158, 48
    %v163 = vpop.permute.xlu0 %162
    %164 = vrot.lane.b32.xlu0 %v159, 48
    %v165 = vpop.permute.xlu0 %164
    %vm166 = vcmask 392192
    %v167 = vsel %vm166, %v163, %v165
    %v171 = vsel %vm166, 0.0, %v163
    %v172 = vsel %vm166, %v165, 0.0
    %175 = vrot.lane.b32.xlu0 %v171, 112
    %v176 = vpop.permute.xlu0 %175
    %177 = vrot.lane.b32.xlu0 %v167, 112
    %v178 = vpop.permute.xlu0 %177
    %179 = vrot.lane.b32.xlu0 %v172, 112
    %v180 = vpop.permute.xlu0 %179
    %vm181 = vcmask 916480
    %v182 = vsel %vm181, %v176, %v178
    %v183 = vsel %vm181, %v178, %v180
    %186 = vrot.lane.b32.xlu0 %v171, 96
    %v187 = vpop.permute.xlu0 %186
    %188 = vrot.lane.b32.xlu0 %v167, 96
    %v189 = vpop.permute.xlu0 %188
    %190 = vrot.lane.b32.xlu0 %v172, 96
    %v191 = vpop.permute.xlu0 %190
    %vm192 = vcmask 785408
    %v193 = vsel %vm192, %v187, %v189
    %v194 = vsel %vm192, %v189, %v191
    %197 = vrot.lane.b32.xlu0 %v171, 80
    %v198 = vpop.permute.xlu0 %197
    %199 = vrot.lane.b32.xlu0 %v167, 80
    %v200 = vpop.permute.xlu0 %199
    %201 = vrot.lane.b32.xlu0 %v172, 80
    %v202 = vpop.permute.xlu0 %201
    %vm203 = vcmask 654336
    %v204 = vsel %vm203, %v198, %v200
    %v205 = vsel %vm203, %v200, %v202
    %208 = vrot.lane.b32.xlu0 %v171, 64
    %v209 = vpop.permute.xlu0 %208
    %210 = vrot.lane.b32.xlu0 %v167, 64
    %v211 = vpop.permute.xlu0 %210
    %212 = vrot.lane.b32.xlu0 %v172, 64
    %v213 = vpop.permute.xlu0 %212
    %vm214 = vcmask 523264
    %v215 = vsel %vm214, %v209, %v211
    %v216 = vsel %vm214, %v211, %v213
    %219 = vrot.lane.b32.xlu0 %v171, 48
    %v220 = vpop.permute.xlu0 %219
    %221 = vrot.lane.b32.xlu0 %v167, 48
    %v222 = vpop.permute.xlu0 %221
    %223 = vrot.lane.b32.xlu0 %v172, 48
    %v224 = vpop.permute.xlu0 %223
    %v225 = vsel %vm166, %v220, %v222
    %v226 = vsel %vm166, %v222, %v224
    %229 = vrot.lane.b32.xlu0 %v171, 32
    %v230 = vpop.permute.xlu0 %229
    %231 = vrot.lane.b32.xlu0 %v167, 32
    %v232 = vpop.permute.xlu0 %231
    %233 = vrot.lane.b32.xlu0 %v172, 32
    %v234 = vpop.permute.xlu0 %233
    %vm235 = vcmask 261120
    %v236 = vsel %vm235, %v230, %v232
    %v237 = vsel %vm235, %v232, %v234
    %vm240 = vcmask 457728
    %v242 = vsel %vm240, %v154, 0
    %244 = vmatpush.msra.mxu0 0.0
    %245 = vmatpush.msra.mxu0 0.0
    %246 = vmatpush.msra.mxu0 0.0
    %247 = vmatpush.msra.mxu0 0.0
    %248 = vmatpush.msra.mxu0 0.0
    %249 = vmatpush.msra.mxu0 0.0
    %250 = vmatpush.msra.mxu0 0.0
    %251 = vmatpush.msra.mxu0 0.0
    %252 = vmatpush.msra.mxu0 0.0
    %253 = vmatpush.msra.mxu0 %v236
    %254 = vmatpush.msra.mxu0 %v225
    %255 = vmatpush.msra.mxu0 %v215
    %256 = vmatpush.msra.mxu0 %v204
    %257 = vmatpush.msra.mxu0 %v193
    %258 = vmatpush.msra.mxu0 %v182
    %259 = vmatpush.msra.mxu0 %v171
    %260 = vmatmul.f32.gmra.mxu0 %v242
    %v261 = vpop.f32.mrf.mxu0
    %v262 = vadd.f32 0.0, %v261
    %263 = vdwg.mxu0
    %264 = vmatpush.msra.mxu0 0.0
    %265 = vmatpush.msra.mxu0 0.0
    %266 = vmatpush.msra.mxu0 0.0
    %267 = vmatpush.msra.mxu0 0.0
    %268 = vmatpush.msra.mxu0 0.0
    %269 = vmatpush.msra.mxu0 0.0
    %270 = vmatpush.msra.mxu0 0.0
    %271 = vmatpush.msra.mxu0 0.0
    %272 = vmatpush.msra.mxu0 0.0
    %273 = vmatpush.msra.mxu0 %v237
    %274 = vmatpush.msra.mxu0 %v226
    %275 = vmatpush.msra.mxu0 %v216
    %276 = vmatpush.msra.mxu0 %v205
    %277 = vmatpush.msra.mxu0 %v194
    %278 = vmatpush.msra.mxu0 %v183
    %279 = vmatpush.msra.mxu0 %v167
    %280 = vmatmul.f32.gmra.mxu0 %v242
    %v281 = vpop.f32.mrf.mxu0
    %v282 = vadd.f32 0.0, %v281
    %283 = vdwg.mxu0
    %v284 = vadd.f32 %v262, %v282
    %285 = vadd.xlane.f32.xlu0 %v284
    %v286 = vpop.xlane.xlu0 %285
    %v287 = vrcp.pop 256.0
    %v288 = vmul.f32 256.0, %v287
    %v289 = vsub.f32 1.0, %v288
    %v290 = vmul.f32 %v287, %v289
    %v291 = vadd.f32 %v287, %v290
    %vm292 = vweird.f32 %v287
    %v293 = vsel %vm292, %v287, %v291
    %v294 = vmul.f32 %v286, %v293
    %v295 = vsub.f32 %v262, %v294
    %v296 = vsub.f32 %v282, %v294
    %v297 = vmul.f32 %v295, %v295
    %v298 = vmul.f32 %v296, %v296
    %v299 = vadd.f32 %v297, %v298
    %300 = vadd.xlane.f32.xlu0 %v299
    %v301 = vpop.xlane.xlu0 %300
    %v302 = vmul.f32 %v301, %v293
    %v303 = vadd.f32 %v302, 1e-05
    %v304 = vrsqrt.pop %v303
    %v305 = vmul.f32 %v304, %v303
    %v306 = vmul.f32 %v305, %v304
    %v307 = vmul.f32 0.5, %v306
    %v308 = vsub.f32 1.5, %v307
    %v309 = vmul.f32 %v304, %v308
    %vm310 = vweird.f32 %v303
    %vm311 = vweird.f32 %v304
    %vm312 = vmor %vm310, %vm311
    %v313 = vsel %vm312, %v304, %v309
    %v314 = vmul.f32 %v295, %v313
    %v315 = vmul.f32 %v296, %v313
    %v316 = vmax.f32 %v314, 0.0
    %v317 = vmax.f32 %v315, 0.0
    %320 = vrot.lane.b32.xlu0 %v316, 3
    %v321 = vpop.permute.xlu0 %320
    %322 = vrot.lane.b32.xlu0 %v317, 3
    %v323 = vpop.permute.xlu0 %322
    %vm324 = vcmask 23552
    %v325 = vsel %vm324, %v321, %v323
    %v329 = vsel %vm324, 0.0, %v321
    %v330 = vsel %vm324, %v323, 0.0
    %v331 = vsel %vm122, 1, 0
    %v332 = vsel %vm123, 1, 0
    %vm333 = vcmp.eq.s32.totalorder %v331, 1
    %vm334 = vcmp.eq.s32.totalorder %v332, 1
    %v335 = vsel %vm333, %v329, 0.0
    %v336 = vsel %vm334, %v325, 0.0
    %v337 = vsel %vm128, 1, 0
    %v338 = vsel %vm129, 1, 0
    %vm339 = vcmp.eq.s32.totalorder %v337, 1
    %vm340 = vcmp.eq.s32.totalorder %v338, 1
    %343 = vrot.lane.b32.xlu0 %v329, 127
    %v344 = vpop.permute.xlu0 %343
    %345 = vrot.lane.b32.xlu0 %v325, 127
    %v346 = vpop.permute.xlu0 %345
    %347 = vrot.lane.b32.xlu0 %v330, 127
    %v348 = vpop.permute.xlu0 %347
    %vm349 = vcmask 1039360
    %v350 = vsel %vm349, %v344, %v346
    %v351 = vsel %vm349, %v346, %v348
    %v354 = vsel %vm339, %v350, 0.0
    %v355 = vsel %vm340, %v351, 0.0
    %v356 = vsel %vm134, 1, 0
    %v357 = vsel %vm135, 1, 0
    %vm358 = vcmp.eq.s32.totalorder %v356, 1
    %vm359 = vcmp.eq.s32.totalorder %v357, 1
    %360 = vrot.lane.b32.xlu0 %v329, 126
    %v361 = vpop.permute.xlu0 %360
    %362 = vrot.lane.b32.xlu0 %v325, 126
    %v363 = vpop.permute.xlu0 %362
    %364 = vrot.lane.b32.xlu0 %v330, 126
    %v365 = vpop.permute.xlu0 %364
    %vm366 = vcmask 1031168
    %v367 = vsel %vm366, %v361, %v363
    %v368 = vsel %vm366, %v363, %v365
    %v371 = vsel %vm358, %v367, 0.0
    %v372 = vsel %vm359, %v368, 0.0
    %v373 = vsel %vm140, 1, 0
    %v374 = vsel %vm141, 1, 0
    %vm375 = vcmp.eq.s32.totalorder %v373, 1
    %vm376 = vcmp.eq.s32.totalorder %v374, 1
    %377 = vrot.lane.b32.xlu0 %v329, 124
    %v378 = vpop.permute.xlu0 %377
    %379 = vrot.lane.b32.xlu0 %v325, 124
    %v380 = vpop.permute.xlu0 %379
    %381 = vrot.lane.b32.xlu0 %v330, 124
    %v382 = vpop.permute.xlu0 %381
    %vm383 = vcmask 1014784
    %v384 = vsel %vm383, %v378, %v380
    %v385 = vsel %vm383, %v380, %v382
    %v388 = vsel %vm375, %v384, 0.0
    %v389 = vsel %vm376, %v385, 0.0
    %v390 = vsel %vm146, 1, 0
    %v391 = vsel %vm147, 1, 0
    %vm392 = vcmp.eq.s32.totalorder %v390, 1
    %vm393 = vcmp.eq.s32.totalorder %v391, 1
    %394 = vrot.lane.b32.xlu0 %v329, 123
    %v395 = vpop.permute.xlu0 %394
    %396 = vrot.lane.b32.xlu0 %v325, 123
    %v397 = vpop.permute.xlu0 %396
    %398 = vrot.lane.b32.xlu0 %v330, 123
    %v399 = vpop.permute.xlu0 %398
    %vm400 = vcmask 1006592
    %v401 = vsel %vm400, %v395, %v397
    %v402 = vsel %vm400, %v397, %v399
    %v405 = vsel %vm392, %v401, 0.0
    %v406 = vsel %vm393, %v402, 0.0
    %v407 = vsel %vm152, 1, 0
    %v408 = vsel %vm153, 1, 0
    %vm409 = vcmp.eq.s32.totalorder %v407, 1
    %vm410 = vcmp.eq.s32.totalorder %v408, 1
    %411 = vrot.lane.b32.xlu0 %v329, 122
    %v412 = vpop.permute.xlu0 %411
    %413 = vrot.lane.b32.xlu0 %v325, 122
    %v414 = vpop.permute.xlu0 %413
    %415 = vrot.lane.b32.xlu0 %v330, 122
    %v416 = vpop.permute.xlu0 %415
    %vm417 = vcmask 998400
    %v418 = vsel %vm417, %v412, %v414
    %v419 = vsel %vm417, %v414, %v416
    %v422 = vsel %vm409, %v418, 0.0
    %v423 = vsel %vm410, %v419, 0.0
    %424 = vrot.lane.b32.xlu0 %v329, 125
    %v425 = vpop.permute.xlu0 %424
    %426 = vrot.lane.b32.xlu0 %v325, 125
    %v427 = vpop.permute.xlu0 %426
    %428 = vrot.lane.b32.xlu0 %v330, 125
    %v429 = vpop.permute.xlu0 %428
    %vm430 = vcmask 1022976
    %v431 = vsel %vm430, %v425, %v427
    %v432 = vsel %vm430, %v427, %v429
    %v436 = vsel %vm240, %v155, 0
    %438 = vmatpush.msra.mxu0 0.0
    %439 = vmatpush.msra.mxu0 0.0
    %440 = vmatpush.msra.mxu0 0.0
    %441 = vmatpush.msra.mxu0 0.0
    %442 = vmatpush.msra.mxu0 0.0
    %443 = vmatpush.msra.mxu0 0.0
    %444 = vmatpush.msra.mxu0 0.0
    %445 = vmatpush.msra.mxu0 0.0
    %446 = vmatpush.msra.mxu0 0.0
    %447 = vmatpush.msra.mxu0 %v422
    %448 = vmatpush.msra.mxu0 %v405
    %449 = vmatpush.msra.mxu0 %v388
    %450 = vmatpush.msra.mxu0 %v431
    %451 = vmatpush.msra.mxu0 %v371
    %452 = vmatpush.msra.mxu0 %v354
    %453 = vmatpush.msra.mxu0 %v335
    %454 = vmatmul.f32.gmra.mxu0 %v436
    %v455 = vpop.f32.mrf.mxu0
    %v456 = vadd.f32 0.0, %v455
    %457 = vdwg.mxu0
    %458 = vmatpush.msra.mxu0 0.0
    %459 = vmatpush.msra.mxu0 0.0
    %460 = vmatpush.msra.mxu0 0.0
    %461 = vmatpush.msra.mxu0 0.0
    %462 = vmatpush.msra.mxu0 0.0
    %463 = vmatpush.msra.mxu0 0.0
    %464 = vmatpush.msra.mxu0 0.0
    %465 = vmatpush.msra.mxu0 0.0
    %466 = vmatpush.msra.mxu0 0.0
    %467 = vmatpush.msra.mxu0 %v423
    %468 = vmatpush.msra.mxu0 %v406
    %469 = vmatpush.msra.mxu0 %v389
    %470 = vmatpush.msra.mxu0 %v432
    %471 = vmatpush.msra.mxu0 %v372
    %472 = vmatpush.msra.mxu0 %v355
    %473 = vmatpush.msra.mxu0 %v336
    %474 = vmatmul.f32.gmra.mxu0 %v436
    %v475 = vpop.f32.mrf.mxu0
    %v476 = vadd.f32 0.0, %v475
    %477 = vdwg.mxu0
    %v478 = vadd.f32 %v456, %v476
    %479 = vadd.xlane.f32.xlu0 %v478
    %v480 = vpop.xlane.xlu0 %479
    %v481 = vmul.f32 %v480, %v293
    %v482 = vsub.f32 %v456, %v481
    %v483 = vsub.f32 %v476, %v481
    %v484 = vmul.f32 %v482, %v482
    %v485 = vmul.f32 %v483, %v483
    %v486 = vadd.f32 %v484, %v485
    %487 = vadd.xlane.f32.xlu0 %v486
    %v488 = vpop.xlane.xlu0 %487
    %v489 = vmul.f32 %v488, %v293
    %v490 = vadd.f32 %v489, 1e-05
    %v491 = vrsqrt.pop %v490
    %v492 = vmul.f32 %v491, %v490
    %v493 = vmul.f32 %v492, %v491
    %v494 = vmul.f32 0.5, %v493
    %v495 = vsub.f32 1.5, %v494
    %v496 = vmul.f32 %v491, %v495
    %vm497 = vweird.f32 %v490
    %vm498 = vweird.f32 %v491
    %vm499 = vmor %vm497, %vm498
    %v500 = vsel %vm499, %v491, %v496
    %v501 = vmul.f32 %v482, %v500
    %v502 = vmul.f32 %v483, %v500
    %v503 = vmax.f32 %v501, 0.0
    %v504 = vmax.f32 %v502, 0.0
    %505 = vrot.lane.b32.xlu0 %v158, 3
    %v506 = vpop.permute.xlu0 %505
    %507 = vrot.lane.b32.xlu0 %v159, 3
    %v508 = vpop.permute.xlu0 %507
    %v509 = vsel %vm324, %v506, %v508
    %v513 = vsel %vm324, 0.0, %v506
    %v514 = vsel %vm324, %v508, 0.0
    %v515 = vsel %vm333, %v513, 0.0
    %v516 = vsel %vm334, %v509, 0.0
    %519 = vrot.lane.b32.xlu0 %v513, 127
    %v520 = vpop.permute.xlu0 %519
    %521 = vrot.lane.b32.xlu0 %v509, 127
    %v522 = vpop.permute.xlu0 %521
    %523 = vrot.lane.b32.xlu0 %v514, 127
    %v524 = vpop.permute.xlu0 %523
    %v525 = vsel %vm349, %v520, %v522
    %v526 = vsel %vm349, %v522, %v524
    %v529 = vsel %vm339, %v525, 0.0
    %v530 = vsel %vm340, %v526, 0.0
    %531 = vrot.lane.b32.xlu0 %v513, 126
    %v532 = vpop.permute.xlu0 %531
    %533 = vrot.lane.b32.xlu0 %v509, 126
    %v534 = vpop.permute.xlu0 %533
    %535 = vrot.lane.b32.xlu0 %v514, 126
    %v536 = vpop.permute.xlu0 %535
    %v537 = vsel %vm366, %v532, %v534
    %v538 = vsel %vm366, %v534, %v536
    %v541 = vsel %vm358, %v537, 0.0
    %v542 = vsel %vm359, %v538, 0.0
    %543 = vrot.lane.b32.xlu0 %v513, 124
    %v544 = vpop.permute.xlu0 %543
    %545 = vrot.lane.b32.xlu0 %v509, 124
    %v546 = vpop.permute.xlu0 %545
    %547 = vrot.lane.b32.xlu0 %v514, 124
    %v548 = vpop.permute.xlu0 %547
    %v549 = vsel %vm383, %v544, %v546
    %v550 = vsel %vm383, %v546, %v548
    %v553 = vsel %vm375, %v549, 0.0
    %v554 = vsel %vm376, %v550, 0.0
    %555 = vrot.lane.b32.xlu0 %v513, 123
    %v556 = vpop.permute.xlu0 %555
    %557 = vrot.lane.b32.xlu0 %v509, 123
    %v558 = vpop.permute.xlu0 %557
    %559 = vrot.lane.b32.xlu0 %v514, 123
    %v560 = vpop.permute.xlu0 %559
    %v561 = vsel %vm400, %v556, %v558
    %v562 = vsel %vm400, %v558, %v560
    %v565 = vsel %vm392, %v561, 0.0
    %v566 = vsel %vm393, %v562, 0.0
    %567 = vrot.lane.b32.xlu0 %v513, 122
    %v568 = vpop.permute.xlu0 %567
    %569 = vrot.lane.b32.xlu0 %v509, 122
    %v570 = vpop.permute.xlu0 %569
    %571 = vrot.lane.b32.xlu0 %v514, 122
    %v572 = vpop.permute.xlu0 %571
    %v573 = vsel %vm417, %v568, %v570
    %v574 = vsel %vm417, %v570, %v572
    %v577 = vsel %vm409, %v573, 0.0
    %v578 = vsel %vm410, %v574, 0.0
    %579 = vrot.lane.b32.xlu0 %v513, 125
    %v580 = vpop.permute.xlu0 %579
    %581 = vrot.lane.b32.xlu0 %v509, 125
    %v582 = vpop.permute.xlu0 %581
    %583 = vrot.lane.b32.xlu0 %v514, 125
    %v584 = vpop.permute.xlu0 %583
    %v585 = vsel %vm430, %v580, %v582
    %v586 = vsel %vm430, %v582, %v584
    %v590 = vsel %vm240, %v156, 0
    %592 = vmatpush.msra.mxu0 0.0
    %593 = vmatpush.msra.mxu0 0.0
    %594 = vmatpush.msra.mxu0 0.0
    %595 = vmatpush.msra.mxu0 0.0
    %596 = vmatpush.msra.mxu0 0.0
    %597 = vmatpush.msra.mxu0 0.0
    %598 = vmatpush.msra.mxu0 0.0
    %599 = vmatpush.msra.mxu0 0.0
    %600 = vmatpush.msra.mxu0 0.0
    %601 = vmatpush.msra.mxu0 %v577
    %602 = vmatpush.msra.mxu0 %v565
    %603 = vmatpush.msra.mxu0 %v553
    %604 = vmatpush.msra.mxu0 %v585
    %605 = vmatpush.msra.mxu0 %v541
    %606 = vmatpush.msra.mxu0 %v529
    %607 = vmatpush.msra.mxu0 %v515
    %608 = vmatmul.f32.gmra.mxu0 %v590
    %v609 = vpop.f32.mrf.mxu0
    %v610 = vadd.f32 0.0, %v609
    %611 = vdwg.mxu0
    %612 = vmatpush.msra.mxu0 0.0
    %613 = vmatpush.msra.mxu0 0.0
    %614 = vmatpush.msra.mxu0 0.0
    %615 = vmatpush.msra.mxu0 0.0
    %616 = vmatpush.msra.mxu0 0.0
    %617 = vmatpush.msra.mxu0 0.0
    %618 = vmatpush.msra.mxu0 0.0
    %619 = vmatpush.msra.mxu0 0.0
    %620 = vmatpush.msra.mxu0 0.0
    %621 = vmatpush.msra.mxu0 %v578
    %622 = vmatpush.msra.mxu0 %v566
    %623 = vmatpush.msra.mxu0 %v554
    %624 = vmatpush.msra.mxu0 %v586
    %625 = vmatpush.msra.mxu0 %v542
    %626 = vmatpush.msra.mxu0 %v530
    %627 = vmatpush.msra.mxu0 %v516
    %628 = vmatmul.f32.gmra.mxu0 %v590
    %v629 = vpop.f32.mrf.mxu0
    %v630 = vadd.f32 0.0, %v629
    %631 = vdwg.mxu0
    %v632 = vadd.f32 %v610, %v630
    %633 = vadd.xlane.f32.xlu0 %v632
    %v634 = vpop.xlane.xlu0 %633
    %v635 = vmul.f32 %v634, %v293
    %v636 = vsub.f32 %v610, %v635
    %v637 = vsub.f32 %v630, %v635
    %v638 = vmul.f32 %v636, %v636
    %v639 = vmul.f32 %v637, %v637
    %v640 = vadd.f32 %v638, %v639
    %641 = vadd.xlane.f32.xlu0 %v640
    %v642 = vpop.xlane.xlu0 %641
    %v643 = vmul.f32 %v642, %v293
    %v644 = vadd.f32 %v643, 1e-05
    %v645 = vrsqrt.pop %v644
    %v646 = vmul.f32 %v645, %v644
    %v647 = vmul.f32 %v646, %v645
    %v648 = vmul.f32 0.5, %v647
    %v649 = vsub.f32 1.5, %v648
    %v650 = vmul.f32 %v645, %v649
    %vm651 = vweird.f32 %v644
    %vm652 = vweird.f32 %v645
    %vm653 = vmor %vm651, %vm652
    %v654 = vsel %vm653, %v645, %v650
    %v655 = vmul.f32 %v636, %v654
    %v656 = vmul.f32 %v637, %v654
    %v657 = vmax.f32 %v655, 0.0
    %v658 = vmax.f32 %v656, 0.0
    %661 = vrot.lane.b32.xlu0 %v657, 48
    %v662 = vpop.permute.xlu0 %661
    %663 = vrot.lane.b32.xlu0 %v658, 48
    %v664 = vpop.permute.xlu0 %663
    %v665 = vsel %vm166, %v662, %v664
    %v669 = vsel %vm166, 0.0, %v662
    %v670 = vsel %vm166, %v664, 0.0
    %673 = vrot.lane.b32.xlu0 %v669, 112
    %v674 = vpop.permute.xlu0 %673
    %675 = vrot.lane.b32.xlu0 %v665, 112
    %v676 = vpop.permute.xlu0 %675
    %677 = vrot.lane.b32.xlu0 %v670, 112
    %v678 = vpop.permute.xlu0 %677
    %v679 = vsel %vm181, %v674, %v676
    %v680 = vsel %vm181, %v676, %v678
    %683 = vrot.lane.b32.xlu0 %v669, 96
    %v684 = vpop.permute.xlu0 %683
    %685 = vrot.lane.b32.xlu0 %v665, 96
    %v686 = vpop.permute.xlu0 %685
    %687 = vrot.lane.b32.xlu0 %v670, 96
    %v688 = vpop.permute.xlu0 %687
    %v689 = vsel %vm192, %v684, %v686
    %v690 = vsel %vm192, %v686, %v688
    %693 = vrot.lane.b32.xlu0 %v669, 80
    %v694 = vpop.permute.xlu0 %693
    %695 = vrot.lane.b32.xlu0 %v665, 80
    %v696 = vpop.permute.xlu0 %695
    %697 = vrot.lane.b32.xlu0 %v670, 80
    %v698 = vpop.permute.xlu0 %697
    %v699 = vsel %vm203, %v694, %v696
    %v700 = vsel %vm203, %v696, %v698
    %703 = vrot.lane.b32.xlu0 %v669, 64
    %v704 = vpop.permute.xlu0 %703
    %705 = vrot.lane.b32.xlu0 %v665, 64
    %v706 = vpop.permute.xlu0 %705
    %707 = vrot.lane.b32.xlu0 %v670, 64
    %v708 = vpop.permute.xlu0 %707
    %v709 = vsel %vm214, %v704, %v706
    %v710 = vsel %vm214, %v706, %v708
    %713 = vrot.lane.b32.xlu0 %v669, 48
    %v714 = vpop.permute.xlu0 %713
    %715 = vrot.lane.b32.xlu0 %v665, 48
    %v716 = vpop.permute.xlu0 %715
    %717 = vrot.lane.b32.xlu0 %v670, 48
    %v718 = vpop.permute.xlu0 %717
    %v719 = vsel %vm166, %v714, %v716
    %v720 = vsel %vm166, %v716, %v718
    %723 = vrot.lane.b32.xlu0 %v669, 32
    %v724 = vpop.permute.xlu0 %723
    %725 = vrot.lane.b32.xlu0 %v665, 32
    %v726 = vpop.permute.xlu0 %725
    %727 = vrot.lane.b32.xlu0 %v670, 32
    %v728 = vpop.permute.xlu0 %727
    %v729 = vsel %vm235, %v724, %v726
    %v730 = vsel %vm235, %v726, %v728
    %v734 = vsel %vm240, %v157, 0
    %736 = vmatpush.msra.mxu0 0.0
    %737 = vmatpush.msra.mxu0 0.0
    %738 = vmatpush.msra.mxu0 0.0
    %739 = vmatpush.msra.mxu0 0.0
    %740 = vmatpush.msra.mxu0 0.0
    %741 = vmatpush.msra.mxu0 0.0
    %742 = vmatpush.msra.mxu0 0.0
    %743 = vmatpush.msra.mxu0 0.0
    %744 = vmatpush.msra.mxu0 0.0
    %745 = vmatpush.msra.mxu0 %v729
    %746 = vmatpush.msra.mxu0 %v719
    %747 = vmatpush.msra.mxu0 %v709
    %748 = vmatpush.msra.mxu0 %v699
    %749 = vmatpush.msra.mxu0 %v689
    %750 = vmatpush.msra.mxu0 %v679
    %751 = vmatpush.msra.mxu0 %v669
    %752 = vmatmul.f32.gmra.mxu0 %v734
    %v753 = vpop.f32.mrf.mxu0
    %v754 = vadd.f32 0.0, %v753
    %755 = vdwg.mxu0
    %756 = vmatpush.msra.mxu0 0.0
    %757 = vmatpush.msra.mxu0 0.0
    %758 = vmatpush.msra.mxu0 0.0
    %759 = vmatpush.msra.mxu0 0.0
    %760 = vmatpush.msra.mxu0 0.0
    %761 = vmatpush.msra.mxu0 0.0
    %762 = vmatpush.msra.mxu0 0.0
    %763 = vmatpush.msra.mxu0 0.0
    %764 = vmatpush.msra.mxu0 0.0
    %765 = vmatpush.msra.mxu0 %v730
    %766 = vmatpush.msra.mxu0 %v720
    %767 = vmatpush.msra.mxu0 %v710
    %768 = vmatpush.msra.mxu0 %v700
    %769 = vmatpush.msra.mxu0 %v690
    %770 = vmatpush.msra.mxu0 %v680
    %771 = vmatpush.msra.mxu0 %v665
    %772 = vmatmul.f32.gmra.mxu0 %v734
    %v773 = vpop.f32.mrf.mxu0
    %v774 = vadd.f32 0.0, %v773
    %775 = vdwg.mxu0
    %v776 = vadd.f32 %v754, %v774
    %777 = vadd.xlane.f32.xlu0 %v776
    %v778 = vpop.xlane.xlu0 %777
    %v779 = vmul.f32 %v778, %v293
    %v780 = vsub.f32 %v754, %v779
    %v781 = vsub.f32 %v774, %v779
    %v782 = vmul.f32 %v780, %v780
    %v783 = vmul.f32 %v781, %v781
    %v784 = vadd.f32 %v782, %v783
    %785 = vadd.xlane.f32.xlu0 %v784
    %v786 = vpop.xlane.xlu0 %785
    %v787 = vmul.f32 %v786, %v293
    %v788 = vadd.f32 %v787, 1e-05
    %v789 = vrsqrt.pop %v788
    %v790 = vmul.f32 %v789, %v788
    %v791 = vmul.f32 %v790, %v789
    %v792 = vmul.f32 0.5, %v791
    %v793 = vsub.f32 1.5, %v792
    %v794 = vmul.f32 %v789, %v793
    %vm795 = vweird.f32 %v788
    %vm796 = vweird.f32 %v789
    %vm797 = vmor %vm795, %vm796
    %v798 = vsel %vm797, %v789, %v794
    %v799 = vmul.f32 %v780, %v798
    %v800 = vmul.f32 %v781, %v798
    %v801 = vmax.f32 %v799, 0.0
    %v802 = vmax.f32 %v800, 0.0
    %v803 = vadd.f32 %v503, %v801
    %v804 = vadd.f32 %v504, %v802
    %805 = vst [vmem:[#allocation11] sm:$0xff] %v803
    %806 = vst [vmem:[#allocation11 + $0x8] sm:$0xff] %v804
    %s807 = scalar_lea.vmem [#allocation2], 16
    %v808 = vld [vmem:[%s807] sm:$0xff]
    %v809 = vld [vmem:[%s807 + $0x8] sm:$0xff]
    %812 = vrot.lane.b32.xlu0 %v808, 48
    %v813 = vpop.permute.xlu0 %812
    %814 = vrot.lane.b32.xlu0 %v809, 48
    %v815 = vpop.permute.xlu0 %814
    %v816 = vsel %vm166, %v813, %v815
    %v820 = vsel %vm166, 0.0, %v813
    %v821 = vsel %vm166, %v815, 0.0
    %824 = vrot.lane.b32.xlu0 %v820, 112
    %v825 = vpop.permute.xlu0 %824
    %826 = vrot.lane.b32.xlu0 %v816, 112
    %v827 = vpop.permute.xlu0 %826
    %828 = vrot.lane.b32.xlu0 %v821, 112
    %v829 = vpop.permute.xlu0 %828
    %v830 = vsel %vm181, %v825, %v827
    %v831 = vsel %vm181, %v827, %v829
    %834 = vrot.lane.b32.xlu0 %v820, 96
    %v835 = vpop.permute.xlu0 %834
    %836 = vrot.lane.b32.xlu0 %v816, 96
    %v837 = vpop.permute.xlu0 %836
    %838 = vrot.lane.b32.xlu0 %v821, 96
    %v839 = vpop.permute.xlu0 %838
    %v840 = vsel %vm192, %v835, %v837
    %v841 = vsel %vm192, %v837, %v839
    %844 = vrot.lane.b32.xlu0 %v820, 80
    %v845 = vpop.permute.xlu0 %844
    %846 = vrot.lane.b32.xlu0 %v816, 80
    %v847 = vpop.permute.xlu0 %846
    %848 = vrot.lane.b32.xlu0 %v821, 80
    %v849 = vpop.permute.xlu0 %848
    %v850 = vsel %vm203, %v845, %v847
    %v851 = vsel %vm203, %v847, %v849
    %854 = vrot.lane.b32.xlu0 %v820, 64
    %v855 = vpop.permute.xlu0 %854
    %856 = vrot.lane.b32.xlu0 %v816, 64
    %v857 = vpop.permute.xlu0 %856
    %858 = vrot.lane.b32.xlu0 %v821, 64
    %v859 = vpop.permute.xlu0 %858
    %v860 = vsel %vm214, %v855, %v857
    %v861 = vsel %vm214, %v857, %v859
    %864 = vrot.lane.b32.xlu0 %v820, 48
    %v865 = vpop.permute.xlu0 %864
    %866 = vrot.lane.b32.xlu0 %v816, 48
    %v867 = vpop.permute.xlu0 %866
    %868 = vrot.lane.b32.xlu0 %v821, 48
    %v869 = vpop.permute.xlu0 %868
    %v870 = vsel %vm166, %v865, %v867
    %v871 = vsel %vm166, %v867, %v869
    %874 = vrot.lane.b32.xlu0 %v820, 32
    %v875 = vpop.permute.xlu0 %874
    %876 = vrot.lane.b32.xlu0 %v816, 32
    %v877 = vpop.permute.xlu0 %876
    %878 = vrot.lane.b32.xlu0 %v821, 32
    %v879 = vpop.permute.xlu0 %878
    %v880 = vsel %vm235, %v875, %v877
    %v881 = vsel %vm235, %v877, %v879
    %884 = vmatpush.msra.mxu0 0.0
    %885 = vmatpush.msra.mxu0 0.0
    %886 = vmatpush.msra.mxu0 0.0
    %887 = vmatpush.msra.mxu0 0.0
    %888 = vmatpush.msra.mxu0 0.0
    %889 = vmatpush.msra.mxu0 0.0
    %890 = vmatpush.msra.mxu0 0.0
    %891 = vmatpush.msra.mxu0 0.0
    %892 = vmatpush.msra.mxu0 0.0
    %893 = vmatpush.msra.mxu0 %v880
    %894 = vmatpush.msra.mxu0 %v870
    %895 = vmatpush.msra.mxu0 %v860
    %896 = vmatpush.msra.mxu0 %v850
    %897 = vmatpush.msra.mxu0 %v840
    %898 = vmatpush.msra.mxu0 %v830
    %899 = vmatpush.msra.mxu0 %v820
    %900 = vmatmul.f32.gmra.mxu0 %v242
    %v901 = vpop.f32.mrf.mxu0
    %v902 = vadd.f32 0.0, %v901
    %903 = vdwg.mxu0
    %904 = vmatpush.msra.mxu0 0.0
    %905 = vmatpush.msra.mxu0 0.0
    %906 = vmatpush.msra.mxu0 0.0
    %907 = vmatpush.msra.mxu0 0.0
    %908 = vmatpush.msra.mxu0 0.0
    %909 = vmatpush.msra.mxu0 0.0
    %910 = vmatpush.msra.mxu0 0.0
    %911 = vmatpush.msra.mxu0 0.0
    %912 = vmatpush.msra.mxu0 0.0
    %913 = vmatpush.msra.mxu0 %v881
    %914 = vmatpush.msra.mxu0 %v871
    %915 = vmatpush.msra.mxu0 %v861
    %916 = vmatpush.msra.mxu0 %v851
    %917 = vmatpush.msra.mxu0 %v841
    %918 = vmatpush.msra.mxu0 %v831
    %919 = vmatpush.msra.mxu0 %v816
    %920 = vmatmul.f32.gmra.mxu0 %v242
    %v921 = vpop.f32.mrf.mxu0
    %v922 = vadd.f32 0.0, %v921
    %923 = vdwg.mxu0
    %v924 = vadd.f32 %v902, %v922
    %925 = vadd.xlane.f32.xlu0 %v924
    %v926 = vpop.xlane.xlu0 %925
    %v927 = vmul.f32 %v926, %v293
    %v928 = vsub.f32 %v902, %v927
    %v929 = vsub.f32 %v922, %v927
    %v930 = vmul.f32 %v928, %v928
    %v931 = vmul.f32 %v929, %v929
    %v932 = vadd.f32 %v930, %v931
    %933 = vadd.xlane.f32.xlu0 %v932
    %v934 = vpop.xlane.xlu0 %933
    %v935 = vmul.f32 %v934, %v293
    %v936 = vadd.f32 %v935, 1e-05
    %v937 = vrsqrt.pop %v936
    %v938 = vmul.f32 %v937, %v936
    %v939 = vmul.f32 %v938, %v937
    %v940 = vmul.f32 0.5, %v939
    %v941 = vsub.f32 1.5, %v940
    %v942 = vmul.f32 %v937, %v941
    %vm943 = vweird.f32 %v936
    %vm944 = vweird.f32 %v937
    %vm945 = vmor %vm943, %vm944
    %v946 = vsel %vm945, %v937, %v942
    %v947 = vmul.f32 %v928, %v946
    %v948 = vmul.f32 %v929, %v946
    %v949 = vmax.f32 %v947, 0.0
    %v950 = vmax.f32 %v948, 0.0
    %953 = vrot.lane.b32.xlu0 %v949, 3
    %v954 = vpop.permute.xlu0 %953
    %955 = vrot.lane.b32.xlu0 %v950, 3
    %v956 = vpop.permute.xlu0 %955
    %v957 = vsel %vm324, %v954, %v956
    %v961 = vsel %vm324, 0.0, %v954
    %v962 = vsel %vm324, %v956, 0.0
    %v963 = vsel %vm333, %v961, 0.0
    %v964 = vsel %vm334, %v957, 0.0
    %967 = vrot.lane.b32.xlu0 %v961, 127
    %v968 = vpop.permute.xlu0 %967
    %969 = vrot.lane.b32.xlu0 %v957, 127
    %v970 = vpop.permute.xlu0 %969
    %971 = vrot.lane.b32.xlu0 %v962, 127
    %v972 = vpop.permute.xlu0 %971
    %v973 = vsel %vm349, %v968, %v970
    %v974 = vsel %vm349, %v970, %v972
    %v977 = vsel %vm339, %v973, 0.0
    %v978 = vsel %vm340, %v974, 0.0
    %979 = vrot.lane.b32.xlu0 %v961, 126
    %v980 = vpop.permute.xlu0 %979
    %981 = vrot.lane.b32.xlu0 %v957, 126
    %v982 = vpop.permute.xlu0 %981
    %983 = vrot.lane.b32.xlu0 %v962, 126
    %v984 = vpop.permute.xlu0 %983
    %v985 = vsel %vm366, %v980, %v982
    %v986 = vsel %vm366, %v982, %v984
    %v989 = vsel %vm358, %v985, 0.0
    %v990 = vsel %vm359, %v986, 0.0
    %991 = vrot.lane.b32.xlu0 %v961, 124
    %v992 = vpop.permute.xlu0 %991
    %993 = vrot.lane.b32.xlu0 %v957, 124
    %v994 = vpop.permute.xlu0 %993
    %995 = vrot.lane.b32.xlu0 %v962, 124
    %v996 = vpop.permute.xlu0 %995
    %v997 = vsel %vm383, %v992, %v994
    %v998 = vsel %vm383, %v994, %v996
    %v1001 = vsel %vm375, %v997, 0.0
    %v1002 = vsel %vm376, %v998, 0.0
    %1003 = vrot.lane.b32.xlu0 %v961, 123
    %v1004 = vpop.permute.xlu0 %1003
    %1005 = vrot.lane.b32.xlu0 %v957, 123
    %v1006 = vpop.permute.xlu0 %1005
    %1007 = vrot.lane.b32.xlu0 %v962, 123
    %v1008 = vpop.permute.xlu0 %1007
    %v1009 = vsel %vm400, %v1004, %v1006
    %v1010 = vsel %vm400, %v1006, %v1008
    %v1013 = vsel %vm392, %v1009, 0.0
    %v1014 = vsel %vm393, %v1010, 0.0
    %1015 = vrot.lane.b32.xlu0 %v961, 122
    %v1016 = vpop.permute.xlu0 %1015
    %1017 = vrot.lane.b32.xlu0 %v957, 122
    %v1018 = vpop.permute.xlu0 %1017
    %1019 = vrot.lane.b32.xlu0 %v962, 122
    %v1020 = vpop.permute.xlu0 %1019
    %v1021 = vsel %vm417, %v1016, %v1018
    %v1022 = vsel %vm417, %v1018, %v1020
    %v1025 = vsel %vm409, %v1021, 0.0
    %v1026 = vsel %vm410, %v1022, 0.0
    %1027 = vrot.lane.b32.xlu0 %v961, 125
    %v1028 = vpop.permute.xlu0 %1027
    %1029 = vrot.lane.b32.xlu0 %v957, 125
    %v1030 = vpop.permute.xlu0 %1029
    %1031 = vrot.lane.b32.xlu0 %v962, 125
    %v1032 = vpop.permute.xlu0 %1031
    %v1033 = vsel %vm430, %v1028, %v1030
    %v1034 = vsel %vm430, %v1030, %v1032
    %1037 = vmatpush.msra.mxu0 0.0
    %1038 = vmatpush.msra.mxu0 0.0
    %1039 = vmatpush.msra.mxu0 0.0
    %1040 = vmatpush.msra.mxu0 0.0
    %1041 = vmatpush.msra.mxu0 0.0
    %1042 = vmatpush.msra.mxu0 0.0
    %1043 = vmatpush.msra.mxu0 0.0
    %1044 = vmatpush.msra.mxu0 0.0
    %1045 = vmatpush.msra.mxu0 0.0
    %1046 = vmatpush.msra.mxu0 %v1025
    %1047 = vmatpush.msra.mxu0 %v1013
    %1048 = vmatpush.msra.mxu0 %v1001
    %1049 = vmatpush.msra.mxu0 %v1033
    %1050 = vmatpush.msra.mxu0 %v989
    %1051 = vmatpush.msra.mxu0 %v977
    %1052 = vmatpush.msra.mxu0 %v963
    %1053 = vmatmul.f32.gmra.mxu0 %v436
    %v1054 = vpop.f32.mrf.mxu0
    %v1055 = vadd.f32 0.0, %v1054
    %1056 = vdwg.mxu0
    %1057 = vmatpush.msra.mxu0 0.0
    %1058 = vmatpush.msra.mxu0 0.0
    %1059 = vmatpush.msra.mxu0 0.0
    %1060 = vmatpush.msra.mxu0 0.0
    %1061 = vmatpush.msra.mxu0 0.0
    %1062 = vmatpush.msra.mxu0 0.0
    %1063 = vmatpush.msra.mxu0 0.0
    %1064 = vmatpush.msra.mxu0 0.0
    %1065 = vmatpush.msra.mxu0 0.0
    %1066 = vmatpush.msra.mxu0 %v1026
    %1067 = vmatpush.msra.mxu0 %v1014
    %1068 = vmatpush.msra.mxu0 %v1002
    %1069 = vmatpush.msra.mxu0 %v1034
    %1070 = vmatpush.msra.mxu0 %v990
    %1071 = vmatpush.msra.mxu0 %v978
    %1072 = vmatpush.msra.mxu0 %v964
    %1073 = vmatmul.f32.gmra.mxu0 %v436
    %v1074 = vpop.f32.mrf.mxu0
    %v1075 = vadd.f32 0.0, %v1074
    %1076 = vdwg.mxu0
    %v1077 = vadd.f32 %v1055, %v1075
    %1078 = vadd.xlane.f32.xlu0 %v1077
    %v1079 = vpop.xlane.xlu0 %1078
    %v1080 = vmul.f32 %v1079, %v293
    %v1081 = vsub.f32 %v1055, %v1080
    %v1082 = vsub.f32 %v1075, %v1080
    %v1083 = vmul.f32 %v1081, %v1081
    %v1084 = vmul.f32 %v1082, %v1082
    %v1085 = vadd.f32 %v1083, %v1084
    %1086 = vadd.xlane.f32.xlu0 %v1085
    %v1087 = vpop.xlane.xlu0 %1086
    %v1088 = vmul.f32 %v1087, %v293
    %v1089 = vadd.f32 %v1088, 1e-05
    %v1090 = vrsqrt.pop %v1089
    %v1091 = vmul.f32 %v1090, %v1089
    %v1092 = vmul.f32 %v1091, %v1090
    %v1093 = vmul.f32 0.5, %v1092
    %v1094 = vsub.f32 1.5, %v1093
    %v1095 = vmul.f32 %v1090, %v1094
    %vm1096 = vweird.f32 %v1089
    %vm1097 = vweird.f32 %v1090
    %vm1098 = vmor %vm1096, %vm1097
    %v1099 = vsel %vm1098, %v1090, %v1095
    %v1100 = vmul.f32 %v1081, %v1099
    %v1101 = vmul.f32 %v1082, %v1099
    %v1102 = vmax.f32 %v1100, 0.0
    %v1103 = vmax.f32 %v1101, 0.0
    %1104 = vrot.lane.b32.xlu0 %v808, 3
    %v1105 = vpop.permute.xlu0 %1104
    %1106 = vrot.lane.b32.xlu0 %v809, 3
    %v1107 = vpop.permute.xlu0 %1106
    %v1108 = vsel %vm324, %v1105, %v1107
    %v1112 = vsel %vm324, 0.0, %v1105
    %v1113 = vsel %vm324, %v1107, 0.0
    %v1114 = vsel %vm333, %v1112, 0.0
    %v1115 = vsel %vm334, %v1108, 0.0
    %1118 = vrot.lane.b32.xlu0 %v1112, 127
    %v1119 = vpop.permute.xlu0 %1118
    %1120 = vrot.lane.b32.xlu0 %v1108, 127
    %v1121 = vpop.permute.xlu0 %1120
    %1122 = vrot.lane.b32.xlu0 %v1113, 127
    %v1123 = vpop.permute.xlu0 %1122
    %v1124 = vsel %vm349, %v1119, %v1121
    %v1125 = vsel %vm349, %v1121, %v1123
    %v1128 = vsel %vm339, %v1124, 0.0
    %v1129 = vsel %vm340, %v1125, 0.0
    %1130 = vrot.lane.b32.xlu0 %v1112, 126
    %v1131 = vpop.permute.xlu0 %1130
    %1132 = vrot.lane.b32.xlu0 %v1108, 126
    %v1133 = vpop.permute.xlu0 %1132
    %1134 = vrot.lane.b32.xlu0 %v1113, 126
    %v1135 = vpop.permute.xlu0 %1134
    %v1136 = vsel %vm366, %v1131, %v1133
    %v1137 = vsel %vm366, %v1133, %v1135
    %v1140 = vsel %vm358, %v1136, 0.0
    %v1141 = vsel %vm359, %v1137, 0.0
    %1142 = vrot.lane.b32.xlu0 %v1112, 124
    %v1143 = vpop.permute.xlu0 %1142
    %1144 = vrot.lane.b32.xlu0 %v1108, 124
    %v1145 = vpop.permute.xlu0 %1144
    %1146 = vrot.lane.b32.xlu0 %v1113, 124
    %v1147 = vpop.permute.xlu0 %1146
    %v1148 = vsel %vm383, %v1143, %v1145
    %v1149 = vsel %vm383, %v1145, %v1147
    %v1152 = vsel %vm375, %v1148, 0.0
    %v1153 = vsel %vm376, %v1149, 0.0
    %1154 = vrot.lane.b32.xlu0 %v1112, 123
    %v1155 = vpop.permute.xlu0 %1154
    %1156 = vrot.lane.b32.xlu0 %v1108, 123
    %v1157 = vpop.permute.xlu0 %1156
    %1158 = vrot.lane.b32.xlu0 %v1113, 123
    %v1159 = vpop.permute.xlu0 %1158
    %v1160 = vsel %vm400, %v1155, %v1157
    %v1161 = vsel %vm400, %v1157, %v1159
    %v1164 = vsel %vm392, %v1160, 0.0
    %v1165 = vsel %vm393, %v1161, 0.0
    %1166 = vrot.lane.b32.xlu0 %v1112, 122
    %v1167 = vpop.permute.xlu0 %1166
    %1168 = vrot.lane.b32.xlu0 %v1108, 122
    %v1169 = vpop.permute.xlu0 %1168
    %1170 = vrot.lane.b32.xlu0 %v1113, 122
    %v1171 = vpop.permute.xlu0 %1170
    %v1172 = vsel %vm417, %v1167, %v1169
    %v1173 = vsel %vm417, %v1169, %v1171
    %v1176 = vsel %vm409, %v1172, 0.0
    %v1177 = vsel %vm410, %v1173, 0.0
    %1178 = vrot.lane.b32.xlu0 %v1112, 125
    %v1179 = vpop.permute.xlu0 %1178
    %1180 = vrot.lane.b32.xlu0 %v1108, 125
    %v1181 = vpop.permute.xlu0 %1180
    %1182 = vrot.lane.b32.xlu0 %v1113, 125
    %v1183 = vpop.permute.xlu0 %1182
    %v1184 = vsel %vm430, %v1179, %v1181
    %v1185 = vsel %vm430, %v1181, %v1183
    %1188 = vmatpush.msra.mxu0 0.0
    %1189 = vmatpush.msra.mxu0 0.0
    %1190 = vmatpush.msra.mxu0 0.0
    %1191 = vmatpush.msra.mxu0 0.0
    %1192 = vmatpush.msra.mxu0 0.0
    %1193 = vmatpush.msra.mxu0 0.0
    %1194 = vmatpush.msra.mxu0 0.0
    %1195 = vmatpush.msra.mxu0 0.0
    %1196 = vmatpush.msra.mxu0 0.0
    %1197 = vmatpush.msra.mxu0 %v1176
    %1198 = vmatpush.msra.mxu0 %v1164
    %1199 = vmatpush.msra.mxu0 %v1152
    %1200 = vmatpush.msra.mxu0 %v1184
    %1201 = vmatpush.msra.mxu0 %v1140
    %1202 = vmatpush.msra.mxu0 %v1128
    %1203 = vmatpush.msra.mxu0 %v1114
    %1204 = vmatmul.f32.gmra.mxu0 %v590
    %v1205 = vpop.f32.mrf.mxu0
    %v1206 = vadd.f32 0.0, %v1205
    %1207 = vdwg.mxu0
    %1208 = vmatpush.msra.mxu0 0.0
    %1209 = vmatpush.msra.mxu0 0.0
    %1210 = vmatpush.msra.mxu0 0.0
    %1211 = vmatpush.msra.mxu0 0.0
    %1212 = vmatpush.msra.mxu0 0.0
    %1213 = vmatpush.msra.mxu0 0.0
    %1214 = vmatpush.msra.mxu0 0.0
    %1215 = vmatpush.msra.mxu0 0.0
    %1216 = vmatpush.msra.mxu0 0.0
    %1217 = vmatpush.msra.mxu0 %v1177
    %1218 = vmatpush.msra.mxu0 %v1165
    %1219 = vmatpush.msra.mxu0 %v1153
    %1220 = vmatpush.msra.mxu0 %v1185
    %1221 = vmatpush.msra.mxu0 %v1141
    %1222 = vmatpush.msra.mxu0 %v1129
    %1223 = vmatpush.msra.mxu0 %v1115
    %1224 = vmatmul.f32.gmra.mxu0 %v590
    %v1225 = vpop.f32.mrf.mxu0
    %v1226 = vadd.f32 0.0, %v1225
    %1227 = vdwg.mxu0
    %v1228 = vadd.f32 %v1206, %v1226
    %1229 = vadd.xlane.f32.xlu0 %v1228
    %v1230 = vpop.xlane.xlu0 %1229
    %v1231 = vmul.f32 %v1230, %v293
    %v1232 = vsub.f32 %v1206, %v1231
    %v1233 = vsub.f32 %v1226, %v1231
    %v1234 = vmul.f32 %v1232, %v1232
    %v1235 = vmul.f32 %v1233, %v1233
    %v1236 = vadd.f32 %v1234, %v1235
    %1237 = vadd.xlane.f32.xlu0 %v1236
    %v1238 = vpop.xlane.xlu0 %1237
    %v1239 = vmul.f32 %v1238, %v293
    %v1240 = vadd.f32 %v1239, 1e-05
    %v1241 = vrsqrt.pop %v1240
    %v1242 = vmul.f32 %v1241, %v1240
    %v1243 = vmul.f32 %v1242, %v1241
    %v1244 = vmul.f32 0.5, %v1243
    %v1245 = vsub.f32 1.5, %v1244
    %v1246 = vmul.f32 %v1241, %v1245
    %vm1247 = vweird.f32 %v1240
    %vm1248 = vweird.f32 %v1241
    %vm1249 = vmor %vm1247, %vm1248
    %v1250 = vsel %vm1249, %v1241, %v1246
    %v1251 = vmul.f32 %v1232, %v1250
    %v1252 = vmul.f32 %v1233, %v1250
    %v1253 = vmax.f32 %v1251, 0.0
    %v1254 = vmax.f32 %v1252, 0.0
    %1257 = vrot.lane.b32.xlu0 %v1253, 48
    %v1258 = vpop.permute.xlu0 %1257
    %1259 = vrot.lane.b32.xlu0 %v1254, 48
    %v1260 = vpop.permute.xlu0 %1259
    %v1261 = vsel %vm166, %v1258, %v1260
    %v1265 = vsel %vm166, 0.0, %v1258
    %v1266 = vsel %vm166, %v1260, 0.0
    %1269 = vrot.lane.b32.xlu0 %v1265, 112
    %v1270 = vpop.permute.xlu0 %1269
    %1271 = vrot.lane.b32.xlu0 %v1261, 112
    %v1272 = vpop.permute.xlu0 %1271
    %1273 = vrot.lane.b32.xlu0 %v1266, 112
    %v1274 = vpop.permute.xlu0 %1273
    %v1275 = vsel %vm181, %v1270, %v1272
    %v1276 = vsel %vm181, %v1272, %v1274
    %1279 = vrot.lane.b32.xlu0 %v1265, 96
    %v1280 = vpop.permute.xlu0 %1279
    %1281 = vrot.lane.b32.xlu0 %v1261, 96
    %v1282 = vpop.permute.xlu0 %1281
    %1283 = vrot.lane.b32.xlu0 %v1266, 96
    %v1284 = vpop.permute.xlu0 %1283
    %v1285 = vsel %vm192, %v1280, %v1282
    %v1286 = vsel %vm192, %v1282, %v1284
    %1289 = vrot.lane.b32.xlu0 %v1265, 80
    %v1290 = vpop.permute.xlu0 %1289
    %1291 = vrot.lane.b32.xlu0 %v1261, 80
    %v1292 = vpop.permute.xlu0 %1291
    %1293 = vrot.lane.b32.xlu0 %v1266, 80
    %v1294 = vpop.permute.xlu0 %1293
    %v1295 = vsel %vm203, %v1290, %v1292
    %v1296 = vsel %vm203, %v1292, %v1294
    %1299 = vrot.lane.b32.xlu0 %v1265, 64
    %v1300 = vpop.permute.xlu0 %1299
    %1301 = vrot.lane.b32.xlu0 %v1261, 64
    %v1302 = vpop.permute.xlu0 %1301
    %1303 = vrot.lane.b32.xlu0 %v1266, 64
    %v1304 = vpop.permute.xlu0 %1303
    %v1305 = vsel %vm214, %v1300, %v1302
    %v1306 = vsel %vm214, %v1302, %v1304
    %1309 = vrot.lane.b32.xlu0 %v1265, 48
    %v1310 = vpop.permute.xlu0 %1309
    %1311 = vrot.lane.b32.xlu0 %v1261, 48
    %v1312 = vpop.permute.xlu0 %1311
    %1313 = vrot.lane.b32.xlu0 %v1266, 48
    %v1314 = vpop.permute.xlu0 %1313
    %v1315 = vsel %vm166, %v1310, %v1312
    %v1316 = vsel %vm166, %v1312, %v1314
    %1319 = vrot.lane.b32.xlu0 %v1265, 32
    %v1320 = vpop.permute.xlu0 %1319
    %1321 = vrot.lane.b32.xlu0 %v1261, 32
    %v1322 = vpop.permute.xlu0 %1321
    %1323 = vrot.lane.b32.xlu0 %v1266, 32
    %v1324 = vpop.permute.xlu0 %1323
    %v1325 = vsel %vm235, %v1320, %v1322
    %v1326 = vsel %vm235, %v1322, %v1324
    %1329 = vmatpush.msra.mxu0 0.0
    %1330 = vmatpush.msra.mxu0 0.0
    %1331 = vmatpush.msra.mxu0 0.0
    %1332 = vmatpush.msra.mxu0 0.0
    %1333 = vmatpush.msra.mxu0 0.0
    %1334 = vmatpush.msra.mxu0 0.0
    %1335 = vmatpush.msra.mxu0 0.0
    %1336 = vmatpush.msra.mxu0 0.0
    %1337 = vmatpush.msra.mxu0 0.0
    %1338 = vmatpush.msra.mxu0 %v1325
    %1339 = vmatpush.msra.mxu0 %v1315
    %1340 = vmatpush.msra.mxu0 %v1305
    %1341 = vmatpush.msra.mxu0 %v1295
    %1342 = vmatpush.msra.mxu0 %v1285
    %1343 = vmatpush.msra.mxu0 %v1275
    %1344 = vmatpush.msra.mxu0 %v1265
    %1345 = vmatmul.f32.gmra.mxu0 %v734
    %v1346 = vpop.f32.mrf.mxu0
    %v1347 = vadd.f32 0.0, %v1346
    %1348 = vdwg.mxu0
    %1349 = vmatpush.msra.mxu0 0.0
    %1350 = vmatpush.msra.mxu0 0.0
    %1351 = vmatpush.msra.mxu0 0.0
    %1352 = vmatpush.msra.mxu0 0.0
    %1353 = vmatpush.msra.mxu0 0.0
    %1354 = vmatpush.msra.mxu0 0.0
    %1355 = vmatpush.msra.mxu0 0.0
    %1356 = vmatpush.msra.mxu0 0.0
    %1357 = vmatpush.msra.mxu0 0.0
    %1358 = vmatpush.msra.mxu0 %v1326
    %1359 = vmatpush.msra.mxu0 %v1316
    %1360 = vmatpush.msra.mxu0 %v1306
    %1361 = vmatpush.msra.mxu0 %v1296
    %1362 = vmatpush.msra.mxu0 %v1286
    %1363 = vmatpush.msra.mxu0 %v1276
    %1364 = vmatpush.msra.mxu0 %v1261
    %1365 = vmatmul.f32.gmra.mxu0 %v734
    %v1366 = vpop.f32.mrf.mxu0
    %v1367 = vadd.f32 0.0, %v1366
    %1368 = vdwg.mxu0
    %v1369 = vadd.f32 %v1347, %v1367
    %1370 = vadd.xlane.f32.xlu0 %v1369
    %v1371 = vpop.xlane.xlu0 %1370
    %v1372 = vmul.f32 %v1371, %v293
    %v1373 = vsub.f32 %v1347, %v1372
    %v1374 = vsub.f32 %v1367, %v1372
    %v1375 = vmul.f32 %v1373, %v1373
    %v1376 = vmul.f32 %v1374, %v1374
    %v1377 = vadd.f32 %v1375, %v1376
    %1378 = vadd.xlane.f32.xlu0 %v1377
    %v1379 = vpop.xlane.xlu0 %1378
    %v1380 = vmul.f32 %v1379, %v293
    %v1381 = vadd.f32 %v1380, 1e-05
    %v1382 = vrsqrt.pop %v1381
    %v1383 = vmul.f32 %v1382, %v1381
    %v1384 = vmul.f32 %v1383, %v1382
    %v1385 = vmul.f32 0.5, %v1384
    %v1386 = vsub.f32 1.5, %v1385
    %v1387 = vmul.f32 %v1382, %v1386
    %vm1388 = vweird.f32 %v1381
    %vm1389 = vweird.f32 %v1382
    %vm1390 = vmor %vm1388, %vm1389
    %v1391 = vsel %vm1390, %v1382, %v1387
    %v1392 = vmul.f32 %v1373, %v1391
    %v1393 = vmul.f32 %v1374, %v1391
    %v1394 = vmax.f32 %v1392, 0.0
    %v1395 = vmax.f32 %v1393, 0.0
    %v1396 = vadd.f32 %v1102, %v1394
    %v1397 = vadd.f32 %v1103, %v1395
    %s1398 = scalar_lea.vmem [#allocation11], 16
    %1399 = vst [vmem:[%s1398] sm:$0xff] %v1396
    %1400 = vst [vmem:[%s1398 + $0x8] sm:$0xff] %v1397
    // Predicated region
    $region42: #{tpu_custom_call.1} parent=1 // pred_check
      _
    $region43: #{tpu_custom_call.1} parent=1 // pred_check_branch
      %1402 = sbr.rel (0) target = $region45
    $region44: #{tpu_custom_call.1} parent=1 // pred_region
      %1404 = vsyncadd [#allocation4], 0
      %s1405 = sshll.u32 [#allocation11], 4
      %s1406 = int_to_ptr.vmem [resolvable:$true] %s1405
      %s1407 = sshll.u32 %s5, 4
      %s1408 = int_to_ptr.hbm [resolvable:$true] %s1407
      %1413 = dma.vmem_to_hbm [thread:$0]  %s1406, 512, %s1408, [#allocation4], 256, 256, 16
    $region45: #{tpu_custom_call.1} parent=1 // pred_fallthru
      _
    // Predicated region
    $region46: #{tpu_custom_call.1} parent=1 // pred_check
      _
    $region47: #{tpu_custom_call.1} parent=1 // pred_check_branch
      %1415 = sbr.rel (0) target = $region49
    $region48: #{tpu_custom_call.1} parent=1 // pred_region
      %1417 = dma.done [#allocation4], 512
    $region49: #{tpu_custom_call.1} parent=1 // pred_fallthru
      _
    %1418 = vsyncpa [#allocation3], 1
    %1419 = vsyncpa [#allocation6], 1
    %1420 = vsyncpa [#allocation9], 1
    %1421 = vsyncpa [#allocation4], 1

</llo_original>
